<compile_context>
chip_gen: v6e
topology: v6e:2x2x1
jax: 0.10.0
libtpu: 0.0.40
codegen_flags: <defaults>
</compile_context>

<pallas_src>
import jax
import jax.numpy as jnp
from jax.experimental import pallas as pl
from jax.experimental.pallas import tpu as pltpu

# ---- problem sizes (small, consistent with the module) ----------------------
B = 2            # real batch
BP = 8           # batch padded to one sublane tile (free: same vreg footprint)
T = 16           # sequence length
NF = 8           # num_features
CCH = 64         # conv channels
HID = 100        # LSTM hidden size
HP = 128         # hidden padded to one lane tile
GW = 4 * HP      # fused gate width (i,f,g,o each padded to 128)
NC = 13          # num_classes (module default)
T1 = T - 2       # after conv1 (kernel 3, valid)
T2 = T1 - 2      # after conv2 (kernel 3, valid)
L = T2 // 2      # after MaxPool1d(kernel_size=2)
BN_EPS = 1e-5


# ----------------------------- Pallas kernel --------------------------------
def cnnlstm_kernel(x_ref, c1w_ref, c1b_ref, c2w_ref, c2b_ref,
                   wih0f_ref, whh0f_ref, b0f_ref,
                   wih0b_ref, whh0b_ref, b0b_ref,
                   wih1f_ref, wih1b_ref, whh1_ref, b1_ref,
                   fc1w_ref, fc1b_ref, fc2w_ref, fc2b_ref,
                   out_ref,
                   pooled_s, of_s, ob_s):
    # x is time-major: rows ordered (t, b), shape (T*BP, NF), f32.
    x = x_ref[...]

    # --- conv1 (k=3, valid) + folded BatchNorm (eval) + relu -----------------
    # Time-major layout => tap k is a contiguous, 8-row-aligned sublane slice.
    c1w = c1w_ref[...]                                   # (3, NF, CCH) bf16
    y1 = c1b_ref[...]                                    # (1, CCH) f32, broadcasts
    for k in range(3):
        y1 = y1 + jnp.dot(x[k * BP:(k + T1) * BP, :].astype(jnp.bfloat16), c1w[k],
                          preferred_element_type=jnp.float32)
    y1 = jnp.maximum(y1, 0.0)                            # (T1*BP, CCH)

    # --- conv2 (k=3, valid) + relu -------------------------------------------
    c2w = c2w_ref[...]                                   # (3, CCH, CCH) bf16
    y2 = c2b_ref[...]
    for k in range(3):
        y2 = y2 + jnp.dot(y1[k * BP:(k + T2) * BP, :].astype(jnp.bfloat16), c2w[k],
                          preferred_element_type=jnp.float32)
    y2 = jnp.maximum(y2, 0.0)                            # (T2*BP, CCH)

    # --- MaxPool1d(2) over time (dropout_cnn is identity at inference) -------
    for t in range(L):
        pooled_s[t * BP:(t + 1) * BP, :] = jnp.maximum(
            y2[(2 * t) * BP:(2 * t + 1) * BP, :],
            y2[(2 * t + 1) * BP:(2 * t + 2) * BP, :])
    pooled = pooled_s[...].astype(jnp.bfloat16)          # (L*BP, CCH), rows (t, b)

    # --- hoisted, gate-fused input projections for LSTM layer 0 --------------
    pf = (jnp.dot(pooled, wih0f_ref[...], preferred_element_type=jnp.float32)
          + b0f_ref[...])                                # (L*BP, GW)
    pb = (jnp.dot(pooled, wih0b_ref[...], preferred_element_type=jnp.float32)
          + b0b_ref[...])                                # (L*BP, GW)

    def cell(xg, h, c, whh):
        # one fused-gate matmul per step; elementwise math stays in f32
        g = xg + jnp.dot(h.astype(jnp.bfloat16), whh,
                         preferred_element_type=jnp.float32)   # (BP, GW)
        i = jax.nn.sigmoid(g[:, 0 * HP:1 * HP])
        f = jax.nn.sigmoid(g[:, 1 * HP:2 * HP])
        gg = jnp.tanh(g[:, 2 * HP:3 * HP])
        o = jax.nn.sigmoid(g[:, 3 * HP:4 * HP])
        c = f * c + i * gg
        h = o * jnp.tanh(c)
        return h, c

    whh0f = whh0f_ref[...]
    whh0b = whh0b_ref[...]
    whh1 = whh1_ref[...]
    zeros = jnp.zeros((BP, HP), jnp.float32)

    # layer-0 forward direction
    h, c = zeros, zeros
    for t in range(L):
        h, c = cell(pf[t * BP:(t + 1) * BP, :], h, c, whh0f)
        of_s[t * BP:(t + 1) * BP, :] = h

    # layer-0 backward direction (independent chain; scheduler may overlap)
    h, c = zeros, zeros
    for t in range(L - 1, -1, -1):
        h, c = cell(pb[t * BP:(t + 1) * BP, :], h, c, whh0b)
        ob_s[t * BP:(t + 1) * BP, :] = h

    # layer-1, backward direction only -> hn[-1].  (Layer-1 forward direction
    # is dead code for this module's output; inter-layer LSTM dropout is
    # identity at inference.)  Input projection hoisted + fused over the
    # pre-split fwd/bwd halves of W_ih.
    p1 = (jnp.dot(of_s[...].astype(jnp.bfloat16), wih1f_ref[...],
                  preferred_element_type=jnp.float32)
          + jnp.dot(ob_s[...].astype(jnp.bfloat16), wih1b_ref[...],
                    preferred_element_type=jnp.float32)
          + b1_ref[...])                                 # (L*BP, GW)
    h, c = zeros, zeros
    for t in range(L - 1, -1, -1):
        h, c = cell(p1[t * BP:(t + 1) * BP, :], h, c, whh1)

    # --- fc head (dropout_fc is identity at inference) -----------------------
    z = jnp.maximum(
        jnp.dot(h.astype(jnp.bfloat16), fc1w_ref[...],
                preferred_element_type=jnp.float32) + fc1b_ref[...], 0.0)
    out = (jnp.dot(z.astype(jnp.bfloat16), fc2w_ref[...],
                   preferred_element_type=jnp.float32) + fc2b_ref[...])
    out_ref[...] = out                                   # (BP, NC)


# ------------------------------ wrapper --------------------------------------
KP_ORDER = ('c1w', 'c1b', 'c2w', 'c2b',
            'wih0f', 'whh0f', 'b0f',
            'wih0b', 'whh0b', 'b0b',
            'wih1f', 'wih1b', 'whh1', 'b1',
            'fc1w', 'fc1b', 'fc2w', 'fc2b')


@jax.jit
def cnnlstm_forward(x, kp):
    # Layout plumbing in the wrapper: pad batch 2 -> 8 (one sublane tile) and
    # present the input time-major (rows (t, b)).  Padded batch rows never mix
    # with real rows (all ops are batch-row independent) and are sliced off.
    x_p = jnp.zeros((BP, T, NF), x.dtype).at[:B].set(x)
    x_tm = jnp.transpose(x_p, (1, 0, 2)).reshape(T * BP, NF)
    weights = [kp[name] for name in KP_ORDER]
    vmem = pl.BlockSpec(memory_space=pltpu.MemorySpace.VMEM)
    out = pl.pallas_call(
        cnnlstm_kernel,
        out_shape=jax.ShapeDtypeStruct((BP, NC), jnp.float32),
        in_specs=[vmem] * (1 + len(weights)),
        out_specs=vmem,
        scratch_shapes=[pltpu.VMEM((L * BP, CCH), jnp.float32),   # pooled
                        pltpu.VMEM((L * BP, HP), jnp.float32),    # layer-0 fwd outs
                        pltpu.VMEM((L * BP, HP), jnp.float32)],   # layer-0 bwd outs
    )(x_tm, *weights)
    return out[:B]


# --------------------- deterministic parameter init --------------------------
def init_params(key, num_features=NF, num_classes=NC):
    ks = jax.random.split(key, 28)

    def nrm(k, shape, scale=0.1):
        return (scale * jax.random.normal(k, shape)).astype(jnp.float32)

    p = {}
    p['conv1_w'] = nrm(ks[0], (CCH, num_features, 3))
    p['conv1_b'] = nrm(ks[1], (CCH,))
    p['bn_g'] = 1.0 + nrm(ks[2], (CCH,))
    p['bn_b'] = nrm(ks[3], (CCH,))
    p['bn_m'] = nrm(ks[4], (CCH,))
    p['bn_v'] = 1.0 + jnp.abs(nrm(ks[5], (CCH,)))
    p['conv2_w'] = nrm(ks[6], (CCH, CCH, 3))
    p['conv2_b'] = nrm(ks[7], (CCH,))
    i = 8
    for name, insz in [('l0f', CCH), ('l0b', CCH),
                       ('l1f', 2 * HID), ('l1b', 2 * HID)]:
        p[f'wih_{name}'] = nrm(ks[i], (4 * HID, insz)); i += 1
        p[f'whh_{name}'] = nrm(ks[i], (4 * HID, HID)); i += 1
        p[f'bih_{name}'] = nrm(ks[i], (4 * HID,)); i += 1
        p[f'bhh_{name}'] = nrm(ks[i], (4 * HID,)); i += 1
    p['fc1_w'] = nrm(ks[i], (HID, HID)); i += 1
    p['fc1_b'] = nrm(ks[i], (HID,)); i += 1
    p['fc2_w'] = nrm(ks[i], (num_classes, HID)); i += 1
    p['fc2_b'] = nrm(ks[i], (num_classes,))
    return p


def to_kernel_params(p):
    """Repack PyTorch-layout params for the kernel (gate-fused, lane-padded, bf16)."""
    scale = p['bn_g'] / jnp.sqrt(p['bn_v'] + BN_EPS)        # (CCH,)

    def bf16(w):
        return w.astype(jnp.bfloat16)

    def pack_gate_cols(w):
        # (4*HID, insz) -> (insz, 4*HP): gates (i,f,g,o) fused along lanes,
        # each gate zero-padded from HID=100 to HP=128 columns.
        insz = w.shape[1]
        wp = jnp.zeros((4, HP, insz), w.dtype).at[:, :HID, :].set(
            w.reshape(4, HID, insz))
        return wp.reshape(4 * HP, insz).T                    # (insz, 4*HP)

    def pad_rows(w, rows):
        return jnp.zeros((rows, w.shape[1]), w.dtype).at[:w.shape[0], :].set(w)

    def pack_bias(name):
        b = (p[f'bih_{name}'] + p[f'bhh_{name}']).reshape(4, HID)
        return jnp.zeros((4, HP), b.dtype).at[:, :HID].set(b).reshape(1, 4 * HP)

    kp = {
        # conv1 with eval-mode BatchNorm folded into weight/bias
        'c1w': bf16(jnp.transpose(p['conv1_w'], (2, 1, 0)) * scale[None, None, :]),
        'c1b': ((p['conv1_b'] - p['bn_m']) * scale + p['bn_b']).reshape(1, CCH),
        'c2w': bf16(jnp.transpose(p['conv2_w'], (2, 1, 0))),
        'c2b': p['conv2_b'].reshape(1, CCH),
        'fc1w': bf16(pad_rows(p['fc1_w'].T, HP)),            # (HP, HID)
        'fc1b': p['fc1_b'].reshape(1, HID),
        'fc2w': bf16(p['fc2_w'].T),                          # (HID, NC)
        'fc2b': p['fc2_b'].reshape(1, NC),
    }
    for name, tag in (('l0f', '0f'), ('l0b', '0b')):
        kp[f'wih{tag}'] = bf16(pack_gate_cols(p[f'wih_{name}']))                # (CCH, GW)
        kp[f'whh{tag}'] = bf16(pad_rows(pack_gate_cols(p[f'whh_{name}']), HP))  # (HP, GW)
        kp[f'b{tag}'] = pack_bias(name)                                         # (1, GW)
    w1 = p['wih_l1b']                                        # (4*HID, 2*HID): [fwd | bwd]
    kp['wih1f'] = bf16(pad_rows(pack_gate_cols(w1[:, :HID]), HP))   # (HP, GW)
    kp['wih1b'] = bf16(pad_rows(pack_gate_cols(w1[:, HID:]), HP))   # (HP, GW)
    kp['whh1'] = bf16(pad_rows(pack_gate_cols(p['whh_l1b']), HP))   # (HP, GW)
    kp['b1'] = pack_bias('l1b')
    return kp


# ----------------- pure-JAX reference (mirrors PyTorch forward) ---------------
def reference_forward(x, p):
    batch = x.shape[0]
    xt = jnp.transpose(x, (0, 2, 1))                      # (B, F, T)

    def conv1d(inp, w, b):                                # inp (B,Cin,L), w (Cout,Cin,K)
        K = w.shape[2]
        Lout = inp.shape[2] - K + 1
        out = b[None, :, None]
        for k in range(K):
            out = out + jnp.einsum('bct,oc->bot', inp[:, :, k:k + Lout], w[:, :, k])
        return out

    y = conv1d(xt, p['conv1_w'], p['conv1_b'])
    y = ((y - p['bn_m'][None, :, None])
         * (p['bn_g'][None, :, None] / jnp.sqrt(p['bn_v'][None, :, None] + BN_EPS))
         + p['bn_b'][None, :, None])
    y = jnp.maximum(y, 0.0)
    y = jnp.maximum(conv1d(y, p['conv2_w'], p['conv2_b']), 0.0)
    Lp = y.shape[2] // 2
    y = y[:, :, :Lp * 2].reshape(batch, CCH, Lp, 2).max(axis=-1)
    seq = jnp.transpose(y, (0, 2, 1))                     # (B, L, 64)

    def run_dir(s, wih, whh, bih, bhh, reverse):
        Ln = s.shape[1]
        h = jnp.zeros((s.shape[0], HID), jnp.float32)
        c = jnp.zeros_like(h)
        outs = [None] * Ln
        order = range(Ln - 1, -1, -1) if reverse else range(Ln)
        for t in order:
            g = s[:, t] @ wih.T + h @ whh.T + bih + bhh
            i = jax.nn.sigmoid(g[:, 0:HID])
            f = jax.nn.sigmoid(g[:, HID:2 * HID])
            gg = jnp.tanh(g[:, 2 * HID:3 * HID])
            o = jax.nn.sigmoid(g[:, 3 * HID:4 * HID])
            c = f * c + i * gg
            h = o * jnp.tanh(c)
            outs[t] = h
        return jnp.stack(outs, axis=1), h

    of, _ = run_dir(seq, p['wih_l0f'], p['whh_l0f'], p['bih_l0f'], p['bhh_l0f'], False)
    ob, _ = run_dir(seq, p['wih_l0b'], p['whh_l0b'], p['bih_l0b'], p['bhh_l0b'], True)
    seq1 = jnp.concatenate([of, ob], axis=-1)             # (B, L, 200)
    _, hn_last = run_dir(seq1, p['wih_l1b'], p['whh_l1b'],
                         p['bih_l1b'], p['bhh_l1b'], True)  # hn[-1]
    z = jnp.maximum(hn_last @ p['fc1_w'].T + p['fc1_b'], 0.0)
    return z @ p['fc2_w'].T + p['fc2_b']


# --------------------------------- main ---------------------------------------
if __name__ == "__main__":
    key = jax.random.PRNGKey(0)
    kx, kparams = jax.random.split(key)
    x = jax.random.normal(kx, (B, T, NF), dtype=jnp.float32)

    params = init_params(kparams)
    kp = to_kernel_params(params)

    out = jax.block_until_ready(cnnlstm_forward(x, kp))
    assert out.shape == (B, NC), out.shape

    ref = reference_forward(x, params)
    err = float(jnp.max(jnp.abs(out - ref)))
    # bf16 matmul operands (f32 accumulation): slightly looser tolerance than pure f32
    assert err < 3e-2, f"kernel/reference mismatch, max abs err = {err}"

    print("KERNEL_OK")
</pallas_src>

<mosaic_0001>
module attributes {stable_mosaic.version = 11 : i64} {
  func.func @cnnlstm_kernel(%arg0: memref<128x8xf32, #tpu.memory_space<vmem>>, %arg1: memref<3x8x64xbf16, #tpu.memory_space<vmem>>, %arg2: memref<1x64xf32, #tpu.memory_space<vmem>>, %arg3: memref<3x64x64xbf16, #tpu.memory_space<vmem>>, %arg4: memref<1x64xf32, #tpu.memory_space<vmem>>, %arg5: memref<64x512xbf16, #tpu.memory_space<vmem>>, %arg6: memref<128x512xbf16, #tpu.memory_space<vmem>>, %arg7: memref<1x512xf32, #tpu.memory_space<vmem>>, %arg8: memref<64x512xbf16, #tpu.memory_space<vmem>>, %arg9: memref<128x512xbf16, #tpu.memory_space<vmem>>, %arg10: memref<1x512xf32, #tpu.memory_space<vmem>>, %arg11: memref<128x512xbf16, #tpu.memory_space<vmem>>, %arg12: memref<128x512xbf16, #tpu.memory_space<vmem>>, %arg13: memref<128x512xbf16, #tpu.memory_space<vmem>>, %arg14: memref<1x512xf32, #tpu.memory_space<vmem>>, %arg15: memref<128x100xbf16, #tpu.memory_space<vmem>>, %arg16: memref<1x100xf32, #tpu.memory_space<vmem>>, %arg17: memref<100x13xbf16, #tpu.memory_space<vmem>>, %arg18: memref<1x13xf32, #tpu.memory_space<vmem>>, %arg19: memref<8x13xf32, #tpu.memory_space<vmem>>, %arg20: memref<48x64xf32, #tpu.memory_space<vmem>>, %arg21: memref<48x128xf32, #tpu.memory_space<vmem>>, %arg22: memref<48x128xf32, #tpu.memory_space<vmem>>) attributes {dimension_semantics = [], scalar_prefetch = 0 : i64, scratch_operands = 3 : i64, tpu.core_type = #tpu.core_type<tc>} {
    %c0 = arith.constant 0 : index
    %c0_0 = arith.constant 0 : index
    %0 = vector.load %arg0[%c0, %c0_0] : memref<128x8xf32, #tpu.memory_space<vmem>>, vector<128x8xf32>
    %c0_1 = arith.constant 0 : index
    %c0_2 = arith.constant 0 : index
    %c0_3 = arith.constant 0 : index
    %1 = vector.load %arg1[%c0_1, %c0_2, %c0_3] : memref<3x8x64xbf16, #tpu.memory_space<vmem>>, vector<3x8x64xbf16>
    %c0_4 = arith.constant 0 : index
    %c0_5 = arith.constant 0 : index
    %2 = vector.load %arg2[%c0_4, %c0_5] : memref<1x64xf32, #tpu.memory_space<vmem>>, vector<1x64xf32>
    %3 = vector.extract_strided_slice %0 {offsets = [0, 0], sizes = [112, 8], strides = [1, 1]} : vector<128x8xf32> to vector<112x8xf32>
    %4 = arith.truncf %3 : vector<112x8xf32> to vector<112x8xbf16>
    %5 = vector.extract_strided_slice %1 {offsets = [0, 0, 0], sizes = [1, 8, 64], strides = [1, 1, 1]} : vector<3x8x64xbf16> to vector<1x8x64xbf16>
    %6 = vector.shape_cast %5 : vector<1x8x64xbf16> to vector<8x64xbf16>
    %cst = arith.constant dense<0.000000e+00> : vector<112x64xf32>
    %7 = tpu.matmul %4, %6, %cst {dimension_numbers = #tpu.dot_dimension_numbers<[1], [0], [0], [1], [0, 0, 1, 1], [], []>} : vector<112x8xbf16>, vector<8x64xbf16>, vector<112x64xf32> -> vector<112x64xf32>
    %8 = vector.broadcast %2 : vector<1x64xf32> to vector<112x64xf32>
    %9 = arith.addf %8, %7 : vector<112x64xf32>
    %10 = vector.extract_strided_slice %0 {offsets = [8, 0], sizes = [112, 8], strides = [1, 1]} : vector<128x8xf32> to vector<112x8xf32>
    %11 = arith.truncf %10 : vector<112x8xf32> to vector<112x8xbf16>
    %12 = vector.extract_strided_slice %1 {offsets = [1, 0, 0], sizes = [1, 8, 64], strides = [1, 1, 1]} : vector<3x8x64xbf16> to vector<1x8x64xbf16>
    %13 = vector.shape_cast %12 : vector<1x8x64xbf16> to vector<8x64xbf16>
    %cst_6 = arith.constant dense<0.000000e+00> : vector<112x64xf32>
    %14 = tpu.matmul %11, %13, %cst_6 {dimension_numbers = #tpu.dot_dimension_numbers<[1], [0], [0], [1], [0, 0, 1, 1], [], []>} : vector<112x8xbf16>, vector<8x64xbf16>, vector<112x64xf32> -> vector<112x64xf32>
    %15 = arith.addf %9, %14 : vector<112x64xf32>
    %16 = vector.extract_strided_slice %0 {offsets = [16, 0], sizes = [112, 8], strides = [1, 1]} : vector<128x8xf32> to vector<112x8xf32>
    %17 = arith.truncf %16 : vector<112x8xf32> to vector<112x8xbf16>
    %18 = vector.extract_strided_slice %1 {offsets = [2, 0, 0], sizes = [1, 8, 64], strides = [1, 1, 1]} : vector<3x8x64xbf16> to vector<1x8x64xbf16>
    %19 = vector.shape_cast %18 : vector<1x8x64xbf16> to vector<8x64xbf16>
    %cst_7 = arith.constant dense<0.000000e+00> : vector<112x64xf32>
    %20 = tpu.matmul %17, %19, %cst_7 {dimension_numbers = #tpu.dot_dimension_numbers<[1], [0], [0], [1], [0, 0, 1, 1], [], []>} : vector<112x8xbf16>, vector<8x64xbf16>, vector<112x64xf32> -> vector<112x64xf32>
    %21 = arith.addf %15, %20 : vector<112x64xf32>
    %cst_8 = arith.constant 0.000000e+00 : f32
    %22 = vector.broadcast %cst_8 : f32 to vector<112x64xf32>
    %23 = arith.maximumf %21, %22 : vector<112x64xf32>
    %c0_9 = arith.constant 0 : index
    %c0_10 = arith.constant 0 : index
    %c0_11 = arith.constant 0 : index
    %24 = vector.load %arg3[%c0_9, %c0_10, %c0_11] : memref<3x64x64xbf16, #tpu.memory_space<vmem>>, vector<3x64x64xbf16>
    %c0_12 = arith.constant 0 : index
    %c0_13 = arith.constant 0 : index
    %25 = vector.load %arg4[%c0_12, %c0_13] : memref<1x64xf32, #tpu.memory_space<vmem>>, vector<1x64xf32>
    %26 = vector.extract_strided_slice %23 {offsets = [0, 0], sizes = [96, 64], strides = [1, 1]} : vector<112x64xf32> to vector<96x64xf32>
    %27 = arith.truncf %26 : vector<96x64xf32> to vector<96x64xbf16>
    %28 = vector.extract_strided_slice %24 {offsets = [0, 0, 0], sizes = [1, 64, 64], strides = [1, 1, 1]} : vector<3x64x64xbf16> to vector<1x64x64xbf16>
    %29 = vector.shape_cast %28 : vector<1x64x64xbf16> to vector<64x64xbf16>
    %cst_14 = arith.constant dense<0.000000e+00> : vector<96x64xf32>
    %30 = tpu.matmul %27, %29, %cst_14 {dimension_numbers = #tpu.dot_dimension_numbers<[1], [0], [0], [1], [0, 0, 1, 1], [], []>} : vector<96x64xbf16>, vector<64x64xbf16>, vector<96x64xf32> -> vector<96x64xf32>
    %31 = vector.broadcast %25 : vector<1x64xf32> to vector<96x64xf32>
    %32 = arith.addf %31, %30 : vector<96x64xf32>
    %33 = vector.extract_strided_slice %23 {offsets = [8, 0], sizes = [96, 64], strides = [1, 1]} : vector<112x64xf32> to vector<96x64xf32>
    %34 = arith.truncf %33 : vector<96x64xf32> to vector<96x64xbf16>
    %35 = vector.extract_strided_slice %24 {offsets = [1, 0, 0], sizes = [1, 64, 64], strides = [1, 1, 1]} : vector<3x64x64xbf16> to vector<1x64x64xbf16>
    %36 = vector.shape_cast %35 : vector<1x64x64xbf16> to vector<64x64xbf16>
    %cst_15 = arith.constant dense<0.000000e+00> : vector<96x64xf32>
    %37 = tpu.matmul %34, %36, %cst_15 {dimension_numbers = #tpu.dot_dimension_numbers<[1], [0], [0], [1], [0, 0, 1, 1], [], []>} : vector<96x64xbf16>, vector<64x64xbf16>, vector<96x64xf32> -> vector<96x64xf32>
    %38 = arith.addf %32, %37 : vector<96x64xf32>
    %39 = vector.extract_strided_slice %23 {offsets = [16, 0], sizes = [96, 64], strides = [1, 1]} : vector<112x64xf32> to vector<96x64xf32>
    %40 = arith.truncf %39 : vector<96x64xf32> to vector<96x64xbf16>
    %41 = vector.extract_strided_slice %24 {offsets = [2, 0, 0], sizes = [1, 64, 64], strides = [1, 1, 1]} : vector<3x64x64xbf16> to vector<1x64x64xbf16>
    %42 = vector.shape_cast %41 : vector<1x64x64xbf16> to vector<64x64xbf16>
    %cst_16 = arith.constant dense<0.000000e+00> : vector<96x64xf32>
    %43 = tpu.matmul %40, %42, %cst_16 {dimension_numbers = #tpu.dot_dimension_numbers<[1], [0], [0], [1], [0, 0, 1, 1], [], []>} : vector<96x64xbf16>, vector<64x64xbf16>, vector<96x64xf32> -> vector<96x64xf32>
    %44 = arith.addf %38, %43 : vector<96x64xf32>
    %cst_17 = arith.constant 0.000000e+00 : f32
    %45 = vector.broadcast %cst_17 : f32 to vector<96x64xf32>
    %46 = arith.maximumf %44, %45 : vector<96x64xf32>
    %47 = vector.extract_strided_slice %46 {offsets = [0, 0], sizes = [8, 64], strides = [1, 1]} : vector<96x64xf32> to vector<8x64xf32>
    %48 = vector.extract_strided_slice %46 {offsets = [8, 0], sizes = [8, 64], strides = [1, 1]} : vector<96x64xf32> to vector<8x64xf32>
    %49 = arith.maximumf %47, %48 : vector<8x64xf32>
    %c0_18 = arith.constant 0 : index
    %c0_19 = arith.constant 0 : index
    %50 = vector.load %arg20[%c0_18, %c0_19] : memref<48x64xf32, #tpu.memory_space<vmem>>, vector<8x64xf32>
    tpu.vector_store %arg20[%c0_18, %c0_19], %49 {strides = array<i32>} : memref<48x64xf32, #tpu.memory_space<vmem>>, vector<8x64xf32>,
    %51 = vector.extract_strided_slice %46 {offsets = [16, 0], sizes = [8, 64], strides = [1, 1]} : vector<96x64xf32> to vector<8x64xf32>
    %52 = vector.extract_strided_slice %46 {offsets = [24, 0], sizes = [8, 64], strides = [1, 1]} : vector<96x64xf32> to vector<8x64xf32>
    %53 = arith.maximumf %51, %52 : vector<8x64xf32>
    %c8 = arith.constant 8 : index
    %c0_20 = arith.constant 0 : index
    %54 = vector.load %arg20[%c8, %c0_20] : memref<48x64xf32, #tpu.memory_space<vmem>>, vector<8x64xf32>
    tpu.vector_store %arg20[%c8, %c0_20], %53 {strides = array<i32>} : memref<48x64xf32, #tpu.memory_space<vmem>>, vector<8x64xf32>,
    %55 = vector.extract_strided_slice %46 {offsets = [32, 0], sizes = [8, 64], strides = [1, 1]} : vector<96x64xf32> to vector<8x64xf32>
    %56 = vector.extract_strided_slice %46 {offsets = [40, 0], sizes = [8, 64], strides = [1, 1]} : vector<96x64xf32> to vector<8x64xf32>
    %57 = arith.maximumf %55, %56 : vector<8x64xf32>
    %c16 = arith.constant 16 : index
    %c0_21 = arith.constant 0 : index
    %58 = vector.load %arg20[%c16, %c0_21] : memref<48x64xf32, #tpu.memory_space<vmem>>, vector<8x64xf32>
    tpu.vector_store %arg20[%c16, %c0_21], %57 {strides = array<i32>} : memref<48x64xf32, #tpu.memory_space<vmem>>, vector<8x64xf32>,
    %59 = vector.extract_strided_slice %46 {offsets = [48, 0], sizes = [8, 64], strides = [1, 1]} : vector<96x64xf32> to vector<8x64xf32>
    %60 = vector.extract_strided_slice %46 {offsets = [56, 0], sizes = [8, 64], strides = [1, 1]} : vector<96x64xf32> to vector<8x64xf32>
    %61 = arith.maximumf %59, %60 : vector<8x64xf32>
    %c24 = arith.constant 24 : index
    %c0_22 = arith.constant 0 : index
    %62 = vector.load %arg20[%c24, %c0_22] : memref<48x64xf32, #tpu.memory_space<vmem>>, vector<8x64xf32>
    tpu.vector_store %arg20[%c24, %c0_22], %61 {strides = array<i32>} : memref<48x64xf32, #tpu.memory_space<vmem>>, vector<8x64xf32>,
    %63 = vector.extract_strided_slice %46 {offsets = [64, 0], sizes = [8, 64], strides = [1, 1]} : vector<96x64xf32> to vector<8x64xf32>
    %64 = vector.extract_strided_slice %46 {offsets = [72, 0], sizes = [8, 64], strides = [1, 1]} : vector<96x64xf32> to vector<8x64xf32>
    %65 = arith.maximumf %63, %64 : vector<8x64xf32>
    %c32 = arith.constant 32 : index
    %c0_23 = arith.constant 0 : index
    %66 = vector.load %arg20[%c32, %c0_23] : memref<48x64xf32, #tpu.memory_space<vmem>>, vector<8x64xf32>
    tpu.vector_store %arg20[%c32, %c0_23], %65 {strides = array<i32>} : memref<48x64xf32, #tpu.memory_space<vmem>>, vector<8x64xf32>,
    %67 = vector.extract_strided_slice %46 {offsets = [80, 0], sizes = [8, 64], strides = [1, 1]} : vector<96x64xf32> to vector<8x64xf32>
    %68 = vector.extract_strided_slice %46 {offsets = [88, 0], sizes = [8, 64], strides = [1, 1]} : vector<96x64xf32> to vector<8x64xf32>
    %69 = arith.maximumf %67, %68 : vector<8x64xf32>
    %c40 = arith.constant 40 : index
    %c0_24 = arith.constant 0 : index
    %70 = vector.load %arg20[%c40, %c0_24] : memref<48x64xf32, #tpu.memory_space<vmem>>, vector<8x64xf32>
    tpu.vector_store %arg20[%c40, %c0_24], %69 {strides = array<i32>} : memref<48x64xf32, #tpu.memory_space<vmem>>, vector<8x64xf32>,
    %c0_25 = arith.constant 0 : index
    %c0_26 = arith.constant 0 : index
    %71 = vector.load %arg20[%c0_25, %c0_26] : memref<48x64xf32, #tpu.memory_space<vmem>>, vector<48x64xf32>
    %72 = arith.truncf %71 : vector<48x64xf32> to vector<48x64xbf16>
    %c0_27 = arith.constant 0 : index
    %c0_28 = arith.constant 0 : index
    %73 = vector.load %arg5[%c0_27, %c0_28] : memref<64x512xbf16, #tpu.memory_space<vmem>>, vector<64x512xbf16>
    %cst_29 = arith.constant dense<0.000000e+00> : vector<48x512xf32>
    %74 = tpu.matmul %72, %73, %cst_29 {dimension_numbers = #tpu.dot_dimension_numbers<[1], [0], [0], [1], [0, 0, 1, 1], [], []>} : vector<48x64xbf16>, vector<64x512xbf16>, vector<48x512xf32> -> vector<48x512xf32>
    %c0_30 = arith.constant 0 : index
    %c0_31 = arith.constant 0 : index
    %75 = vector.load %arg7[%c0_30, %c0_31] : memref<1x512xf32, #tpu.memory_space<vmem>>, vector<1x512xf32>
    %76 = vector.broadcast %75 : vector<1x512xf32> to vector<48x512xf32>
    %77 = arith.addf %74, %76 : vector<48x512xf32>
    %c0_32 = arith.constant 0 : index
    %c0_33 = arith.constant 0 : index
    %78 = vector.load %arg8[%c0_32, %c0_33] : memref<64x512xbf16, #tpu.memory_space<vmem>>, vector<64x512xbf16>
    %cst_34 = arith.constant dense<0.000000e+00> : vector<48x512xf32>
    %79 = tpu.matmul %72, %78, %cst_34 {dimension_numbers = #tpu.dot_dimension_numbers<[1], [0], [0], [1], [0, 0, 1, 1], [], []>} : vector<48x64xbf16>, vector<64x512xbf16>, vector<48x512xf32> -> vector<48x512xf32>
    %c0_35 = arith.constant 0 : index
    %c0_36 = arith.constant 0 : index
    %80 = vector.load %arg10[%c0_35, %c0_36] : memref<1x512xf32, #tpu.memory_space<vmem>>, vector<1x512xf32>
    %81 = vector.broadcast %80 : vector<1x512xf32> to vector<48x512xf32>
    %82 = arith.addf %79, %81 : vector<48x512xf32>
    %c0_37 = arith.constant 0 : index
    %c0_38 = arith.constant 0 : index
    %83 = vector.load %arg6[%c0_37, %c0_38] : memref<128x512xbf16, #tpu.memory_space<vmem>>, vector<128x512xbf16>
    %c0_39 = arith.constant 0 : index
    %c0_40 = arith.constant 0 : index
    %84 = vector.load %arg9[%c0_39, %c0_40] : memref<128x512xbf16, #tpu.memory_space<vmem>>, vector<128x512xbf16>
    %c0_41 = arith.constant 0 : index
    %c0_42 = arith.constant 0 : index
    %85 = vector.load %arg13[%c0_41, %c0_42] : memref<128x512xbf16, #tpu.memory_space<vmem>>, vector<128x512xbf16>
    %cst_43 = arith.constant 0.000000e+00 : f32
    %86 = vector.broadcast %cst_43 : f32 to vector<8x128xf32>
    %87 = vector.extract_strided_slice %77 {offsets = [0, 0], sizes = [8, 512], strides = [1, 1]} : vector<48x512xf32> to vector<8x512xf32>
    %88 = arith.truncf %86 : vector<8x128xf32> to vector<8x128xbf16>
    %cst_44 = arith.constant dense<0.000000e+00> : vector<8x512xf32>
    %89 = tpu.matmul %88, %83, %cst_44 {dimension_numbers = #tpu.dot_dimension_numbers<[1], [0], [0], [1], [0, 0, 1, 1], [], []>} : vector<8x128xbf16>, vector<128x512xbf16>, vector<8x512xf32> -> vector<8x512xf32>
    %90 = arith.addf %87, %89 : vector<8x512xf32>
    %91 = vector.extract_strided_slice %90 {offsets = [0, 0], sizes = [8, 128], strides = [1, 1]} : vector<8x512xf32> to vector<8x128xf32>
    %92 = arith.negf %91 : vector<8x128xf32>
    %93 = math.exp %92 : vector<8x128xf32>
    %cst_45 = arith.constant 1.000000e+00 : f32
    %94 = vector.broadcast %cst_45 : f32 to vector<8x128xf32>
    %95 = arith.addf %94, %93 : vector<8x128xf32>
    %96 = arith.divf %94, %95 : vector<8x128xf32>
    %97 = vector.extract_strided_slice %90 {offsets = [0, 128], sizes = [8, 128], strides = [1, 1]} : vector<8x512xf32> to vector<8x128xf32>
    %98 = arith.negf %97 : vector<8x128xf32>
    %99 = math.exp %98 : vector<8x128xf32>
    %cst_46 = arith.constant 1.000000e+00 : f32
    %100 = vector.broadcast %cst_46 : f32 to vector<8x128xf32>
    %101 = arith.addf %100, %99 : vector<8x128xf32>
    %102 = arith.divf %100, %101 : vector<8x128xf32>
    %103 = vector.extract_strided_slice %90 {offsets = [0, 256], sizes = [8, 128], strides = [1, 1]} : vector<8x512xf32> to vector<8x128xf32>
    %104 = math.tanh %103 : vector<8x128xf32>
    %105 = vector.extract_strided_slice %90 {offsets = [0, 384], sizes = [8, 128], strides = [1, 1]} : vector<8x512xf32> to vector<8x128xf32>
    %106 = arith.negf %105 : vector<8x128xf32>
    %107 = math.exp %106 : vector<8x128xf32>
    %cst_47 = arith.constant 1.000000e+00 : f32
    %108 = vector.broadcast %cst_47 : f32 to vector<8x128xf32>
    %109 = arith.addf %108, %107 : vector<8x128xf32>
    %110 = arith.divf %108, %109 : vector<8x128xf32>
    %111 = arith.mulf %102, %86 : vector<8x128xf32>
    %112 = arith.mulf %96, %104 : vector<8x128xf32>
    %113 = arith.addf %111, %112 : vector<8x128xf32>
    %114 = math.tanh %113 : vector<8x128xf32>
    %115 = arith.mulf %110, %114 : vector<8x128xf32>
    %c0_48 = arith.constant 0 : index
    %c0_49 = arith.constant 0 : index
    %116 = vector.load %arg21[%c0_48, %c0_49] : memref<48x128xf32, #tpu.memory_space<vmem>>, vector<8x128xf32>
    tpu.vector_store %arg21[%c0_48, %c0_49], %115 {strides = array<i32>} : memref<48x128xf32, #tpu.memory_space<vmem>>, vector<8x128xf32>,
    %117 = vector.extract_strided_slice %77 {offsets = [8, 0], sizes = [8, 512], strides = [1, 1]} : vector<48x512xf32> to vector<8x512xf32>
    %118 = arith.truncf %115 : vector<8x128xf32> to vector<8x128xbf16>
    %cst_50 = arith.constant dense<0.000000e+00> : vector<8x512xf32>
    %119 = tpu.matmul %118, %83, %cst_50 {dimension_numbers = #tpu.dot_dimension_numbers<[1], [0], [0], [1], [0, 0, 1, 1], [], []>} : vector<8x128xbf16>, vector<128x512xbf16>, vector<8x512xf32> -> vector<8x512xf32>
    %120 = arith.addf %117, %119 : vector<8x512xf32>
    %121 = vector.extract_strided_slice %120 {offsets = [0, 0], sizes = [8, 128], strides = [1, 1]} : vector<8x512xf32> to vector<8x128xf32>
    %122 = arith.negf %121 : vector<8x128xf32>
    %123 = math.exp %122 : vector<8x128xf32>
    %cst_51 = arith.constant 1.000000e+00 : f32
    %124 = vector.broadcast %cst_51 : f32 to vector<8x128xf32>
    %125 = arith.addf %124, %123 : vector<8x128xf32>
    %126 = arith.divf %124, %125 : vector<8x128xf32>
    %127 = vector.extract_strided_slice %120 {offsets = [0, 128], sizes = [8, 128], strides = [1, 1]} : vector<8x512xf32> to vector<8x128xf32>
    %128 = arith.negf %127 : vector<8x128xf32>
    %129 = math.exp %128 : vector<8x128xf32>
    %cst_52 = arith.constant 1.000000e+00 : f32
    %130 = vector.broadcast %cst_52 : f32 to vector<8x128xf32>
    %131 = arith.addf %130, %129 : vector<8x128xf32>
    %132 = arith.divf %130, %131 : vector<8x128xf32>
    %133 = vector.extract_strided_slice %120 {offsets = [0, 256], sizes = [8, 128], strides = [1, 1]} : vector<8x512xf32> to vector<8x128xf32>
    %134 = math.tanh %133 : vector<8x128xf32>
    %135 = vector.extract_strided_slice %120 {offsets = [0, 384], sizes = [8, 128], strides = [1, 1]} : vector<8x512xf32> to vector<8x128xf32>
    %136 = arith.negf %135 : vector<8x128xf32>
    %137 = math.exp %136 : vector<8x128xf32>
    %cst_53 = arith.constant 1.000000e+00 : f32
    %138 = vector.broadcast %cst_53 : f32 to vector<8x128xf32>
    %139 = arith.addf %138, %137 : vector<8x128xf32>
    %140 = arith.divf %138, %139 : vector<8x128xf32>
    %141 = arith.mulf %132, %113 : vector<8x128xf32>
    %142 = arith.mulf %126, %134 : vector<8x128xf32>
    %143 = arith.addf %141, %142 : vector<8x128xf32>
    %144 = math.tanh %143 : vector<8x128xf32>
    %145 = arith.mulf %140, %144 : vector<8x128xf32>
    %c8_54 = arith.constant 8 : index
    %c0_55 = arith.constant 0 : index
    %146 = vector.load %arg21[%c8_54, %c0_55] : memref<48x128xf32, #tpu.memory_space<vmem>>, vector<8x128xf32>
    tpu.vector_store %arg21[%c8_54, %c0_55], %145 {strides = array<i32>} : memref<48x128xf32, #tpu.memory_space<vmem>>, vector<8x128xf32>,
    %147 = vector.extract_strided_slice %77 {offsets = [16, 0], sizes = [8, 512], strides = [1, 1]} : vector<48x512xf32> to vector<8x512xf32>
    %148 = arith.truncf %145 : vector<8x128xf32> to vector<8x128xbf16>
    %cst_56 = arith.constant dense<0.000000e+00> : vector<8x512xf32>
    %149 = tpu.matmul %148, %83, %cst_56 {dimension_numbers = #tpu.dot_dimension_numbers<[1], [0], [0], [1], [0, 0, 1, 1], [], []>} : vector<8x128xbf16>, vector<128x512xbf16>, vector<8x512xf32> -> vector<8x512xf32>
    %150 = arith.addf %147, %149 : vector<8x512xf32>
    %151 = vector.extract_strided_slice %150 {offsets = [0, 0], sizes = [8, 128], strides = [1, 1]} : vector<8x512xf32> to vector<8x128xf32>
    %152 = arith.negf %151 : vector<8x128xf32>
    %153 = math.exp %152 : vector<8x128xf32>
    %cst_57 = arith.constant 1.000000e+00 : f32
    %154 = vector.broadcast %cst_57 : f32 to vector<8x128xf32>
    %155 = arith.addf %154, %153 : vector<8x128xf32>
    %156 = arith.divf %154, %155 : vector<8x128xf32>
    %157 = vector.extract_strided_slice %150 {offsets = [0, 128], sizes = [8, 128], strides = [1, 1]} : vector<8x512xf32> to vector<8x128xf32>
    %158 = arith.negf %157 : vector<8x128xf32>
    %159 = math.exp %158 : vector<8x128xf32>
    %cst_58 = arith.constant 1.000000e+00 : f32
    %160 = vector.broadcast %cst_58 : f32 to vector<8x128xf32>
    %161 = arith.addf %160, %159 : vector<8x128xf32>
    %162 = arith.divf %160, %161 : vector<8x128xf32>
    %163 = vector.extract_strided_slice %150 {offsets = [0, 256], sizes = [8, 128], strides = [1, 1]} : vector<8x512xf32> to vector<8x128xf32>
    %164 = math.tanh %163 : vector<8x128xf32>
    %165 = vector.extract_strided_slice %150 {offsets = [0, 384], sizes = [8, 128], strides = [1, 1]} : vector<8x512xf32> to vector<8x128xf32>
    %166 = arith.negf %165 : vector<8x128xf32>
    %167 = math.exp %166 : vector<8x128xf32>
    %cst_59 = arith.constant 1.000000e+00 : f32
    %168 = vector.broadcast %cst_59 : f32 to vector<8x128xf32>
    %169 = arith.addf %168, %167 : vector<8x128xf32>
    %170 = arith.divf %168, %169 : vector<8x128xf32>
    %171 = arith.mulf %162, %143 : vector<8x128xf32>
    %172 = arith.mulf %156, %164 : vector<8x128xf32>
    %173 = arith.addf %171, %172 : vector<8x128xf32>
    %174 = math.tanh %173 : vector<8x128xf32>
    %175 = arith.mulf %170, %174 : vector<8x128xf32>
    %c16_60 = arith.constant 16 : index
    %c0_61 = arith.constant 0 : index
    %176 = vector.load %arg21[%c16_60, %c0_61] : memref<48x128xf32, #tpu.memory_space<vmem>>, vector<8x128xf32>
    tpu.vector_store %arg21[%c16_60, %c0_61], %175 {strides = array<i32>} : memref<48x128xf32, #tpu.memory_space<vmem>>, vector<8x128xf32>,
    %177 = vector.extract_strided_slice %77 {offsets = [24, 0], sizes = [8, 512], strides = [1, 1]} : vector<48x512xf32> to vector<8x512xf32>
    %178 = arith.truncf %175 : vector<8x128xf32> to vector<8x128xbf16>
    %cst_62 = arith.constant dense<0.000000e+00> : vector<8x512xf32>
    %179 = tpu.matmul %178, %83, %cst_62 {dimension_numbers = #tpu.dot_dimension_numbers<[1], [0], [0], [1], [0, 0, 1, 1], [], []>} : vector<8x128xbf16>, vector<128x512xbf16>, vector<8x512xf32> -> vector<8x512xf32>
    %180 = arith.addf %177, %179 : vector<8x512xf32>
    %181 = vector.extract_strided_slice %180 {offsets = [0, 0], sizes = [8, 128], strides = [1, 1]} : vector<8x512xf32> to vector<8x128xf32>
    %182 = arith.negf %181 : vector<8x128xf32>
    %183 = math.exp %182 : vector<8x128xf32>
    %cst_63 = arith.constant 1.000000e+00 : f32
    %184 = vector.broadcast %cst_63 : f32 to vector<8x128xf32>
    %185 = arith.addf %184, %183 : vector<8x128xf32>
    %186 = arith.divf %184, %185 : vector<8x128xf32>
    %187 = vector.extract_strided_slice %180 {offsets = [0, 128], sizes = [8, 128], strides = [1, 1]} : vector<8x512xf32> to vector<8x128xf32>
    %188 = arith.negf %187 : vector<8x128xf32>
    %189 = math.exp %188 : vector<8x128xf32>
    %cst_64 = arith.constant 1.000000e+00 : f32
    %190 = vector.broadcast %cst_64 : f32 to vector<8x128xf32>
    %191 = arith.addf %190, %189 : vector<8x128xf32>
    %192 = arith.divf %190, %191 : vector<8x128xf32>
    %193 = vector.extract_strided_slice %180 {offsets = [0, 256], sizes = [8, 128], strides = [1, 1]} : vector<8x512xf32> to vector<8x128xf32>
    %194 = math.tanh %193 : vector<8x128xf32>
    %195 = vector.extract_strided_slice %180 {offsets = [0, 384], sizes = [8, 128], strides = [1, 1]} : vector<8x512xf32> to vector<8x128xf32>
    %196 = arith.negf %195 : vector<8x128xf32>
    %197 = math.exp %196 : vector<8x128xf32>
    %cst_65 = arith.constant 1.000000e+00 : f32
    %198 = vector.broadcast %cst_65 : f32 to vector<8x128xf32>
    %199 = arith.addf %198, %197 : vector<8x128xf32>
    %200 = arith.divf %198, %199 : vector<8x128xf32>
    %201 = arith.mulf %192, %173 : vector<8x128xf32>
    %202 = arith.mulf %186, %194 : vector<8x128xf32>
    %203 = arith.addf %201, %202 : vector<8x128xf32>
    %204 = math.tanh %203 : vector<8x128xf32>
    %205 = arith.mulf %200, %204 : vector<8x128xf32>
    %c24_66 = arith.constant 24 : index
    %c0_67 = arith.constant 0 : index
    %206 = vector.load %arg21[%c24_66, %c0_67] : memref<48x128xf32, #tpu.memory_space<vmem>>, vector<8x128xf32>
    tpu.vector_store %arg21[%c24_66, %c0_67], %205 {strides = array<i32>} : memref<48x128xf32, #tpu.memory_space<vmem>>, vector<8x128xf32>,
    %207 = vector.extract_strided_slice %77 {offsets = [32, 0], sizes = [8, 512], strides = [1, 1]} : vector<48x512xf32> to vector<8x512xf32>
    %208 = arith.truncf %205 : vector<8x128xf32> to vector<8x128xbf16>
    %cst_68 = arith.constant dense<0.000000e+00> : vector<8x512xf32>
    %209 = tpu.matmul %208, %83, %cst_68 {dimension_numbers = #tpu.dot_dimension_numbers<[1], [0], [0], [1], [0, 0, 1, 1], [], []>} : vector<8x128xbf16>, vector<128x512xbf16>, vector<8x512xf32> -> vector<8x512xf32>
    %210 = arith.addf %207, %209 : vector<8x512xf32>
    %211 = vector.extract_strided_slice %210 {offsets = [0, 0], sizes = [8, 128], strides = [1, 1]} : vector<8x512xf32> to vector<8x128xf32>
    %212 = arith.negf %211 : vector<8x128xf32>
    %213 = math.exp %212 : vector<8x128xf32>
    %cst_69 = arith.constant 1.000000e+00 : f32
    %214 = vector.broadcast %cst_69 : f32 to vector<8x128xf32>
    %215 = arith.addf %214, %213 : vector<8x128xf32>
    %216 = arith.divf %214, %215 : vector<8x128xf32>
    %217 = vector.extract_strided_slice %210 {offsets = [0, 128], sizes = [8, 128], strides = [1, 1]} : vector<8x512xf32> to vector<8x128xf32>
    %218 = arith.negf %217 : vector<8x128xf32>
    %219 = math.exp %218 : vector<8x128xf32>
    %cst_70 = arith.constant 1.000000e+00 : f32
    %220 = vector.broadcast %cst_70 : f32 to vector<8x128xf32>
    %221 = arith.addf %220, %219 : vector<8x128xf32>
    %222 = arith.divf %220, %221 : vector<8x128xf32>
    %223 = vector.extract_strided_slice %210 {offsets = [0, 256], sizes = [8, 128], strides = [1, 1]} : vector<8x512xf32> to vector<8x128xf32>
    %224 = math.tanh %223 : vector<8x128xf32>
    %225 = vector.extract_strided_slice %210 {offsets = [0, 384], sizes = [8, 128], strides = [1, 1]} : vector<8x512xf32> to vector<8x128xf32>
    %226 = arith.negf %225 : vector<8x128xf32>
    %227 = math.exp %226 : vector<8x128xf32>
    %cst_71 = arith.constant 1.000000e+00 : f32
    %228 = vector.broadcast %cst_71 : f32 to vector<8x128xf32>
    %229 = arith.addf %228, %227 : vector<8x128xf32>
    %230 = arith.divf %228, %229 : vector<8x128xf32>
    %231 = arith.mulf %222, %203 : vector<8x128xf32>
    %232 = arith.mulf %216, %224 : vector<8x128xf32>
    %233 = arith.addf %231, %232 : vector<8x128xf32>
    %234 = math.tanh %233 : vector<8x128xf32>
    %235 = arith.mulf %230, %234 : vector<8x128xf32>
    %c32_72 = arith.constant 32 : index
    %c0_73 = arith.constant 0 : index
    %236 = vector.load %arg21[%c32_72, %c0_73] : memref<48x128xf32, #tpu.memory_space<vmem>>, vector<8x128xf32>
    tpu.vector_store %arg21[%c32_72, %c0_73], %235 {strides = array<i32>} : memref<48x128xf32, #tpu.memory_space<vmem>>, vector<8x128xf32>,
    %237 = vector.extract_strided_slice %77 {offsets = [40, 0], sizes = [8, 512], strides = [1, 1]} : vector<48x512xf32> to vector<8x512xf32>
    %238 = arith.truncf %235 : vector<8x128xf32> to vector<8x128xbf16>
    %cst_74 = arith.constant dense<0.000000e+00> : vector<8x512xf32>
    %239 = tpu.matmul %238, %83, %cst_74 {dimension_numbers = #tpu.dot_dimension_numbers<[1], [0], [0], [1], [0, 0, 1, 1], [], []>} : vector<8x128xbf16>, vector<128x512xbf16>, vector<8x512xf32> -> vector<8x512xf32>
    %240 = arith.addf %237, %239 : vector<8x512xf32>
    %241 = vector.extract_strided_slice %240 {offsets = [0, 0], sizes = [8, 128], strides = [1, 1]} : vector<8x512xf32> to vector<8x128xf32>
    %242 = arith.negf %241 : vector<8x128xf32>
    %243 = math.exp %242 : vector<8x128xf32>
    %cst_75 = arith.constant 1.000000e+00 : f32
    %244 = vector.broadcast %cst_75 : f32 to vector<8x128xf32>
    %245 = arith.addf %244, %243 : vector<8x128xf32>
    %246 = arith.divf %244, %245 : vector<8x128xf32>
    %247 = vector.extract_strided_slice %240 {offsets = [0, 128], sizes = [8, 128], strides = [1, 1]} : vector<8x512xf32> to vector<8x128xf32>
    %248 = arith.negf %247 : vector<8x128xf32>
    %249 = math.exp %248 : vector<8x128xf32>
    %cst_76 = arith.constant 1.000000e+00 : f32
    %250 = vector.broadcast %cst_76 : f32 to vector<8x128xf32>
    %251 = arith.addf %250, %249 : vector<8x128xf32>
    %252 = arith.divf %250, %251 : vector<8x128xf32>
    %253 = vector.extract_strided_slice %240 {offsets = [0, 256], sizes = [8, 128], strides = [1, 1]} : vector<8x512xf32> to vector<8x128xf32>
    %254 = math.tanh %253 : vector<8x128xf32>
    %255 = vector.extract_strided_slice %240 {offsets = [0, 384], sizes = [8, 128], strides = [1, 1]} : vector<8x512xf32> to vector<8x128xf32>
    %256 = arith.negf %255 : vector<8x128xf32>
    %257 = math.exp %256 : vector<8x128xf32>
    %cst_77 = arith.constant 1.000000e+00 : f32
    %258 = vector.broadcast %cst_77 : f32 to vector<8x128xf32>
    %259 = arith.addf %258, %257 : vector<8x128xf32>
    %260 = arith.divf %258, %259 : vector<8x128xf32>
    %261 = arith.mulf %252, %233 : vector<8x128xf32>
    %262 = arith.mulf %246, %254 : vector<8x128xf32>
    %263 = arith.addf %261, %262 : vector<8x128xf32>
    %264 = math.tanh %263 : vector<8x128xf32>
    %265 = arith.mulf %260, %264 : vector<8x128xf32>
    %c40_78 = arith.constant 40 : index
    %c0_79 = arith.constant 0 : index
    %266 = vector.load %arg21[%c40_78, %c0_79] : memref<48x128xf32, #tpu.memory_space<vmem>>, vector<8x128xf32>
    tpu.vector_store %arg21[%c40_78, %c0_79], %265 {strides = array<i32>} : memref<48x128xf32, #tpu.memory_space<vmem>>, vector<8x128xf32>,
    %267 = vector.extract_strided_slice %82 {offsets = [40, 0], sizes = [8, 512], strides = [1, 1]} : vector<48x512xf32> to vector<8x512xf32>
    %268 = arith.truncf %86 : vector<8x128xf32> to vector<8x128xbf16>
    %cst_80 = arith.constant dense<0.000000e+00> : vector<8x512xf32>
    %269 = tpu.matmul %268, %84, %cst_80 {dimension_numbers = #tpu.dot_dimension_numbers<[1], [0], [0], [1], [0, 0, 1, 1], [], []>} : vector<8x128xbf16>, vector<128x512xbf16>, vector<8x512xf32> -> vector<8x512xf32>
    %270 = arith.addf %267, %269 : vector<8x512xf32>
    %271 = vector.extract_strided_slice %270 {offsets = [0, 0], sizes = [8, 128], strides = [1, 1]} : vector<8x512xf32> to vector<8x128xf32>
    %272 = arith.negf %271 : vector<8x128xf32>
    %273 = math.exp %272 : vector<8x128xf32>
    %cst_81 = arith.constant 1.000000e+00 : f32
    %274 = vector.broadcast %cst_81 : f32 to vector<8x128xf32>
    %275 = arith.addf %274, %273 : vector<8x128xf32>
    %276 = arith.divf %274, %275 : vector<8x128xf32>
    %277 = vector.extract_strided_slice %270 {offsets = [0, 128], sizes = [8, 128], strides = [1, 1]} : vector<8x512xf32> to vector<8x128xf32>
    %278 = arith.negf %277 : vector<8x128xf32>
    %279 = math.exp %278 : vector<8x128xf32>
    %cst_82 = arith.constant 1.000000e+00 : f32
    %280 = vector.broadcast %cst_82 : f32 to vector<8x128xf32>
    %281 = arith.addf %280, %279 : vector<8x128xf32>
    %282 = arith.divf %280, %281 : vector<8x128xf32>
    %283 = vector.extract_strided_slice %270 {offsets = [0, 256], sizes = [8, 128], strides = [1, 1]} : vector<8x512xf32> to vector<8x128xf32>
    %284 = math.tanh %283 : vector<8x128xf32>
    %285 = vector.extract_strided_slice %270 {offsets = [0, 384], sizes = [8, 128], strides = [1, 1]} : vector<8x512xf32> to vector<8x128xf32>
    %286 = arith.negf %285 : vector<8x128xf32>
    %287 = math.exp %286 : vector<8x128xf32>
    %cst_83 = arith.constant 1.000000e+00 : f32
    %288 = vector.broadcast %cst_83 : f32 to vector<8x128xf32>
    %289 = arith.addf %288, %287 : vector<8x128xf32>
    %290 = arith.divf %288, %289 : vector<8x128xf32>
    %291 = arith.mulf %282, %86 : vector<8x128xf32>
    %292 = arith.mulf %276, %284 : vector<8x128xf32>
    %293 = arith.addf %291, %292 : vector<8x128xf32>
    %294 = math.tanh %293 : vector<8x128xf32>
    %295 = arith.mulf %290, %294 : vector<8x128xf32>
    %c40_84 = arith.constant 40 : index
    %c0_85 = arith.constant 0 : index
    %296 = vector.load %arg22[%c40_84, %c0_85] : memref<48x128xf32, #tpu.memory_space<vmem>>, vector<8x128xf32>
    tpu.vector_store %arg22[%c40_84, %c0_85], %295 {strides = array<i32>} : memref<48x128xf32, #tpu.memory_space<vmem>>, vector<8x128xf32>,
    %297 = vector.extract_strided_slice %82 {offsets = [32, 0], sizes = [8, 512], strides = [1, 1]} : vector<48x512xf32> to vector<8x512xf32>
    %298 = arith.truncf %295 : vector<8x128xf32> to vector<8x128xbf16>
    %cst_86 = arith.constant dense<0.000000e+00> : vector<8x512xf32>
    %299 = tpu.matmul %298, %84, %cst_86 {dimension_numbers = #tpu.dot_dimension_numbers<[1], [0], [0], [1], [0, 0, 1, 1], [], []>} : vector<8x128xbf16>, vector<128x512xbf16>, vector<8x512xf32> -> vector<8x512xf32>
    %300 = arith.addf %297, %299 : vector<8x512xf32>
    %301 = vector.extract_strided_slice %300 {offsets = [0, 0], sizes = [8, 128], strides = [1, 1]} : vector<8x512xf32> to vector<8x128xf32>
    %302 = arith.negf %301 : vector<8x128xf32>
    %303 = math.exp %302 : vector<8x128xf32>
    %cst_87 = arith.constant 1.000000e+00 : f32
    %304 = vector.broadcast %cst_87 : f32 to vector<8x128xf32>
    %305 = arith.addf %304, %303 : vector<8x128xf32>
    %306 = arith.divf %304, %305 : vector<8x128xf32>
    %307 = vector.extract_strided_slice %300 {offsets = [0, 128], sizes = [8, 128], strides = [1, 1]} : vector<8x512xf32> to vector<8x128xf32>
    %308 = arith.negf %307 : vector<8x128xf32>
    %309 = math.exp %308 : vector<8x128xf32>
    %cst_88 = arith.constant 1.000000e+00 : f32
    %310 = vector.broadcast %cst_88 : f32 to vector<8x128xf32>
    %311 = arith.addf %310, %309 : vector<8x128xf32>
    %312 = arith.divf %310, %311 : vector<8x128xf32>
    %313 = vector.extract_strided_slice %300 {offsets = [0, 256], sizes = [8, 128], strides = [1, 1]} : vector<8x512xf32> to vector<8x128xf32>
    %314 = math.tanh %313 : vector<8x128xf32>
    %315 = vector.extract_strided_slice %300 {offsets = [0, 384], sizes = [8, 128], strides = [1, 1]} : vector<8x512xf32> to vector<8x128xf32>
    %316 = arith.negf %315 : vector<8x128xf32>
    %317 = math.exp %316 : vector<8x128xf32>
    %cst_89 = arith.constant 1.000000e+00 : f32
    %318 = vector.broadcast %cst_89 : f32 to vector<8x128xf32>
    %319 = arith.addf %318, %317 : vector<8x128xf32>
    %320 = arith.divf %318, %319 : vector<8x128xf32>
    %321 = arith.mulf %312, %293 : vector<8x128xf32>
    %322 = arith.mulf %306, %314 : vector<8x128xf32>
    %323 = arith.addf %321, %322 : vector<8x128xf32>
    %324 = math.tanh %323 : vector<8x128xf32>
    %325 = arith.mulf %320, %324 : vector<8x128xf32>
    %c32_90 = arith.constant 32 : index
    %c0_91 = arith.constant 0 : index
    %326 = vector.load %arg22[%c32_90, %c0_91] : memref<48x128xf32, #tpu.memory_space<vmem>>, vector<8x128xf32>
    tpu.vector_store %arg22[%c32_90, %c0_91], %325 {strides = array<i32>} : memref<48x128xf32, #tpu.memory_space<vmem>>, vector<8x128xf32>,
    %327 = vector.extract_strided_slice %82 {offsets = [24, 0], sizes = [8, 512], strides = [1, 1]} : vector<48x512xf32> to vector<8x512xf32>
    %328 = arith.truncf %325 : vector<8x128xf32> to vector<8x128xbf16>
    %cst_92 = arith.constant dense<0.000000e+00> : vector<8x512xf32>
    %329 = tpu.matmul %328, %84, %cst_92 {dimension_numbers = #tpu.dot_dimension_numbers<[1], [0], [0], [1], [0, 0, 1, 1], [], []>} : vector<8x128xbf16>, vector<128x512xbf16>, vector<8x512xf32> -> vector<8x512xf32>
    %330 = arith.addf %327, %329 : vector<8x512xf32>
    %331 = vector.extract_strided_slice %330 {offsets = [0, 0], sizes = [8, 128], strides = [1, 1]} : vector<8x512xf32> to vector<8x128xf32>
    %332 = arith.negf %331 : vector<8x128xf32>
    %333 = math.exp %332 : vector<8x128xf32>
    %cst_93 = arith.constant 1.000000e+00 : f32
    %334 = vector.broadcast %cst_93 : f32 to vector<8x128xf32>
    %335 = arith.addf %334, %333 : vector<8x128xf32>
    %336 = arith.divf %334, %335 : vector<8x128xf32>
    %337 = vector.extract_strided_slice %330 {offsets = [0, 128], sizes = [8, 128], strides = [1, 1]} : vector<8x512xf32> to vector<8x128xf32>
    %338 = arith.negf %337 : vector<8x128xf32>
    %339 = math.exp %338 : vector<8x128xf32>
    %cst_94 = arith.constant 1.000000e+00 : f32
    %340 = vector.broadcast %cst_94 : f32 to vector<8x128xf32>
    %341 = arith.addf %340, %339 : vector<8x128xf32>
    %342 = arith.divf %340, %341 : vector<8x128xf32>
    %343 = vector.extract_strided_slice %330 {offsets = [0, 256], sizes = [8, 128], strides = [1, 1]} : vector<8x512xf32> to vector<8x128xf32>
    %344 = math.tanh %343 : vector<8x128xf32>
    %345 = vector.extract_strided_slice %330 {offsets = [0, 384], sizes = [8, 128], strides = [1, 1]} : vector<8x512xf32> to vector<8x128xf32>
    %346 = arith.negf %345 : vector<8x128xf32>
    %347 = math.exp %346 : vector<8x128xf32>
    %cst_95 = arith.constant 1.000000e+00 : f32
    %348 = vector.broadcast %cst_95 : f32 to vector<8x128xf32>
    %349 = arith.addf %348, %347 : vector<8x128xf32>
    %350 = arith.divf %348, %349 : vector<8x128xf32>
    %351 = arith.mulf %342, %323 : vector<8x128xf32>
    %352 = arith.mulf %336, %344 : vector<8x128xf32>
    %353 = arith.addf %351, %352 : vector<8x128xf32>
    %354 = math.tanh %353 : vector<8x128xf32>
    %355 = arith.mulf %350, %354 : vector<8x128xf32>
    %c24_96 = arith.constant 24 : index
    %c0_97 = arith.constant 0 : index
    %356 = vector.load %arg22[%c24_96, %c0_97] : memref<48x128xf32, #tpu.memory_space<vmem>>, vector<8x128xf32>
    tpu.vector_store %arg22[%c24_96, %c0_97], %355 {strides = array<i32>} : memref<48x128xf32, #tpu.memory_space<vmem>>, vector<8x128xf32>,
    %357 = vector.extract_strided_slice %82 {offsets = [16, 0], sizes = [8, 512], strides = [1, 1]} : vector<48x512xf32> to vector<8x512xf32>
    %358 = arith.truncf %355 : vector<8x128xf32> to vector<8x128xbf16>
    %cst_98 = arith.constant dense<0.000000e+00> : vector<8x512xf32>
    %359 = tpu.matmul %358, %84, %cst_98 {dimension_numbers = #tpu.dot_dimension_numbers<[1], [0], [0], [1], [0, 0, 1, 1], [], []>} : vector<8x128xbf16>, vector<128x512xbf16>, vector<8x512xf32> -> vector<8x512xf32>
    %360 = arith.addf %357, %359 : vector<8x512xf32>
    %361 = vector.extract_strided_slice %360 {offsets = [0, 0], sizes = [8, 128], strides = [1, 1]} : vector<8x512xf32> to vector<8x128xf32>
    %362 = arith.negf %361 : vector<8x128xf32>
    %363 = math.exp %362 : vector<8x128xf32>
    %cst_99 = arith.constant 1.000000e+00 : f32
    %364 = vector.broadcast %cst_99 : f32 to vector<8x128xf32>
    %365 = arith.addf %364, %363 : vector<8x128xf32>
    %366 = arith.divf %364, %365 : vector<8x128xf32>
    %367 = vector.extract_strided_slice %360 {offsets = [0, 128], sizes = [8, 128], strides = [1, 1]} : vector<8x512xf32> to vector<8x128xf32>
    %368 = arith.negf %367 : vector<8x128xf32>
    %369 = math.exp %368 : vector<8x128xf32>
    %cst_100 = arith.constant 1.000000e+00 : f32
    %370 = vector.broadcast %cst_100 : f32 to vector<8x128xf32>
    %371 = arith.addf %370, %369 : vector<8x128xf32>
    %372 = arith.divf %370, %371 : vector<8x128xf32>
    %373 = vector.extract_strided_slice %360 {offsets = [0, 256], sizes = [8, 128], strides = [1, 1]} : vector<8x512xf32> to vector<8x128xf32>
    %374 = math.tanh %373 : vector<8x128xf32>
    %375 = vector.extract_strided_slice %360 {offsets = [0, 384], sizes = [8, 128], strides = [1, 1]} : vector<8x512xf32> to vector<8x128xf32>
    %376 = arith.negf %375 : vector<8x128xf32>
    %377 = math.exp %376 : vector<8x128xf32>
    %cst_101 = arith.constant 1.000000e+00 : f32
    %378 = vector.broadcast %cst_101 : f32 to vector<8x128xf32>
    %379 = arith.addf %378, %377 : vector<8x128xf32>
    %380 = arith.divf %378, %379 : vector<8x128xf32>
    %381 = arith.mulf %372, %353 : vector<8x128xf32>
    %382 = arith.mulf %366, %374 : vector<8x128xf32>
    %383 = arith.addf %381, %382 : vector<8x128xf32>
    %384 = math.tanh %383 : vector<8x128xf32>
    %385 = arith.mulf %380, %384 : vector<8x128xf32>
    %c16_102 = arith.constant 16 : index
    %c0_103 = arith.constant 0 : index
    %386 = vector.load %arg22[%c16_102, %c0_103] : memref<48x128xf32, #tpu.memory_space<vmem>>, vector<8x128xf32>
    tpu.vector_store %arg22[%c16_102, %c0_103], %385 {strides = array<i32>} : memref<48x128xf32, #tpu.memory_space<vmem>>, vector<8x128xf32>,
    %387 = vector.extract_strided_slice %82 {offsets = [8, 0], sizes = [8, 512], strides = [1, 1]} : vector<48x512xf32> to vector<8x512xf32>
    %388 = arith.truncf %385 : vector<8x128xf32> to vector<8x128xbf16>
    %cst_104 = arith.constant dense<0.000000e+00> : vector<8x512xf32>
    %389 = tpu.matmul %388, %84, %cst_104 {dimension_numbers = #tpu.dot_dimension_numbers<[1], [0], [0], [1], [0, 0, 1, 1], [], []>} : vector<8x128xbf16>, vector<128x512xbf16>, vector<8x512xf32> -> vector<8x512xf32>
    %390 = arith.addf %387, %389 : vector<8x512xf32>
    %391 = vector.extract_strided_slice %390 {offsets = [0, 0], sizes = [8, 128], strides = [1, 1]} : vector<8x512xf32> to vector<8x128xf32>
    %392 = arith.negf %391 : vector<8x128xf32>
    %393 = math.exp %392 : vector<8x128xf32>
    %cst_105 = arith.constant 1.000000e+00 : f32
    %394 = vector.broadcast %cst_105 : f32 to vector<8x128xf32>
    %395 = arith.addf %394, %393 : vector<8x128xf32>
    %396 = arith.divf %394, %395 : vector<8x128xf32>
    %397 = vector.extract_strided_slice %390 {offsets = [0, 128], sizes = [8, 128], strides = [1, 1]} : vector<8x512xf32> to vector<8x128xf32>
    %398 = arith.negf %397 : vector<8x128xf32>
    %399 = math.exp %398 : vector<8x128xf32>
    %cst_106 = arith.constant 1.000000e+00 : f32
    %400 = vector.broadcast %cst_106 : f32 to vector<8x128xf32>
    %401 = arith.addf %400, %399 : vector<8x128xf32>
    %402 = arith.divf %400, %401 : vector<8x128xf32>
    %403 = vector.extract_strided_slice %390 {offsets = [0, 256], sizes = [8, 128], strides = [1, 1]} : vector<8x512xf32> to vector<8x128xf32>
    %404 = math.tanh %403 : vector<8x128xf32>
    %405 = vector.extract_strided_slice %390 {offsets = [0, 384], sizes = [8, 128], strides = [1, 1]} : vector<8x512xf32> to vector<8x128xf32>
    %406 = arith.negf %405 : vector<8x128xf32>
    %407 = math.exp %406 : vector<8x128xf32>
    %cst_107 = arith.constant 1.000000e+00 : f32
    %408 = vector.broadcast %cst_107 : f32 to vector<8x128xf32>
    %409 = arith.addf %408, %407 : vector<8x128xf32>
    %410 = arith.divf %408, %409 : vector<8x128xf32>
    %411 = arith.mulf %402, %383 : vector<8x128xf32>
    %412 = arith.mulf %396, %404 : vector<8x128xf32>
    %413 = arith.addf %411, %412 : vector<8x128xf32>
    %414 = math.tanh %413 : vector<8x128xf32>
    %415 = arith.mulf %410, %414 : vector<8x128xf32>
    %c8_108 = arith.constant 8 : index
    %c0_109 = arith.constant 0 : index
    %416 = vector.load %arg22[%c8_108, %c0_109] : memref<48x128xf32, #tpu.memory_space<vmem>>, vector<8x128xf32>
    tpu.vector_store %arg22[%c8_108, %c0_109], %415 {strides = array<i32>} : memref<48x128xf32, #tpu.memory_space<vmem>>, vector<8x128xf32>,
    %417 = vector.extract_strided_slice %82 {offsets = [0, 0], sizes = [8, 512], strides = [1, 1]} : vector<48x512xf32> to vector<8x512xf32>
    %418 = arith.truncf %415 : vector<8x128xf32> to vector<8x128xbf16>
    %cst_110 = arith.constant dense<0.000000e+00> : vector<8x512xf32>
    %419 = tpu.matmul %418, %84, %cst_110 {dimension_numbers = #tpu.dot_dimension_numbers<[1], [0], [0], [1], [0, 0, 1, 1], [], []>} : vector<8x128xbf16>, vector<128x512xbf16>, vector<8x512xf32> -> vector<8x512xf32>
    %420 = arith.addf %417, %419 : vector<8x512xf32>
    %421 = vector.extract_strided_slice %420 {offsets = [0, 0], sizes = [8, 128], strides = [1, 1]} : vector<8x512xf32> to vector<8x128xf32>
    %422 = arith.negf %421 : vector<8x128xf32>
    %423 = math.exp %422 : vector<8x128xf32>
    %cst_111 = arith.constant 1.000000e+00 : f32
    %424 = vector.broadcast %cst_111 : f32 to vector<8x128xf32>
    %425 = arith.addf %424, %423 : vector<8x128xf32>
    %426 = arith.divf %424, %425 : vector<8x128xf32>
    %427 = vector.extract_strided_slice %420 {offsets = [0, 128], sizes = [8, 128], strides = [1, 1]} : vector<8x512xf32> to vector<8x128xf32>
    %428 = arith.negf %427 : vector<8x128xf32>
    %429 = math.exp %428 : vector<8x128xf32>
    %cst_112 = arith.constant 1.000000e+00 : f32
    %430 = vector.broadcast %cst_112 : f32 to vector<8x128xf32>
    %431 = arith.addf %430, %429 : vector<8x128xf32>
    %432 = arith.divf %430, %431 : vector<8x128xf32>
    %433 = vector.extract_strided_slice %420 {offsets = [0, 256], sizes = [8, 128], strides = [1, 1]} : vector<8x512xf32> to vector<8x128xf32>
    %434 = math.tanh %433 : vector<8x128xf32>
    %435 = vector.extract_strided_slice %420 {offsets = [0, 384], sizes = [8, 128], strides = [1, 1]} : vector<8x512xf32> to vector<8x128xf32>
    %436 = arith.negf %435 : vector<8x128xf32>
    %437 = math.exp %436 : vector<8x128xf32>
    %cst_113 = arith.constant 1.000000e+00 : f32
    %438 = vector.broadcast %cst_113 : f32 to vector<8x128xf32>
    %439 = arith.addf %438, %437 : vector<8x128xf32>
    %440 = arith.divf %438, %439 : vector<8x128xf32>
    %441 = arith.mulf %432, %413 : vector<8x128xf32>
    %442 = arith.mulf %426, %434 : vector<8x128xf32>
    %443 = arith.addf %441, %442 : vector<8x128xf32>
    %444 = math.tanh %443 : vector<8x128xf32>
    %445 = arith.mulf %440, %444 : vector<8x128xf32>
    %c0_114 = arith.constant 0 : index
    %c0_115 = arith.constant 0 : index
    %446 = vector.load %arg22[%c0_114, %c0_115] : memref<48x128xf32, #tpu.memory_space<vmem>>, vector<8x128xf32>
    tpu.vector_store %arg22[%c0_114, %c0_115], %445 {strides = array<i32>} : memref<48x128xf32, #tpu.memory_space<vmem>>, vector<8x128xf32>,
    %c0_116 = arith.constant 0 : index
    %c0_117 = arith.constant 0 : index
    %447 = vector.load %arg21[%c0_116, %c0_117] : memref<48x128xf32, #tpu.memory_space<vmem>>, vector<48x128xf32>
    %448 = arith.truncf %447 : vector<48x128xf32> to vector<48x128xbf16>
    %c0_118 = arith.constant 0 : index
    %c0_119 = arith.constant 0 : index
    %449 = vector.load %arg11[%c0_118, %c0_119] : memref<128x512xbf16, #tpu.memory_space<vmem>>, vector<128x512xbf16>
    %cst_120 = arith.constant dense<0.000000e+00> : vector<48x512xf32>
    %450 = tpu.matmul %448, %449, %cst_120 {dimension_numbers = #tpu.dot_dimension_numbers<[1], [0], [0], [1], [0, 0, 1, 1], [], []>} : vector<48x128xbf16>, vector<128x512xbf16>, vector<48x512xf32> -> vector<48x512xf32>
    %c0_121 = arith.constant 0 : index
    %c0_122 = arith.constant 0 : index
    %451 = vector.load %arg22[%c0_121, %c0_122] : memref<48x128xf32, #tpu.memory_space<vmem>>, vector<48x128xf32>
    %452 = arith.truncf %451 : vector<48x128xf32> to vector<48x128xbf16>
    %c0_123 = arith.constant 0 : index
    %c0_124 = arith.constant 0 : index
    %453 = vector.load %arg12[%c0_123, %c0_124] : memref<128x512xbf16, #tpu.memory_space<vmem>>, vector<128x512xbf16>
    %cst_125 = arith.constant dense<0.000000e+00> : vector<48x512xf32>
    %454 = tpu.matmul %452, %453, %cst_125 {dimension_numbers = #tpu.dot_dimension_numbers<[1], [0], [0], [1], [0, 0, 1, 1], [], []>} : vector<48x128xbf16>, vector<128x512xbf16>, vector<48x512xf32> -> vector<48x512xf32>
    %455 = arith.addf %450, %454 : vector<48x512xf32>
    %c0_126 = arith.constant 0 : index
    %c0_127 = arith.constant 0 : index
    %456 = vector.load %arg14[%c0_126, %c0_127] : memref<1x512xf32, #tpu.memory_space<vmem>>, vector<1x512xf32>
    %457 = vector.broadcast %456 : vector<1x512xf32> to vector<48x512xf32>
    %458 = arith.addf %455, %457 : vector<48x512xf32>
    %459 = vector.extract_strided_slice %458 {offsets = [40, 0], sizes = [8, 512], strides = [1, 1]} : vector<48x512xf32> to vector<8x512xf32>
    %460 = arith.truncf %86 : vector<8x128xf32> to vector<8x128xbf16>
    %cst_128 = arith.constant dense<0.000000e+00> : vector<8x512xf32>
    %461 = tpu.matmul %460, %85, %cst_128 {dimension_numbers = #tpu.dot_dimension_numbers<[1], [0], [0], [1], [0, 0, 1, 1], [], []>} : vector<8x128xbf16>, vector<128x512xbf16>, vector<8x512xf32> -> vector<8x512xf32>
    %462 = arith.addf %459, %461 : vector<8x512xf32>
    %463 = vector.extract_strided_slice %462 {offsets = [0, 0], sizes = [8, 128], strides = [1, 1]} : vector<8x512xf32> to vector<8x128xf32>
    %464 = arith.negf %463 : vector<8x128xf32>
    %465 = math.exp %464 : vector<8x128xf32>
    %cst_129 = arith.constant 1.000000e+00 : f32
    %466 = vector.broadcast %cst_129 : f32 to vector<8x128xf32>
    %467 = arith.addf %466, %465 : vector<8x128xf32>
    %468 = arith.divf %466, %467 : vector<8x128xf32>
    %469 = vector.extract_strided_slice %462 {offsets = [0, 128], sizes = [8, 128], strides = [1, 1]} : vector<8x512xf32> to vector<8x128xf32>
    %470 = arith.negf %469 : vector<8x128xf32>
    %471 = math.exp %470 : vector<8x128xf32>
    %cst_130 = arith.constant 1.000000e+00 : f32
    %472 = vector.broadcast %cst_130 : f32 to vector<8x128xf32>
    %473 = arith.addf %472, %471 : vector<8x128xf32>
    %474 = arith.divf %472, %473 : vector<8x128xf32>
    %475 = vector.extract_strided_slice %462 {offsets = [0, 256], sizes = [8, 128], strides = [1, 1]} : vector<8x512xf32> to vector<8x128xf32>
    %476 = math.tanh %475 : vector<8x128xf32>
    %477 = vector.extract_strided_slice %462 {offsets = [0, 384], sizes = [8, 128], strides = [1, 1]} : vector<8x512xf32> to vector<8x128xf32>
    %478 = arith.negf %477 : vector<8x128xf32>
    %479 = math.exp %478 : vector<8x128xf32>
    %cst_131 = arith.constant 1.000000e+00 : f32
    %480 = vector.broadcast %cst_131 : f32 to vector<8x128xf32>
    %481 = arith.addf %480, %479 : vector<8x128xf32>
    %482 = arith.divf %480, %481 : vector<8x128xf32>
    %483 = arith.mulf %474, %86 : vector<8x128xf32>
    %484 = arith.mulf %468, %476 : vector<8x128xf32>
    %485 = arith.addf %483, %484 : vector<8x128xf32>
    %486 = math.tanh %485 : vector<8x128xf32>
    %487 = arith.mulf %482, %486 : vector<8x128xf32>
    %488 = vector.extract_strided_slice %458 {offsets = [32, 0], sizes = [8, 512], strides = [1, 1]} : vector<48x512xf32> to vector<8x512xf32>
    %489 = arith.truncf %487 : vector<8x128xf32> to vector<8x128xbf16>
    %cst_132 = arith.constant dense<0.000000e+00> : vector<8x512xf32>
    %490 = tpu.matmul %489, %85, %cst_132 {dimension_numbers = #tpu.dot_dimension_numbers<[1], [0], [0], [1], [0, 0, 1, 1], [], []>} : vector<8x128xbf16>, vector<128x512xbf16>, vector<8x512xf32> -> vector<8x512xf32>
    %491 = arith.addf %488, %490 : vector<8x512xf32>
    %492 = vector.extract_strided_slice %491 {offsets = [0, 0], sizes = [8, 128], strides = [1, 1]} : vector<8x512xf32> to vector<8x128xf32>
    %493 = arith.negf %492 : vector<8x128xf32>
    %494 = math.exp %493 : vector<8x128xf32>
    %cst_133 = arith.constant 1.000000e+00 : f32
    %495 = vector.broadcast %cst_133 : f32 to vector<8x128xf32>
    %496 = arith.addf %495, %494 : vector<8x128xf32>
    %497 = arith.divf %495, %496 : vector<8x128xf32>
    %498 = vector.extract_strided_slice %491 {offsets = [0, 128], sizes = [8, 128], strides = [1, 1]} : vector<8x512xf32> to vector<8x128xf32>
    %499 = arith.negf %498 : vector<8x128xf32>
    %500 = math.exp %499 : vector<8x128xf32>
    %cst_134 = arith.constant 1.000000e+00 : f32
    %501 = vector.broadcast %cst_134 : f32 to vector<8x128xf32>
    %502 = arith.addf %501, %500 : vector<8x128xf32>
    %503 = arith.divf %501, %502 : vector<8x128xf32>
    %504 = vector.extract_strided_slice %491 {offsets = [0, 256], sizes = [8, 128], strides = [1, 1]} : vector<8x512xf32> to vector<8x128xf32>
    %505 = math.tanh %504 : vector<8x128xf32>
    %506 = vector.extract_strided_slice %491 {offsets = [0, 384], sizes = [8, 128], strides = [1, 1]} : vector<8x512xf32> to vector<8x128xf32>
    %507 = arith.negf %506 : vector<8x128xf32>
    %508 = math.exp %507 : vector<8x128xf32>
    %cst_135 = arith.constant 1.000000e+00 : f32
    %509 = vector.broadcast %cst_135 : f32 to vector<8x128xf32>
    %510 = arith.addf %509, %508 : vector<8x128xf32>
    %511 = arith.divf %509, %510 : vector<8x128xf32>
    %512 = arith.mulf %503, %485 : vector<8x128xf32>
    %513 = arith.mulf %497, %505 : vector<8x128xf32>
    %514 = arith.addf %512, %513 : vector<8x128xf32>
    %515 = math.tanh %514 : vector<8x128xf32>
    %516 = arith.mulf %511, %515 : vector<8x128xf32>
    %517 = vector.extract_strided_slice %458 {offsets = [24, 0], sizes = [8, 512], strides = [1, 1]} : vector<48x512xf32> to vector<8x512xf32>
    %518 = arith.truncf %516 : vector<8x128xf32> to vector<8x128xbf16>
    %cst_136 = arith.constant dense<0.000000e+00> : vector<8x512xf32>
    %519 = tpu.matmul %518, %85, %cst_136 {dimension_numbers = #tpu.dot_dimension_numbers<[1], [0], [0], [1], [0, 0, 1, 1], [], []>} : vector<8x128xbf16>, vector<128x512xbf16>, vector<8x512xf32> -> vector<8x512xf32>
    %520 = arith.addf %517, %519 : vector<8x512xf32>
    %521 = vector.extract_strided_slice %520 {offsets = [0, 0], sizes = [8, 128], strides = [1, 1]} : vector<8x512xf32> to vector<8x128xf32>
    %522 = arith.negf %521 : vector<8x128xf32>
    %523 = math.exp %522 : vector<8x128xf32>
    %cst_137 = arith.constant 1.000000e+00 : f32
    %524 = vector.broadcast %cst_137 : f32 to vector<8x128xf32>
    %525 = arith.addf %524, %523 : vector<8x128xf32>
    %526 = arith.divf %524, %525 : vector<8x128xf32>
    %527 = vector.extract_strided_slice %520 {offsets = [0, 128], sizes = [8, 128], strides = [1, 1]} : vector<8x512xf32> to vector<8x128xf32>
    %528 = arith.negf %527 : vector<8x128xf32>
    %529 = math.exp %528 : vector<8x128xf32>
    %cst_138 = arith.constant 1.000000e+00 : f32
    %530 = vector.broadcast %cst_138 : f32 to vector<8x128xf32>
    %531 = arith.addf %530, %529 : vector<8x128xf32>
    %532 = arith.divf %530, %531 : vector<8x128xf32>
    %533 = vector.extract_strided_slice %520 {offsets = [0, 256], sizes = [8, 128], strides = [1, 1]} : vector<8x512xf32> to vector<8x128xf32>
    %534 = math.tanh %533 : vector<8x128xf32>
    %535 = vector.extract_strided_slice %520 {offsets = [0, 384], sizes = [8, 128], strides = [1, 1]} : vector<8x512xf32> to vector<8x128xf32>
    %536 = arith.negf %535 : vector<8x128xf32>
    %537 = math.exp %536 : vector<8x128xf32>
    %cst_139 = arith.constant 1.000000e+00 : f32
    %538 = vector.broadcast %cst_139 : f32 to vector<8x128xf32>
    %539 = arith.addf %538, %537 : vector<8x128xf32>
    %540 = arith.divf %538, %539 : vector<8x128xf32>
    %541 = arith.mulf %532, %514 : vector<8x128xf32>
    %542 = arith.mulf %526, %534 : vector<8x128xf32>
    %543 = arith.addf %541, %542 : vector<8x128xf32>
    %544 = math.tanh %543 : vector<8x128xf32>
    %545 = arith.mulf %540, %544 : vector<8x128xf32>
    %546 = vector.extract_strided_slice %458 {offsets = [16, 0], sizes = [8, 512], strides = [1, 1]} : vector<48x512xf32> to vector<8x512xf32>
    %547 = arith.truncf %545 : vector<8x128xf32> to vector<8x128xbf16>
    %cst_140 = arith.constant dense<0.000000e+00> : vector<8x512xf32>
    %548 = tpu.matmul %547, %85, %cst_140 {dimension_numbers = #tpu.dot_dimension_numbers<[1], [0], [0], [1], [0, 0, 1, 1], [], []>} : vector<8x128xbf16>, vector<128x512xbf16>, vector<8x512xf32> -> vector<8x512xf32>
    %549 = arith.addf %546, %548 : vector<8x512xf32>
    %550 = vector.extract_strided_slice %549 {offsets = [0, 0], sizes = [8, 128], strides = [1, 1]} : vector<8x512xf32> to vector<8x128xf32>
    %551 = arith.negf %550 : vector<8x128xf32>
    %552 = math.exp %551 : vector<8x128xf32>
    %cst_141 = arith.constant 1.000000e+00 : f32
    %553 = vector.broadcast %cst_141 : f32 to vector<8x128xf32>
    %554 = arith.addf %553, %552 : vector<8x128xf32>
    %555 = arith.divf %553, %554 : vector<8x128xf32>
    %556 = vector.extract_strided_slice %549 {offsets = [0, 128], sizes = [8, 128], strides = [1, 1]} : vector<8x512xf32> to vector<8x128xf32>
    %557 = arith.negf %556 : vector<8x128xf32>
    %558 = math.exp %557 : vector<8x128xf32>
    %cst_142 = arith.constant 1.000000e+00 : f32
    %559 = vector.broadcast %cst_142 : f32 to vector<8x128xf32>
    %560 = arith.addf %559, %558 : vector<8x128xf32>
    %561 = arith.divf %559, %560 : vector<8x128xf32>
    %562 = vector.extract_strided_slice %549 {offsets = [0, 256], sizes = [8, 128], strides = [1, 1]} : vector<8x512xf32> to vector<8x128xf32>
    %563 = math.tanh %562 : vector<8x128xf32>
    %564 = vector.extract_strided_slice %549 {offsets = [0, 384], sizes = [8, 128], strides = [1, 1]} : vector<8x512xf32> to vector<8x128xf32>
    %565 = arith.negf %564 : vector<8x128xf32>
    %566 = math.exp %565 : vector<8x128xf32>
    %cst_143 = arith.constant 1.000000e+00 : f32
    %567 = vector.broadcast %cst_143 : f32 to vector<8x128xf32>
    %568 = arith.addf %567, %566 : vector<8x128xf32>
    %569 = arith.divf %567, %568 : vector<8x128xf32>
    %570 = arith.mulf %561, %543 : vector<8x128xf32>
    %571 = arith.mulf %555, %563 : vector<8x128xf32>
    %572 = arith.addf %570, %571 : vector<8x128xf32>
    %573 = math.tanh %572 : vector<8x128xf32>
    %574 = arith.mulf %569, %573 : vector<8x128xf32>
    %575 = vector.extract_strided_slice %458 {offsets = [8, 0], sizes = [8, 512], strides = [1, 1]} : vector<48x512xf32> to vector<8x512xf32>
    %576 = arith.truncf %574 : vector<8x128xf32> to vector<8x128xbf16>
    %cst_144 = arith.constant dense<0.000000e+00> : vector<8x512xf32>
    %577 = tpu.matmul %576, %85, %cst_144 {dimension_numbers = #tpu.dot_dimension_numbers<[1], [0], [0], [1], [0, 0, 1, 1], [], []>} : vector<8x128xbf16>, vector<128x512xbf16>, vector<8x512xf32> -> vector<8x512xf32>
    %578 = arith.addf %575, %577 : vector<8x512xf32>
    %579 = vector.extract_strided_slice %578 {offsets = [0, 0], sizes = [8, 128], strides = [1, 1]} : vector<8x512xf32> to vector<8x128xf32>
    %580 = arith.negf %579 : vector<8x128xf32>
    %581 = math.exp %580 : vector<8x128xf32>
    %cst_145 = arith.constant 1.000000e+00 : f32
    %582 = vector.broadcast %cst_145 : f32 to vector<8x128xf32>
    %583 = arith.addf %582, %581 : vector<8x128xf32>
    %584 = arith.divf %582, %583 : vector<8x128xf32>
    %585 = vector.extract_strided_slice %578 {offsets = [0, 128], sizes = [8, 128], strides = [1, 1]} : vector<8x512xf32> to vector<8x128xf32>
    %586 = arith.negf %585 : vector<8x128xf32>
    %587 = math.exp %586 : vector<8x128xf32>
    %cst_146 = arith.constant 1.000000e+00 : f32
    %588 = vector.broadcast %cst_146 : f32 to vector<8x128xf32>
    %589 = arith.addf %588, %587 : vector<8x128xf32>
    %590 = arith.divf %588, %589 : vector<8x128xf32>
    %591 = vector.extract_strided_slice %578 {offsets = [0, 256], sizes = [8, 128], strides = [1, 1]} : vector<8x512xf32> to vector<8x128xf32>
    %592 = math.tanh %591 : vector<8x128xf32>
    %593 = vector.extract_strided_slice %578 {offsets = [0, 384], sizes = [8, 128], strides = [1, 1]} : vector<8x512xf32> to vector<8x128xf32>
    %594 = arith.negf %593 : vector<8x128xf32>
    %595 = math.exp %594 : vector<8x128xf32>
    %cst_147 = arith.constant 1.000000e+00 : f32
    %596 = vector.broadcast %cst_147 : f32 to vector<8x128xf32>
    %597 = arith.addf %596, %595 : vector<8x128xf32>
    %598 = arith.divf %596, %597 : vector<8x128xf32>
    %599 = arith.mulf %590, %572 : vector<8x128xf32>
    %600 = arith.mulf %584, %592 : vector<8x128xf32>
    %601 = arith.addf %599, %600 : vector<8x128xf32>
    %602 = math.tanh %601 : vector<8x128xf32>
    %603 = arith.mulf %598, %602 : vector<8x128xf32>
    %604 = vector.extract_strided_slice %458 {offsets = [0, 0], sizes = [8, 512], strides = [1, 1]} : vector<48x512xf32> to vector<8x512xf32>
    %605 = arith.truncf %603 : vector<8x128xf32> to vector<8x128xbf16>
    %cst_148 = arith.constant dense<0.000000e+00> : vector<8x512xf32>
    %606 = tpu.matmul %605, %85, %cst_148 {dimension_numbers = #tpu.dot_dimension_numbers<[1], [0], [0], [1], [0, 0, 1, 1], [], []>} : vector<8x128xbf16>, vector<128x512xbf16>, vector<8x512xf32> -> vector<8x512xf32>
    %607 = arith.addf %604, %606 : vector<8x512xf32>
    %608 = vector.extract_strided_slice %607 {offsets = [0, 0], sizes = [8, 128], strides = [1, 1]} : vector<8x512xf32> to vector<8x128xf32>
    %609 = arith.negf %608 : vector<8x128xf32>
    %610 = math.exp %609 : vector<8x128xf32>
    %cst_149 = arith.constant 1.000000e+00 : f32
    %611 = vector.broadcast %cst_149 : f32 to vector<8x128xf32>
    %612 = arith.addf %611, %610 : vector<8x128xf32>
    %613 = arith.divf %611, %612 : vector<8x128xf32>
    %614 = vector.extract_strided_slice %607 {offsets = [0, 128], sizes = [8, 128], strides = [1, 1]} : vector<8x512xf32> to vector<8x128xf32>
    %615 = arith.negf %614 : vector<8x128xf32>
    %616 = math.exp %615 : vector<8x128xf32>
    %cst_150 = arith.constant 1.000000e+00 : f32
    %617 = vector.broadcast %cst_150 : f32 to vector<8x128xf32>
    %618 = arith.addf %617, %616 : vector<8x128xf32>
    %619 = arith.divf %617, %618 : vector<8x128xf32>
    %620 = vector.extract_strided_slice %607 {offsets = [0, 256], sizes = [8, 128], strides = [1, 1]} : vector<8x512xf32> to vector<8x128xf32>
    %621 = math.tanh %620 : vector<8x128xf32>
    %622 = vector.extract_strided_slice %607 {offsets = [0, 384], sizes = [8, 128], strides = [1, 1]} : vector<8x512xf32> to vector<8x128xf32>
    %623 = arith.negf %622 : vector<8x128xf32>
    %624 = math.exp %623 : vector<8x128xf32>
    %cst_151 = arith.constant 1.000000e+00 : f32
    %625 = vector.broadcast %cst_151 : f32 to vector<8x128xf32>
    %626 = arith.addf %625, %624 : vector<8x128xf32>
    %627 = arith.divf %625, %626 : vector<8x128xf32>
    %628 = arith.mulf %619, %601 : vector<8x128xf32>
    %629 = arith.mulf %613, %621 : vector<8x128xf32>
    %630 = arith.addf %628, %629 : vector<8x128xf32>
    %631 = math.tanh %630 : vector<8x128xf32>
    %632 = arith.mulf %627, %631 : vector<8x128xf32>
    %633 = arith.truncf %632 : vector<8x128xf32> to vector<8x128xbf16>
    %c0_152 = arith.constant 0 : index
    %c0_153 = arith.constant 0 : index
    %634 = vector.load %arg15[%c0_152, %c0_153] : memref<128x100xbf16, #tpu.memory_space<vmem>>, vector<128x100xbf16>
    %cst_154 = arith.constant dense<0.000000e+00> : vector<8x100xf32>
    %635 = tpu.matmul %633, %634, %cst_154 {dimension_numbers = #tpu.dot_dimension_numbers<[1], [0], [0], [1], [0, 0, 1, 1], [], []>} : vector<8x128xbf16>, vector<128x100xbf16>, vector<8x100xf32> -> vector<8x100xf32>
    %c0_155 = arith.constant 0 : index
    %c0_156 = arith.constant 0 : index
    %636 = vector.load %arg16[%c0_155, %c0_156] : memref<1x100xf32, #tpu.memory_space<vmem>>, vector<1x100xf32>
    %637 = vector.broadcast %636 : vector<1x100xf32> to vector<8x100xf32>
    %638 = arith.addf %635, %637 : vector<8x100xf32>
    %cst_157 = arith.constant 0.000000e+00 : f32
    %639 = vector.broadcast %cst_157 : f32 to vector<8x100xf32>
    %640 = arith.maximumf %638, %639 : vector<8x100xf32>
    %641 = arith.truncf %640 : vector<8x100xf32> to vector<8x100xbf16>
    %c0_158 = arith.constant 0 : index
    %c0_159 = arith.constant 0 : index
    %642 = vector.load %arg17[%c0_158, %c0_159] : memref<100x13xbf16, #tpu.memory_space<vmem>>, vector<100x13xbf16>
    %cst_160 = arith.constant dense<0.000000e+00> : vector<8x13xf32>
    %643 = tpu.matmul %641, %642, %cst_160 {dimension_numbers = #tpu.dot_dimension_numbers<[1], [0], [0], [1], [0, 0, 1, 1], [], []>} : vector<8x100xbf16>, vector<100x13xbf16>, vector<8x13xf32> -> vector<8x13xf32>
    %c0_161 = arith.constant 0 : index
    %c0_162 = arith.constant 0 : index
    %644 = vector.load %arg18[%c0_161, %c0_162] : memref<1x13xf32, #tpu.memory_space<vmem>>, vector<1x13xf32>
    %645 = vector.broadcast %644 : vector<1x13xf32> to vector<8x13xf32>
    %646 = arith.addf %643, %645 : vector<8x13xf32>
    %c0_163 = arith.constant 0 : index
    %c0_164 = arith.constant 0 : index
    %647 = vector.load %arg19[%c0_163, %c0_164] : memref<8x13xf32, #tpu.memory_space<vmem>>, vector<8x13xf32>
    tpu.vector_store %arg19[%c0_163, %c0_164], %646 {strides = array<i32>} : memref<8x13xf32, #tpu.memory_space<vmem>>, vector<8x13xf32>,
    return
  }
}

</mosaic_0001>

<llo_original>
// kernel: cnnlstm_forward.1
$region0: #{cnnlstm_forward.1}
  #allocation0 [shape = 'u32[]', space=smem, size = 0x4, offset = 0x4, fixed_abs, tag = 'smem constant byte address 0x4 - core index']
  #allocation1 [shape = 'u32[144,128]{1,0:T(1,128)}', space=vmem, size = 0x12000, scoped, tag = 'internal scratch']
  #allocation2 [shape = 'f32[48,64]{1,0:T(8,128)}', space=vmem, size = 0x6000, scoped, tag = 'scratch operand']
  #allocation3 [shape = 'f32[48,128]{1,0:T(8,128)}', space=vmem, size = 0x6000, scoped, tag = 'scratch operand']
  #allocation4 [shape = 'f32[48,128]{1,0:T(8,128)}', space=vmem, size = 0x6000, scoped, tag = 'scratch operand']
  %s0 = inlined_call_operand.vmem [shape: f32[128,8], index: 0, kind: input, shape index: {}]
  %s1 = inlined_call_operand.vmem [shape: bf16[3,8,64], index: 1, kind: input, shape index: {}]
  %s2 = inlined_call_operand.vmem [shape: f32[1,64], index: 2, kind: input, shape index: {}]
  %s3 = inlined_call_operand.hbm [shape: bf16[3,64,64], index: 3, kind: input, shape index: {}]
  %s4 = inlined_call_operand.vmem [shape: f32[1,64], index: 4, kind: input, shape index: {}]
  %s5 = inlined_call_operand.vmem [shape: bf16[64,512], index: 5, kind: input, shape index: {}]
  %s6 = inlined_call_operand.vmem [shape: bf16[128,512], index: 6, kind: input, shape index: {}]
  %s7 = inlined_call_operand.vmem [shape: f32[1,512], index: 7, kind: input, shape index: {}]
  %s8 = inlined_call_operand.hbm [shape: bf16[64,512], index: 8, kind: input, shape index: {}]
  %s9 = inlined_call_operand.hbm [shape: bf16[128,512], index: 9, kind: input, shape index: {}]
  %s10 = inlined_call_operand.vmem [shape: f32[1,512], index: 10, kind: input, shape index: {}]
  %s11 = inlined_call_operand.hbm [shape: bf16[128,512], index: 11, kind: input, shape index: {}]
  %s12 = inlined_call_operand.hbm [shape: bf16[128,512], index: 12, kind: input, shape index: {}]
  %s13 = inlined_call_operand.hbm [shape: bf16[128,512], index: 13, kind: input, shape index: {}]
  %s14 = inlined_call_operand.vmem [shape: f32[1,512], index: 14, kind: input, shape index: {}]
  %s15 = inlined_call_operand.vmem [shape: bf16[128,100], index: 15, kind: input, shape index: {}]
  %s16 = inlined_call_operand.vmem [shape: f32[1,100], index: 16, kind: input, shape index: {}]
  %s17 = inlined_call_operand.vmem [shape: bf16[100,13], index: 17, kind: input, shape index: {}]
  %s18 = inlined_call_operand.vmem [shape: f32[1,13], index: 18, kind: input, shape index: {}]
  %s19 = inlined_call_operand.vmem [shape: f32[8,13], index: 19, kind: output, shape index: {}]
  %s20 = sld [smem:[#allocation0]]
  $region110: #{cnnlstm_forward.1} parent=0
    _
  %s22 = ssub.s32 1, %s20
  %s23 = scalar_select 0, %s22, %s20
  $region1: #{cnnlstm_forward.1} parent=0
    #allocation5 [shape = 'u8[49152]{0}', space=vmem, size = 0xc000, scoped, tag = 'input window, operand 3, single buffered']
    #allocation6 [shape = 's32[1]{0}', space=sflag, size = 0x4, scoped, tag = 'scoped memory for cnnlstm_forward.1']
    #allocation7 [shape = 'u8[65536]{0}', space=vmem, size = 0x10000, scoped, tag = 'input window, operand 8, single buffered']
    #allocation8 [shape = 's32[1]{0}', space=sflag, size = 0x4, scoped, tag = 'scoped memory for cnnlstm_forward.1']
    #allocation9 [shape = 'u8[131072]{0}', space=vmem, size = 0x20000, scoped, tag = 'input window, operand 9, single buffered']
    #allocation10 [shape = 'u8[131072]{0}', space=vmem, size = 0x20000, scoped, tag = 'input window, operand 11, single buffered']
    #allocation11 [shape = 's32[1]{0}', space=sflag, size = 0x4, scoped, tag = 'scoped memory for cnnlstm_forward.1']
    #allocation12 [shape = 'u8[131072]{0}', space=vmem, size = 0x20000, scoped, tag = 'input window, operand 12, single buffered']
    #allocation13 [shape = 'u8[131072]{0}', space=vmem, size = 0x20000, scoped, tag = 'input window, operand 13, single buffered']
    #allocation14 [shape = 's32[1]{0}', space=sflag, size = 0x4, scoped, tag = 'scoped memory for cnnlstm_forward.1']
    %24 = vsyncpa [#allocation6], 0
    %25 = vsyncpa [#allocation8], 0
    %26 = vsyncpa [#allocation11], 0
    %27 = vsyncpa [#allocation14], 0
    // Predicated region
    $region2: #{cnnlstm_forward.1} parent=1 // pred_check
      _
    $region3: #{cnnlstm_forward.1} parent=1 // pred_check_branch
      %29 = sbr.rel (0) target = $region5
    $region4: #{cnnlstm_forward.1} parent=1 // pred_region
      _
    $region5: #{cnnlstm_forward.1} parent=1 // pred_fallthru
      _
    // Predicated region
    $region6: #{cnnlstm_forward.1} parent=1 // pred_check
      _
    $region7: #{cnnlstm_forward.1} parent=1 // pred_check_branch
      %31 = sbr.rel (0) target = $region9
    $region8: #{cnnlstm_forward.1} parent=1 // pred_region
      _
    $region9: #{cnnlstm_forward.1} parent=1 // pred_fallthru
      _
    // Predicated region
    $region10: #{cnnlstm_forward.1} parent=1 // pred_check
      _
    $region11: #{cnnlstm_forward.1} parent=1 // pred_check_branch
      %33 = sbr.rel (0) target = $region13
    $region12: #{cnnlstm_forward.1} parent=1 // pred_region
      _
    $region13: #{cnnlstm_forward.1} parent=1 // pred_fallthru
      _
    // Predicated region
    $region14: #{cnnlstm_forward.1} parent=1 // pred_check
      _
    $region15: #{cnnlstm_forward.1} parent=1 // pred_check_branch
      %35 = sbr.rel (0) target = $region17
    $region16: #{cnnlstm_forward.1} parent=1 // pred_region
      %s37 = ssub.s32 1536, 1536
      %38 = vsyncadd [#allocation6], %s37
      %s39 = sshll.u32 [#allocation5], 4
      %s40 = int_to_ptr.vmem [resolvable:$true] %s39
      %45 = dma.hbm_to_vmem [thread:$0]  %s3, 1536, %s40, [#allocation6], 64, 64, 4
    $region17: #{cnnlstm_forward.1} parent=1 // pred_fallthru
      _
    // Predicated region
    $region18: #{cnnlstm_forward.1} parent=1 // pred_check
      _
    $region19: #{cnnlstm_forward.1} parent=1 // pred_check_branch
      %47 = sbr.rel (0) target = $region21
    $region20: #{cnnlstm_forward.1} parent=1 // pred_region
      _
    $region21: #{cnnlstm_forward.1} parent=1 // pred_fallthru
      _
    // Predicated region
    $region22: #{cnnlstm_forward.1} parent=1 // pred_check
      _
    $region23: #{cnnlstm_forward.1} parent=1 // pred_check_branch
      %49 = sbr.rel (0) target = $region25
    $region24: #{cnnlstm_forward.1} parent=1 // pred_region
      _
    $region25: #{cnnlstm_forward.1} parent=1 // pred_fallthru
      _
    // Predicated region
    $region26: #{cnnlstm_forward.1} parent=1 // pred_check
      _
    $region27: #{cnnlstm_forward.1} parent=1 // pred_check_branch
      %51 = sbr.rel (0) target = $region29
    $region28: #{cnnlstm_forward.1} parent=1 // pred_region
      _
    $region29: #{cnnlstm_forward.1} parent=1 // pred_fallthru
      _
    // Predicated region
    $region30: #{cnnlstm_forward.1} parent=1 // pred_check
      _
    $region31: #{cnnlstm_forward.1} parent=1 // pred_check_branch
      %53 = sbr.rel (0) target = $region33
    $region32: #{cnnlstm_forward.1} parent=1 // pred_region
      _
    $region33: #{cnnlstm_forward.1} parent=1 // pred_fallthru
      _
    // Predicated region
    $region34: #{cnnlstm_forward.1} parent=1 // pred_check
      _
    $region35: #{cnnlstm_forward.1} parent=1 // pred_check_branch
      %55 = sbr.rel (0) target = $region37
    $region36: #{cnnlstm_forward.1} parent=1 // pred_region
      %s57 = ssub.s32 2048, 2048
      %58 = vsyncadd [#allocation8], %s57
      %s59 = sshll.u32 [#allocation7], 4
      %s60 = int_to_ptr.vmem [resolvable:$true] %s59
      %65 = dma.hbm_to_vmem [thread:$0]  %s8, 2048, %s60, [#allocation8], 256, 256, 16
    $region37: #{cnnlstm_forward.1} parent=1 // pred_fallthru
      _
    // Predicated region
    $region38: #{cnnlstm_forward.1} parent=1 // pred_check
      _
    $region39: #{cnnlstm_forward.1} parent=1 // pred_check_branch
      %67 = sbr.rel (0) target = $region41
    $region40: #{cnnlstm_forward.1} parent=1 // pred_region
      %s69 = ssub.s32 4096, 4096
      %70 = vsyncadd [#allocation8], %s69
      %s71 = sshll.u32 [#allocation9], 4
      %s72 = int_to_ptr.vmem [resolvable:$true] %s71
      %77 = dma.hbm_to_vmem [thread:$0]  %s9, 4096, %s72, [#allocation8], 256, 256, 16
    $region41: #{cnnlstm_forward.1} parent=1 // pred_fallthru
      _
    // Predicated region
    $region42: #{cnnlstm_forward.1} parent=1 // pred_check
      _
    $region43: #{cnnlstm_forward.1} parent=1 // pred_check_branch
      %79 = sbr.rel (0) target = $region45
    $region44: #{cnnlstm_forward.1} parent=1 // pred_region
      _
    $region45: #{cnnlstm_forward.1} parent=1 // pred_fallthru
      _
    // Predicated region
    $region46: #{cnnlstm_forward.1} parent=1 // pred_check
      _
    $region47: #{cnnlstm_forward.1} parent=1 // pred_check_branch
      %81 = sbr.rel (0) target = $region49
    $region48: #{cnnlstm_forward.1} parent=1 // pred_region
      %s83 = ssub.s32 4096, 4096
      %84 = vsyncadd [#allocation11], %s83
      %s85 = sshll.u32 [#allocation10], 4
      %s86 = int_to_ptr.vmem [resolvable:$true] %s85
      %91 = dma.hbm_to_vmem [thread:$0]  %s11, 4096, %s86, [#allocation11], 256, 256, 16
    $region49: #{cnnlstm_forward.1} parent=1 // pred_fallthru
      _
    // Predicated region
    $region50: #{cnnlstm_forward.1} parent=1 // pred_check
      _
    $region51: #{cnnlstm_forward.1} parent=1 // pred_check_branch
      %93 = sbr.rel (0) target = $region53
    $region52: #{cnnlstm_forward.1} parent=1 // pred_region
      %s95 = ssub.s32 4096, 4096
      %96 = vsyncadd [#allocation11], %s95
      %s97 = sshll.u32 [#allocation12], 4
      %s98 = int_to_ptr.vmem [resolvable:$true] %s97
      %103 = dma.hbm_to_vmem [thread:$0]  %s12, 4096, %s98, [#allocation11], 256, 256, 16
    $region53: #{cnnlstm_forward.1} parent=1 // pred_fallthru
      _
    // Predicated region
    $region54: #{cnnlstm_forward.1} parent=1 // pred_check
      _
    $region55: #{cnnlstm_forward.1} parent=1 // pred_check_branch
      %105 = sbr.rel (0) target = $region57
    $region56: #{cnnlstm_forward.1} parent=1 // pred_region
      %s107 = ssub.s32 4096, 4096
      %108 = vsyncadd [#allocation14], %s107
      %s109 = sshll.u32 [#allocation13], 4
      %s110 = int_to_ptr.vmem [resolvable:$true] %s109
      %115 = dma.hbm_to_vmem [thread:$0]  %s13, 4096, %s110, [#allocation14], 256, 256, 16
    $region57: #{cnnlstm_forward.1} parent=1 // pred_fallthru
      _
    // Predicated region
    $region58: #{cnnlstm_forward.1} parent=1 // pred_check
      _
    $region59: #{cnnlstm_forward.1} parent=1 // pred_check_branch
      %117 = sbr.rel (0) target = $region61
    $region60: #{cnnlstm_forward.1} parent=1 // pred_region
      _
    $region61: #{cnnlstm_forward.1} parent=1 // pred_fallthru
      _
    // Predicated region
    $region62: #{cnnlstm_forward.1} parent=1 // pred_check
      _
    $region63: #{cnnlstm_forward.1} parent=1 // pred_check_branch
      %119 = sbr.rel (0) target = $region65
    $region64: #{cnnlstm_forward.1} parent=1 // pred_region
      _
    $region65: #{cnnlstm_forward.1} parent=1 // pred_fallthru
      _
    // Predicated region
    $region66: #{cnnlstm_forward.1} parent=1 // pred_check
      _
    $region67: #{cnnlstm_forward.1} parent=1 // pred_check_branch
      %121 = sbr.rel (0) target = $region69
    $region68: #{cnnlstm_forward.1} parent=1 // pred_region
      _
    $region69: #{cnnlstm_forward.1} parent=1 // pred_fallthru
      _
    // Predicated region
    $region70: #{cnnlstm_forward.1} parent=1 // pred_check
      _
    $region71: #{cnnlstm_forward.1} parent=1 // pred_check_branch
      %123 = sbr.rel (0) target = $region73
    $region72: #{cnnlstm_forward.1} parent=1 // pred_region
      _
    $region73: #{cnnlstm_forward.1} parent=1 // pred_fallthru
      _
    // Predicated region
    $region74: #{cnnlstm_forward.1} parent=1 // pred_check
      _
    $region75: #{cnnlstm_forward.1} parent=1 // pred_check_branch
      %125 = sbr.rel (0) target = $region77
    $region76: #{cnnlstm_forward.1} parent=1 // pred_region
      _
    $region77: #{cnnlstm_forward.1} parent=1 // pred_fallthru
      _
    // Predicated region
    $region78: #{cnnlstm_forward.1} parent=1 // pred_check
      _
    $region79: #{cnnlstm_forward.1} parent=1 // pred_check_branch
      %127 = sbr.rel (0) target = $region81
    $region80: #{cnnlstm_forward.1} parent=1 // pred_region
      %128 = dma.done [#allocation6], 1536
    $region81: #{cnnlstm_forward.1} parent=1 // pred_fallthru
      _
    // Predicated region
    $region82: #{cnnlstm_forward.1} parent=1 // pred_check
      _
    $region83: #{cnnlstm_forward.1} parent=1 // pred_check_branch
      %130 = sbr.rel (0) target = $region85
    $region84: #{cnnlstm_forward.1} parent=1 // pred_region
      %131 = dma.done [#allocation8], 2048
    $region85: #{cnnlstm_forward.1} parent=1 // pred_fallthru
      _
    // Predicated region
    $region86: #{cnnlstm_forward.1} parent=1 // pred_check
      _
    $region87: #{cnnlstm_forward.1} parent=1 // pred_check_branch
      %133 = sbr.rel (0) target = $region89
    $region88: #{cnnlstm_forward.1} parent=1 // pred_region
      %134 = dma.done [#allocation8], 4096
    $region89: #{cnnlstm_forward.1} parent=1 // pred_fallthru
      _
    // Predicated region
    $region90: #{cnnlstm_forward.1} parent=1 // pred_check
      _
    $region91: #{cnnlstm_forward.1} parent=1 // pred_check_branch
      %136 = sbr.rel (0) target = $region93
    $region92: #{cnnlstm_forward.1} parent=1 // pred_region
      %137 = dma.done [#allocation11], 4096
    $region93: #{cnnlstm_forward.1} parent=1 // pred_fallthru
      _
    // Predicated region
    $region94: #{cnnlstm_forward.1} parent=1 // pred_check
      _
    $region95: #{cnnlstm_forward.1} parent=1 // pred_check_branch
      %139 = sbr.rel (0) target = $region97
    $region96: #{cnnlstm_forward.1} parent=1 // pred_region
      %140 = dma.done [#allocation11], 4096
    $region97: #{cnnlstm_forward.1} parent=1 // pred_fallthru
      _
    // Predicated region
    $region98: #{cnnlstm_forward.1} parent=1 // pred_check
      _
    $region99: #{cnnlstm_forward.1} parent=1 // pred_check_branch
      %142 = sbr.rel (0) target = $region101
    $region100: #{cnnlstm_forward.1} parent=1 // pred_region
      %143 = dma.done [#allocation14], 4096
    $region101: #{cnnlstm_forward.1} parent=1 // pred_fallthru
      _
    %v145 = vld [vmem:[%s0] sm:$0xff]
    %v146 = vld [vmem:[%s0 + $0x8] sm:$0xff]
    %v147 = vld [vmem:[%s0 + $0x10] sm:$0xff]
    %v148 = vld [vmem:[%s0 + $0x18] sm:$0xff]
    %v149 = vld [vmem:[%s0 + $0x20] sm:$0xff]
    %v150 = vld [vmem:[%s0 + $0x28] sm:$0xff]
    %v151 = vld [vmem:[%s0 + $0x30] sm:$0xff]
    %v152 = vld [vmem:[%s0 + $0x38] sm:$0xff]
    %v153 = vld [vmem:[%s0 + $0x40] sm:$0xff]
    %v154 = vld [vmem:[%s0 + $0x48] sm:$0xff]
    %v155 = vld [vmem:[%s0 + $0x50] sm:$0xff]
    %v156 = vld [vmem:[%s0 + $0x58] sm:$0xff]
    %v157 = vld [vmem:[%s0 + $0x60] sm:$0xff]
    %v158 = vld [vmem:[%s0 + $0x68] sm:$0xff]
    %v159 = vld [vmem:[%s0 + $0x70] sm:$0xff]
    %v160 = vld [vmem:[%s0 + $0x78] sm:$0xff]
    %v161 = vld [vmem:[%s1] sm:$0xf]
    %v162 = vld [vmem:[%s1 + $0x4] sm:$0xf]
    %v163 = vld [vmem:[%s1 + $0x8] sm:$0xf]
    %v164 = vld [vmem:[%s2] sm:$0x1]
    %v165 = vpack.c.bf16 %v146, %v145
    %v166 = vpack.c.bf16 %v148, %v147
    %v167 = vpack.c.bf16 %v150, %v149
    %v168 = vpack.c.bf16 %v152, %v151
    %v169 = vpack.c.bf16 %v154, %v153
    %v170 = vpack.c.bf16 %v156, %v155
    %v171 = vpack.c.bf16 %v158, %v157
    %vm172 = vcmask 64512
    %v174 = vsel %vm172, %v165, 0
    %v177 = vsel %vm172, %v166, 0
    %v180 = vsel %vm172, %v167, 0
    %v183 = vsel %vm172, %v168, 0
    %v186 = vsel %vm172, %v169, 0
    %v189 = vsel %vm172, %v170, 0
    %v192 = vsel %vm172, %v171, 0
    %vm194 = vcmask 1043456
    %v196 = vsel %vm194, %v161, 0
    %198 = vmatprep.subr.bf16.mxu0 0
    %199 = vmatpush1.bf16.msra.mxu0 0
    %200 = vmatprep.subr.bf16.mxu0 0
    %201 = vmatpush1.bf16.msra.mxu0 0
    %202 = vmatprep.subr.bf16.mxu0 0
    %203 = vmatpush1.bf16.msra.mxu0 0
    %204 = vmatprep.subr.bf16.mxu0 0
    %205 = vmatpush1.bf16.msra.mxu0 0
    %206 = vmatprep.subr.bf16.mxu0 0
    %207 = vmatpush1.bf16.msra.mxu0 0
    %208 = vmatprep.subr.bf16.mxu0 0
    %209 = vmatpush1.bf16.msra.mxu0 0
    %210 = vmatprep.subr.bf16.mxu0 0
    %211 = vmatpush1.bf16.msra.mxu0 0
    %212 = vmatprep.subr.bf16.mxu0 0
    %213 = vmatpush1.bf16.msra.mxu0 %v196
    %214 = vmatprep.subr.bf16.mxu0 0
    %215 = vmatpush2.bf16.msra.mxu0 0
    %216 = vmatprep.subr.bf16.mxu0 0
    %217 = vmatpush2.bf16.msra.mxu0 0
    %218 = vmatprep.subr.bf16.mxu0 0
    %219 = vmatpush2.bf16.msra.mxu0 0
    %220 = vmatprep.subr.bf16.mxu0 0
    %221 = vmatpush2.bf16.msra.mxu0 0
    %222 = vmatprep.subr.bf16.mxu0 0
    %223 = vmatpush2.bf16.msra.mxu0 0
    %224 = vmatprep.subr.bf16.mxu0 0
    %225 = vmatpush2.bf16.msra.mxu0 0
    %226 = vmatprep.subr.bf16.mxu0 0
    %227 = vmatpush2.bf16.msra.mxu0 0
    %228 = vmatprep.subr.bf16.mxu0 0
    %229 = vmatpush2.bf16.msra.mxu0 0
    %230 = vmatprep.mubr.bf16.mxu0 0
    %231 = vmatmul.mubr.bf16.gmra.mxu0 %v174
    %v232 = vpop.f32.mrf.mxu0
    %v233 = vadd.f32 0.0, %v232
    %v234 = vpop.f32.mrf.mxu0
    %v235 = vpop.f32.mrf.mxu0
    %v236 = vadd.f32 0.0, %v235
    %v237 = vpop.f32.mrf.mxu0
    %238 = vmatprep.mubr.bf16.mxu0 0
    %239 = vmatmul.mubr.bf16.gmra.mxu0 %v177
    %v240 = vpop.f32.mrf.mxu0
    %v241 = vadd.f32 0.0, %v240
    %v242 = vpop.f32.mrf.mxu0
    %v243 = vpop.f32.mrf.mxu0
    %v244 = vadd.f32 0.0, %v243
    %v245 = vpop.f32.mrf.mxu0
    %246 = vmatprep.mubr.bf16.mxu0 0
    %247 = vmatmul.mubr.bf16.gmra.mxu0 %v180
    %v248 = vpop.f32.mrf.mxu0
    %v249 = vadd.f32 0.0, %v248
    %v250 = vpop.f32.mrf.mxu0
    %v251 = vpop.f32.mrf.mxu0
    %v252 = vadd.f32 0.0, %v251
    %v253 = vpop.f32.mrf.mxu0
    %254 = vmatprep.mubr.bf16.mxu0 0
    %255 = vmatmul.mubr.bf16.gmra.mxu0 %v183
    %v256 = vpop.f32.mrf.mxu0
    %v257 = vadd.f32 0.0, %v256
    %v258 = vpop.f32.mrf.mxu0
    %v259 = vpop.f32.mrf.mxu0
    %v260 = vadd.f32 0.0, %v259
    %v261 = vpop.f32.mrf.mxu0
    %262 = vmatprep.mubr.bf16.mxu0 0
    %263 = vmatmul.mubr.bf16.gmra.mxu0 %v186
    %v264 = vpop.f32.mrf.mxu0
    %v265 = vadd.f32 0.0, %v264
    %v266 = vpop.f32.mrf.mxu0
    %v267 = vpop.f32.mrf.mxu0
    %v268 = vadd.f32 0.0, %v267
    %v269 = vpop.f32.mrf.mxu0
    %270 = vmatprep.mubr.bf16.mxu0 0
    %271 = vmatmul.mubr.bf16.gmra.mxu0 %v189
    %v272 = vpop.f32.mrf.mxu0
    %v273 = vadd.f32 0.0, %v272
    %v274 = vpop.f32.mrf.mxu0
    %v275 = vpop.f32.mrf.mxu0
    %v276 = vadd.f32 0.0, %v275
    %v277 = vpop.f32.mrf.mxu0
    %278 = vmatprep.mubr.bf16.mxu0 0
    %279 = vmatmul.mubr.bf16.gmra.mxu0 %v192
    %v280 = vpop.f32.mrf.mxu0
    %v281 = vadd.f32 0.0, %v280
    %v282 = vpop.f32.mrf.mxu0
    %v283 = vpop.f32.mrf.mxu0
    %v284 = vadd.f32 0.0, %v283
    %v285 = vpop.f32.mrf.mxu0
    %286 = vdwg.mxu0
    %v288 = vlaneseq
    %v289 = vshrl.u32 %v288, 7
    %v290 = vsub.s32 0, %v289
    %v291 = vrot.slane %v164, %v290
    %v293 = vadd.f32 %v291, %v233
    %v294 = vadd.f32 %v291, %v236
    %v295 = vadd.f32 %v291, %v241
    %v296 = vadd.f32 %v291, %v244
    %v297 = vadd.f32 %v291, %v249
    %v298 = vadd.f32 %v291, %v252
    %v299 = vadd.f32 %v291, %v257
    %v300 = vadd.f32 %v291, %v260
    %v301 = vadd.f32 %v291, %v265
    %v302 = vadd.f32 %v291, %v268
    %v303 = vadd.f32 %v291, %v273
    %v304 = vadd.f32 %v291, %v276
    %v305 = vadd.f32 %v291, %v281
    %v306 = vadd.f32 %v291, %v284
    %v307 = vpack.c.bf16 %v147, %v146
    %v308 = vpack.c.bf16 %v149, %v148
    %v309 = vpack.c.bf16 %v151, %v150
    %v310 = vpack.c.bf16 %v153, %v152
    %v311 = vpack.c.bf16 %v155, %v154
    %v312 = vpack.c.bf16 %v157, %v156
    %v313 = vpack.c.bf16 %v159, %v158
    %v315 = vsel %vm172, %v307, 0
    %v318 = vsel %vm172, %v308, 0
    %v321 = vsel %vm172, %v309, 0
    %v324 = vsel %vm172, %v310, 0
    %v327 = vsel %vm172, %v311, 0
    %v330 = vsel %vm172, %v312, 0
    %v333 = vsel %vm172, %v313, 0
    %v336 = vsel %vm194, %v162, 0
    %338 = vmatprep.subr.bf16.mxu0 0
    %339 = vmatpush1.bf16.msra.mxu0 0
    %340 = vmatprep.subr.bf16.mxu0 0
    %341 = vmatpush1.bf16.msra.mxu0 0
    %342 = vmatprep.subr.bf16.mxu0 0
    %343 = vmatpush1.bf16.msra.mxu0 0
    %344 = vmatprep.subr.bf16.mxu0 0
    %345 = vmatpush1.bf16.msra.mxu0 0
    %346 = vmatprep.subr.bf16.mxu0 0
    %347 = vmatpush1.bf16.msra.mxu0 0
    %348 = vmatprep.subr.bf16.mxu0 0
    %349 = vmatpush1.bf16.msra.mxu0 0
    %350 = vmatprep.subr.bf16.mxu0 0
    %351 = vmatpush1.bf16.msra.mxu0 0
    %352 = vmatprep.subr.bf16.mxu0 0
    %353 = vmatpush1.bf16.msra.mxu0 %v336
    %354 = vmatprep.subr.bf16.mxu0 0
    %355 = vmatpush2.bf16.msra.mxu0 0
    %356 = vmatprep.subr.bf16.mxu0 0
    %357 = vmatpush2.bf16.msra.mxu0 0
    %358 = vmatprep.subr.bf16.mxu0 0
    %359 = vmatpush2.bf16.msra.mxu0 0
    %360 = vmatprep.subr.bf16.mxu0 0
    %361 = vmatpush2.bf16.msra.mxu0 0
    %362 = vmatprep.subr.bf16.mxu0 0
    %363 = vmatpush2.bf16.msra.mxu0 0
    %364 = vmatprep.subr.bf16.mxu0 0
    %365 = vmatpush2.bf16.msra.mxu0 0
    %366 = vmatprep.subr.bf16.mxu0 0
    %367 = vmatpush2.bf16.msra.mxu0 0
    %368 = vmatprep.subr.bf16.mxu0 0
    %369 = vmatpush2.bf16.msra.mxu0 0
    %370 = vmatprep.mubr.bf16.mxu0 0
    %371 = vmatmul.mubr.bf16.gmra.mxu0 %v315
    %v372 = vpop.f32.mrf.mxu0
    %v373 = vadd.f32 0.0, %v372
    %v374 = vpop.f32.mrf.mxu0
    %v375 = vpop.f32.mrf.mxu0
    %v376 = vadd.f32 0.0, %v375
    %v377 = vpop.f32.mrf.mxu0
    %378 = vmatprep.mubr.bf16.mxu0 0
    %379 = vmatmul.mubr.bf16.gmra.mxu0 %v318
    %v380 = vpop.f32.mrf.mxu0
    %v381 = vadd.f32 0.0, %v380
    %v382 = vpop.f32.mrf.mxu0
    %v383 = vpop.f32.mrf.mxu0
    %v384 = vadd.f32 0.0, %v383
    %v385 = vpop.f32.mrf.mxu0
    %386 = vmatprep.mubr.bf16.mxu0 0
    %387 = vmatmul.mubr.bf16.gmra.mxu0 %v321
    %v388 = vpop.f32.mrf.mxu0
    %v389 = vadd.f32 0.0, %v388
    %v390 = vpop.f32.mrf.mxu0
    %v391 = vpop.f32.mrf.mxu0
    %v392 = vadd.f32 0.0, %v391
    %v393 = vpop.f32.mrf.mxu0
    %394 = vmatprep.mubr.bf16.mxu0 0
    %395 = vmatmul.mubr.bf16.gmra.mxu0 %v324
    %v396 = vpop.f32.mrf.mxu0
    %v397 = vadd.f32 0.0, %v396
    %v398 = vpop.f32.mrf.mxu0
    %v399 = vpop.f32.mrf.mxu0
    %v400 = vadd.f32 0.0, %v399
    %v401 = vpop.f32.mrf.mxu0
    %402 = vmatprep.mubr.bf16.mxu0 0
    %403 = vmatmul.mubr.bf16.gmra.mxu0 %v327
    %v404 = vpop.f32.mrf.mxu0
    %v405 = vadd.f32 0.0, %v404
    %v406 = vpop.f32.mrf.mxu0
    %v407 = vpop.f32.mrf.mxu0
    %v408 = vadd.f32 0.0, %v407
    %v409 = vpop.f32.mrf.mxu0
    %410 = vmatprep.mubr.bf16.mxu0 0
    %411 = vmatmul.mubr.bf16.gmra.mxu0 %v330
    %v412 = vpop.f32.mrf.mxu0
    %v413 = vadd.f32 0.0, %v412
    %v414 = vpop.f32.mrf.mxu0
    %v415 = vpop.f32.mrf.mxu0
    %v416 = vadd.f32 0.0, %v415
    %v417 = vpop.f32.mrf.mxu0
    %418 = vmatprep.mubr.bf16.mxu0 0
    %419 = vmatmul.mubr.bf16.gmra.mxu0 %v333
    %v420 = vpop.f32.mrf.mxu0
    %v421 = vadd.f32 0.0, %v420
    %v422 = vpop.f32.mrf.mxu0
    %v423 = vpop.f32.mrf.mxu0
    %v424 = vadd.f32 0.0, %v423
    %v425 = vpop.f32.mrf.mxu0
    %426 = vdwg.mxu0
    %v427 = vadd.f32 %v293, %v373
    %v428 = vadd.f32 %v294, %v376
    %v429 = vadd.f32 %v295, %v381
    %v430 = vadd.f32 %v296, %v384
    %v431 = vadd.f32 %v297, %v389
    %v432 = vadd.f32 %v298, %v392
    %v433 = vadd.f32 %v299, %v397
    %v434 = vadd.f32 %v300, %v400
    %v435 = vadd.f32 %v301, %v405
    %v436 = vadd.f32 %v302, %v408
    %v437 = vadd.f32 %v303, %v413
    %v438 = vadd.f32 %v304, %v416
    %v439 = vadd.f32 %v305, %v421
    %v440 = vadd.f32 %v306, %v424
    %v441 = vpack.c.bf16 %v160, %v159
    %v443 = vsel %vm172, %v441, 0
    %v446 = vsel %vm194, %v163, 0
    %448 = vmatprep.subr.bf16.mxu0 0
    %449 = vmatpush1.bf16.msra.mxu0 0
    %450 = vmatprep.subr.bf16.mxu0 0
    %451 = vmatpush1.bf16.msra.mxu0 0
    %452 = vmatprep.subr.bf16.mxu0 0
    %453 = vmatpush1.bf16.msra.mxu0 0
    %454 = vmatprep.subr.bf16.mxu0 0
    %455 = vmatpush1.bf16.msra.mxu0 0
    %456 = vmatprep.subr.bf16.mxu0 0
    %457 = vmatpush1.bf16.msra.mxu0 0
    %458 = vmatprep.subr.bf16.mxu0 0
    %459 = vmatpush1.bf16.msra.mxu0 0
    %460 = vmatprep.subr.bf16.mxu0 0
    %461 = vmatpush1.bf16.msra.mxu0 0
    %462 = vmatprep.subr.bf16.mxu0 0
    %463 = vmatpush1.bf16.msra.mxu0 %v446
    %464 = vmatprep.subr.bf16.mxu0 0
    %465 = vmatpush2.bf16.msra.mxu0 0
    %466 = vmatprep.subr.bf16.mxu0 0
    %467 = vmatpush2.bf16.msra.mxu0 0
    %468 = vmatprep.subr.bf16.mxu0 0
    %469 = vmatpush2.bf16.msra.mxu0 0
    %470 = vmatprep.subr.bf16.mxu0 0
    %471 = vmatpush2.bf16.msra.mxu0 0
    %472 = vmatprep.subr.bf16.mxu0 0
    %473 = vmatpush2.bf16.msra.mxu0 0
    %474 = vmatprep.subr.bf16.mxu0 0
    %475 = vmatpush2.bf16.msra.mxu0 0
    %476 = vmatprep.subr.bf16.mxu0 0
    %477 = vmatpush2.bf16.msra.mxu0 0
    %478 = vmatprep.subr.bf16.mxu0 0
    %479 = vmatpush2.bf16.msra.mxu0 0
    %480 = vmatprep.mubr.bf16.mxu0 0
    %481 = vmatmul.mubr.bf16.gmra.mxu0 %v177
    %v482 = vpop.f32.mrf.mxu0
    %v483 = vadd.f32 0.0, %v482
    %v484 = vpop.f32.mrf.mxu0
    %v485 = vpop.f32.mrf.mxu0
    %v486 = vadd.f32 0.0, %v485
    %v487 = vpop.f32.mrf.mxu0
    %488 = vmatprep.mubr.bf16.mxu0 0
    %489 = vmatmul.mubr.bf16.gmra.mxu0 %v180
    %v490 = vpop.f32.mrf.mxu0
    %v491 = vadd.f32 0.0, %v490
    %v492 = vpop.f32.mrf.mxu0
    %v493 = vpop.f32.mrf.mxu0
    %v494 = vadd.f32 0.0, %v493
    %v495 = vpop.f32.mrf.mxu0
    %496 = vmatprep.mubr.bf16.mxu0 0
    %497 = vmatmul.mubr.bf16.gmra.mxu0 %v183
    %v498 = vpop.f32.mrf.mxu0
    %v499 = vadd.f32 0.0, %v498
    %v500 = vpop.f32.mrf.mxu0
    %v501 = vpop.f32.mrf.mxu0
    %v502 = vadd.f32 0.0, %v501
    %v503 = vpop.f32.mrf.mxu0
    %504 = vmatprep.mubr.bf16.mxu0 0
    %505 = vmatmul.mubr.bf16.gmra.mxu0 %v186
    %v506 = vpop.f32.mrf.mxu0
    %v507 = vadd.f32 0.0, %v506
    %v508 = vpop.f32.mrf.mxu0
    %v509 = vpop.f32.mrf.mxu0
    %v510 = vadd.f32 0.0, %v509
    %v511 = vpop.f32.mrf.mxu0
    %512 = vmatprep.mubr.bf16.mxu0 0
    %513 = vmatmul.mubr.bf16.gmra.mxu0 %v189
    %v514 = vpop.f32.mrf.mxu0
    %v515 = vadd.f32 0.0, %v514
    %v516 = vpop.f32.mrf.mxu0
    %v517 = vpop.f32.mrf.mxu0
    %v518 = vadd.f32 0.0, %v517
    %v519 = vpop.f32.mrf.mxu0
    %520 = vmatprep.mubr.bf16.mxu0 0
    %521 = vmatmul.mubr.bf16.gmra.mxu0 %v192
    %v522 = vpop.f32.mrf.mxu0
    %v523 = vadd.f32 0.0, %v522
    %v524 = vpop.f32.mrf.mxu0
    %v525 = vpop.f32.mrf.mxu0
    %v526 = vadd.f32 0.0, %v525
    %v527 = vpop.f32.mrf.mxu0
    %528 = vmatprep.mubr.bf16.mxu0 0
    %529 = vmatmul.mubr.bf16.gmra.mxu0 %v443
    %v530 = vpop.f32.mrf.mxu0
    %v531 = vadd.f32 0.0, %v530
    %v532 = vpop.f32.mrf.mxu0
    %v533 = vpop.f32.mrf.mxu0
    %v534 = vadd.f32 0.0, %v533
    %v535 = vpop.f32.mrf.mxu0
    %536 = vdwg.mxu0
    %v537 = vadd.f32 %v427, %v483
    %v538 = vadd.f32 %v428, %v486
    %v539 = vadd.f32 %v429, %v491
    %v540 = vadd.f32 %v430, %v494
    %v541 = vadd.f32 %v431, %v499
    %v542 = vadd.f32 %v432, %v502
    %v543 = vadd.f32 %v433, %v507
    %v544 = vadd.f32 %v434, %v510
    %v545 = vadd.f32 %v435, %v515
    %v546 = vadd.f32 %v436, %v518
    %v547 = vadd.f32 %v437, %v523
    %v548 = vadd.f32 %v438, %v526
    %v549 = vadd.f32 %v439, %v531
    %v550 = vadd.f32 %v440, %v534
    %v551 = vmax.f32 %v537, 0.0
    %v552 = vmax.f32 %v538, 0.0
    %v553 = vmax.f32 %v539, 0.0
    %v554 = vmax.f32 %v540, 0.0
    %v555 = vmax.f32 %v541, 0.0
    %v556 = vmax.f32 %v542, 0.0
    %v557 = vmax.f32 %v543, 0.0
    %v558 = vmax.f32 %v544, 0.0
    %v559 = vmax.f32 %v545, 0.0
    %v560 = vmax.f32 %v546, 0.0
    %v561 = vmax.f32 %v547, 0.0
    %v562 = vmax.f32 %v548, 0.0
    %v563 = vmax.f32 %v549, 0.0
    %v564 = vmax.f32 %v550, 0.0
    %v565 = vld [vmem:[#allocation5] sm:$0xf]
    %v566 = vld [vmem:[#allocation5 + $0x4] sm:$0xf]
    %v567 = vld [vmem:[#allocation5 + $0x8] sm:$0xf]
    %v568 = vld [vmem:[#allocation5 + $0xc] sm:$0xf]
    %v569 = vld [vmem:[#allocation5 + $0x10] sm:$0xf]
    %v570 = vld [vmem:[#allocation5 + $0x14] sm:$0xf]
    %v571 = vld [vmem:[#allocation5 + $0x18] sm:$0xf]
    %v572 = vld [vmem:[#allocation5 + $0x1c] sm:$0xf]
    %v573 = vld [vmem:[#allocation5 + $0x20] sm:$0xf]
    %v574 = vld [vmem:[#allocation5 + $0x24] sm:$0xf]
    %v575 = vld [vmem:[#allocation5 + $0x28] sm:$0xf]
    %v576 = vld [vmem:[#allocation5 + $0x2c] sm:$0xf]
    %v577 = vld [vmem:[#allocation5 + $0x30] sm:$0xf]
    %v578 = vld [vmem:[#allocation5 + $0x34] sm:$0xf]
    %v579 = vld [vmem:[#allocation5 + $0x38] sm:$0xf]
    %v580 = vld [vmem:[#allocation5 + $0x3c] sm:$0xf]
    %v581 = vld [vmem:[#allocation5 + $0x40] sm:$0xf]
    %v582 = vld [vmem:[#allocation5 + $0x44] sm:$0xf]
    %v583 = vld [vmem:[#allocation5 + $0x48] sm:$0xf]
    %v584 = vld [vmem:[#allocation5 + $0x4c] sm:$0xf]
    %v585 = vld [vmem:[#allocation5 + $0x50] sm:$0xf]
    %v586 = vld [vmem:[#allocation5 + $0x54] sm:$0xf]
    %v587 = vld [vmem:[#allocation5 + $0x58] sm:$0xf]
    %v588 = vld [vmem:[#allocation5 + $0x5c] sm:$0xf]
    %v589 = vld [vmem:[%s4] sm:$0x1]
    %v590 = vpack.c.bf16 %v552, %v551
    %v591 = vpack.c.bf16 %v554, %v553
    %v592 = vpack.c.bf16 %v556, %v555
    %v593 = vpack.c.bf16 %v558, %v557
    %v594 = vpack.c.bf16 %v560, %v559
    %v595 = vpack.c.bf16 %v562, %v561
    %v604 = vunpack.c.l.b16 %v565
    %v605 = vunpack.c.l.b16 %v566
    %v606 = vunpack.c.l.b16 %v567
    %v607 = vunpack.c.l.b16 %v568
    %v608 = vunpack.c.l.b16 %v569
    %v609 = vunpack.c.l.b16 %v570
    %v610 = vunpack.c.l.b16 %v571
    %v611 = vunpack.c.l.b16 %v572
    %v612 = vpack.c.b16 %v605, %v604
    %v613 = vpack.c.b16 %v607, %v606
    %v614 = vpack.c.b16 %v609, %v608
    %v615 = vpack.c.b16 %v611, %v610
    %vm620 = vcmask 523264
    %v622 = vsel %vm620, %v590, 0
    %v625 = vsel %vm620, %v591, 0
    %v628 = vsel %vm620, %v592, 0
    %v631 = vsel %vm620, %v593, 0
    %v634 = vsel %vm620, %v594, 0
    %v637 = vsel %vm620, %v595, 0
    %639 = vmatprep.subr.bf16.mxu0 0
    %640 = vmatpush1.bf16.msra.mxu0 0
    %641 = vmatprep.subr.bf16.mxu0 0
    %642 = vmatpush1.bf16.msra.mxu0 0
    %643 = vmatprep.subr.bf16.mxu0 0
    %644 = vmatpush1.bf16.msra.mxu0 0
    %645 = vmatprep.subr.bf16.mxu0 0
    %646 = vmatpush1.bf16.msra.mxu0 0
    %647 = vmatprep.subr.bf16.mxu0 0
    %648 = vmatpush1.bf16.msra.mxu0 %v615
    %649 = vmatprep.subr.bf16.mxu0 0
    %650 = vmatpush1.bf16.msra.mxu0 %v614
    %651 = vmatprep.subr.bf16.mxu0 0
    %652 = vmatpush1.bf16.msra.mxu0 %v613
    %653 = vmatprep.subr.bf16.mxu0 0
    %654 = vmatpush1.bf16.msra.mxu0 %v612
    %655 = vmatprep.subr.bf16.mxu0 0
    %656 = vmatpush2.bf16.msra.mxu0 0
    %657 = vmatprep.subr.bf16.mxu0 0
    %658 = vmatpush2.bf16.msra.mxu0 0
    %659 = vmatprep.subr.bf16.mxu0 0
    %660 = vmatpush2.bf16.msra.mxu0 0
    %661 = vmatprep.subr.bf16.mxu0 0
    %662 = vmatpush2.bf16.msra.mxu0 0
    %663 = vmatprep.subr.bf16.mxu0 0
    %664 = vmatpush2.bf16.msra.mxu0 0
    %665 = vmatprep.subr.bf16.mxu0 0
    %666 = vmatpush2.bf16.msra.mxu0 0
    %667 = vmatprep.subr.bf16.mxu0 0
    %668 = vmatpush2.bf16.msra.mxu0 0
    %669 = vmatprep.subr.bf16.mxu0 0
    %670 = vmatpush2.bf16.msra.mxu0 0
    %671 = vmatprep.mubr.bf16.mxu0 0
    %672 = vmatmul.mubr.bf16.gmra.mxu0 %v622
    %v673 = vpop.f32.mrf.mxu0
    %v674 = vadd.f32 0.0, %v673
    %v675 = vpop.f32.mrf.mxu0
    %v676 = vpop.f32.mrf.mxu0
    %v677 = vadd.f32 0.0, %v676
    %v678 = vpop.f32.mrf.mxu0
    %679 = vmatprep.mubr.bf16.mxu0 0
    %680 = vmatmul.mubr.bf16.gmra.mxu0 %v625
    %v681 = vpop.f32.mrf.mxu0
    %v682 = vadd.f32 0.0, %v681
    %v683 = vpop.f32.mrf.mxu0
    %v684 = vpop.f32.mrf.mxu0
    %v685 = vadd.f32 0.0, %v684
    %v686 = vpop.f32.mrf.mxu0
    %687 = vmatprep.mubr.bf16.mxu0 0
    %688 = vmatmul.mubr.bf16.gmra.mxu0 %v628
    %v689 = vpop.f32.mrf.mxu0
    %v690 = vadd.f32 0.0, %v689
    %v691 = vpop.f32.mrf.mxu0
    %v692 = vpop.f32.mrf.mxu0
    %v693 = vadd.f32 0.0, %v692
    %v694 = vpop.f32.mrf.mxu0
    %695 = vmatprep.mubr.bf16.mxu0 0
    %696 = vmatmul.mubr.bf16.gmra.mxu0 %v631
    %v697 = vpop.f32.mrf.mxu0
    %v698 = vadd.f32 0.0, %v697
    %v699 = vpop.f32.mrf.mxu0
    %v700 = vpop.f32.mrf.mxu0
    %v701 = vadd.f32 0.0, %v700
    %v702 = vpop.f32.mrf.mxu0
    %703 = vmatprep.mubr.bf16.mxu0 0
    %704 = vmatmul.mubr.bf16.gmra.mxu0 %v634
    %v705 = vpop.f32.mrf.mxu0
    %v706 = vadd.f32 0.0, %v705
    %v707 = vpop.f32.mrf.mxu0
    %v708 = vpop.f32.mrf.mxu0
    %v709 = vadd.f32 0.0, %v708
    %v710 = vpop.f32.mrf.mxu0
    %711 = vmatprep.mubr.bf16.mxu0 0
    %712 = vmatmul.mubr.bf16.gmra.mxu0 %v637
    %v713 = vpop.f32.mrf.mxu0
    %v714 = vadd.f32 0.0, %v713
    %v715 = vpop.f32.mrf.mxu0
    %v716 = vpop.f32.mrf.mxu0
    %v717 = vadd.f32 0.0, %v716
    %v718 = vpop.f32.mrf.mxu0
    %719 = vdwg.mxu0
    %v721 = vlaneseq
    %v722 = vshrl.u32 %v721, 7
    %v723 = vsub.s32 0, %v722
    %v724 = vrot.slane %v589, %v723
    %v726 = vadd.f32 %v724, %v674
    %v727 = vadd.f32 %v724, %v677
    %v728 = vadd.f32 %v724, %v682
    %v729 = vadd.f32 %v724, %v685
    %v730 = vadd.f32 %v724, %v690
    %v731 = vadd.f32 %v724, %v693
    %v732 = vadd.f32 %v724, %v698
    %v733 = vadd.f32 %v724, %v701
    %v734 = vadd.f32 %v724, %v706
    %v735 = vadd.f32 %v724, %v709
    %v736 = vadd.f32 %v724, %v714
    %v737 = vadd.f32 %v724, %v717
    %v738 = vpack.c.bf16 %v553, %v552
    %v739 = vpack.c.bf16 %v555, %v554
    %v740 = vpack.c.bf16 %v557, %v556
    %v741 = vpack.c.bf16 %v559, %v558
    %v742 = vpack.c.bf16 %v561, %v560
    %v743 = vpack.c.bf16 %v563, %v562
    %v752 = vunpack.c.l.b16 %v573
    %v753 = vunpack.c.l.b16 %v574
    %v754 = vunpack.c.l.b16 %v575
    %v755 = vunpack.c.l.b16 %v576
    %v756 = vunpack.c.l.b16 %v577
    %v757 = vunpack.c.l.b16 %v578
    %v758 = vunpack.c.l.b16 %v579
    %v759 = vunpack.c.l.b16 %v580
    %v760 = vpack.c.b16 %v753, %v752
    %v761 = vpack.c.b16 %v755, %v754
    %v762 = vpack.c.b16 %v757, %v756
    %v763 = vpack.c.b16 %v759, %v758
    %v769 = vsel %vm620, %v738, 0
    %v772 = vsel %vm620, %v739, 0
    %v775 = vsel %vm620, %v740, 0
    %v778 = vsel %vm620, %v741, 0
    %v781 = vsel %vm620, %v742, 0
    %v784 = vsel %vm620, %v743, 0
    %786 = vmatprep.subr.bf16.mxu0 0
    %787 = vmatpush1.bf16.msra.mxu0 0
    %788 = vmatprep.subr.bf16.mxu0 0
    %789 = vmatpush1.bf16.msra.mxu0 0
    %790 = vmatprep.subr.bf16.mxu0 0
    %791 = vmatpush1.bf16.msra.mxu0 0
    %792 = vmatprep.subr.bf16.mxu0 0
    %793 = vmatpush1.bf16.msra.mxu0 0
    %794 = vmatprep.subr.bf16.mxu0 0
    %795 = vmatpush1.bf16.msra.mxu0 %v763
    %796 = vmatprep.subr.bf16.mxu0 0
    %797 = vmatpush1.bf16.msra.mxu0 %v762
    %798 = vmatprep.subr.bf16.mxu0 0
    %799 = vmatpush1.bf16.msra.mxu0 %v761
    %800 = vmatprep.subr.bf16.mxu0 0
    %801 = vmatpush1.bf16.msra.mxu0 %v760
    %802 = vmatprep.subr.bf16.mxu0 0
    %803 = vmatpush2.bf16.msra.mxu0 0
    %804 = vmatprep.subr.bf16.mxu0 0
    %805 = vmatpush2.bf16.msra.mxu0 0
    %806 = vmatprep.subr.bf16.mxu0 0
    %807 = vmatpush2.bf16.msra.mxu0 0
    %808 = vmatprep.subr.bf16.mxu0 0
    %809 = vmatpush2.bf16.msra.mxu0 0
    %810 = vmatprep.subr.bf16.mxu0 0
    %811 = vmatpush2.bf16.msra.mxu0 0
    %812 = vmatprep.subr.bf16.mxu0 0
    %813 = vmatpush2.bf16.msra.mxu0 0
    %814 = vmatprep.subr.bf16.mxu0 0
    %815 = vmatpush2.bf16.msra.mxu0 0
    %816 = vmatprep.subr.bf16.mxu0 0
    %817 = vmatpush2.bf16.msra.mxu0 0
    %818 = vmatprep.mubr.bf16.mxu0 0
    %819 = vmatmul.mubr.bf16.gmra.mxu0 %v769
    %v820 = vpop.f32.mrf.mxu0
    %v821 = vadd.f32 0.0, %v820
    %v822 = vpop.f32.mrf.mxu0
    %v823 = vpop.f32.mrf.mxu0
    %v824 = vadd.f32 0.0, %v823
    %v825 = vpop.f32.mrf.mxu0
    %826 = vmatprep.mubr.bf16.mxu0 0
    %827 = vmatmul.mubr.bf16.gmra.mxu0 %v772
    %v828 = vpop.f32.mrf.mxu0
    %v829 = vadd.f32 0.0, %v828
    %v830 = vpop.f32.mrf.mxu0
    %v831 = vpop.f32.mrf.mxu0
    %v832 = vadd.f32 0.0, %v831
    %v833 = vpop.f32.mrf.mxu0
    %834 = vmatprep.mubr.bf16.mxu0 0
    %835 = vmatmul.mubr.bf16.gmra.mxu0 %v775
    %v836 = vpop.f32.mrf.mxu0
    %v837 = vadd.f32 0.0, %v836
    %v838 = vpop.f32.mrf.mxu0
    %v839 = vpop.f32.mrf.mxu0
    %v840 = vadd.f32 0.0, %v839
    %v841 = vpop.f32.mrf.mxu0
    %842 = vmatprep.mubr.bf16.mxu0 0
    %843 = vmatmul.mubr.bf16.gmra.mxu0 %v778
    %v844 = vpop.f32.mrf.mxu0
    %v845 = vadd.f32 0.0, %v844
    %v846 = vpop.f32.mrf.mxu0
    %v847 = vpop.f32.mrf.mxu0
    %v848 = vadd.f32 0.0, %v847
    %v849 = vpop.f32.mrf.mxu0
    %850 = vmatprep.mubr.bf16.mxu0 0
    %851 = vmatmul.mubr.bf16.gmra.mxu0 %v781
    %v852 = vpop.f32.mrf.mxu0
    %v853 = vadd.f32 0.0, %v852
    %v854 = vpop.f32.mrf.mxu0
    %v855 = vpop.f32.mrf.mxu0
    %v856 = vadd.f32 0.0, %v855
    %v857 = vpop.f32.mrf.mxu0
    %858 = vmatprep.mubr.bf16.mxu0 0
    %859 = vmatmul.mubr.bf16.gmra.mxu0 %v784
    %v860 = vpop.f32.mrf.mxu0
    %v861 = vadd.f32 0.0, %v860
    %v862 = vpop.f32.mrf.mxu0
    %v863 = vpop.f32.mrf.mxu0
    %v864 = vadd.f32 0.0, %v863
    %v865 = vpop.f32.mrf.mxu0
    %866 = vdwg.mxu0
    %v867 = vadd.f32 %v726, %v821
    %v868 = vadd.f32 %v727, %v824
    %v869 = vadd.f32 %v728, %v829
    %v870 = vadd.f32 %v729, %v832
    %v871 = vadd.f32 %v730, %v837
    %v872 = vadd.f32 %v731, %v840
    %v873 = vadd.f32 %v732, %v845
    %v874 = vadd.f32 %v733, %v848
    %v875 = vadd.f32 %v734, %v853
    %v876 = vadd.f32 %v735, %v856
    %v877 = vadd.f32 %v736, %v861
    %v878 = vadd.f32 %v737, %v864
    %v879 = vpack.c.bf16 %v564, %v563
    %v888 = vunpack.c.l.b16 %v581
    %v889 = vunpack.c.l.b16 %v582
    %v890 = vunpack.c.l.b16 %v583
    %v891 = vunpack.c.l.b16 %v584
    %v892 = vunpack.c.l.b16 %v585
    %v893 = vunpack.c.l.b16 %v586
    %v894 = vunpack.c.l.b16 %v587
    %v895 = vunpack.c.l.b16 %v588
    %v896 = vpack.c.b16 %v889, %v888
    %v897 = vpack.c.b16 %v891, %v890
    %v898 = vpack.c.b16 %v893, %v892
    %v899 = vpack.c.b16 %v895, %v894
    %v905 = vsel %vm620, %v879, 0
    %907 = vmatprep.subr.bf16.mxu0 0
    %908 = vmatpush1.bf16.msra.mxu0 0
    %909 = vmatprep.subr.bf16.mxu0 0
    %910 = vmatpush1.bf16.msra.mxu0 0
    %911 = vmatprep.subr.bf16.mxu0 0
    %912 = vmatpush1.bf16.msra.mxu0 0
    %913 = vmatprep.subr.bf16.mxu0 0
    %914 = vmatpush1.bf16.msra.mxu0 0
    %915 = vmatprep.subr.bf16.mxu0 0
    %916 = vmatpush1.bf16.msra.mxu0 %v899
    %917 = vmatprep.subr.bf16.mxu0 0
    %918 = vmatpush1.bf16.msra.mxu0 %v898
    %919 = vmatprep.subr.bf16.mxu0 0
    %920 = vmatpush1.bf16.msra.mxu0 %v897
    %921 = vmatprep.subr.bf16.mxu0 0
    %922 = vmatpush1.bf16.msra.mxu0 %v896
    %923 = vmatprep.subr.bf16.mxu0 0
    %924 = vmatpush2.bf16.msra.mxu0 0
    %925 = vmatprep.subr.bf16.mxu0 0
    %926 = vmatpush2.bf16.msra.mxu0 0
    %927 = vmatprep.subr.bf16.mxu0 0
    %928 = vmatpush2.bf16.msra.mxu0 0
    %929 = vmatprep.subr.bf16.mxu0 0
    %930 = vmatpush2.bf16.msra.mxu0 0
    %931 = vmatprep.subr.bf16.mxu0 0
    %932 = vmatpush2.bf16.msra.mxu0 0
    %933 = vmatprep.subr.bf16.mxu0 0
    %934 = vmatpush2.bf16.msra.mxu0 0
    %935 = vmatprep.subr.bf16.mxu0 0
    %936 = vmatpush2.bf16.msra.mxu0 0
    %937 = vmatprep.subr.bf16.mxu0 0
    %938 = vmatpush2.bf16.msra.mxu0 0
    %939 = vmatprep.mubr.bf16.mxu0 0
    %940 = vmatmul.mubr.bf16.gmra.mxu0 %v625
    %v941 = vpop.f32.mrf.mxu0
    %v942 = vadd.f32 0.0, %v941
    %v943 = vpop.f32.mrf.mxu0
    %v944 = vpop.f32.mrf.mxu0
    %v945 = vadd.f32 0.0, %v944
    %v946 = vpop.f32.mrf.mxu0
    %947 = vmatprep.mubr.bf16.mxu0 0
    %948 = vmatmul.mubr.bf16.gmra.mxu0 %v628
    %v949 = vpop.f32.mrf.mxu0
    %v950 = vadd.f32 0.0, %v949
    %v951 = vpop.f32.mrf.mxu0
    %v952 = vpop.f32.mrf.mxu0
    %v953 = vadd.f32 0.0, %v952
    %v954 = vpop.f32.mrf.mxu0
    %955 = vmatprep.mubr.bf16.mxu0 0
    %956 = vmatmul.mubr.bf16.gmra.mxu0 %v631
    %v957 = vpop.f32.mrf.mxu0
    %v958 = vadd.f32 0.0, %v957
    %v959 = vpop.f32.mrf.mxu0
    %v960 = vpop.f32.mrf.mxu0
    %v961 = vadd.f32 0.0, %v960
    %v962 = vpop.f32.mrf.mxu0
    %963 = vmatprep.mubr.bf16.mxu0 0
    %964 = vmatmul.mubr.bf16.gmra.mxu0 %v634
    %v965 = vpop.f32.mrf.mxu0
    %v966 = vadd.f32 0.0, %v965
    %v967 = vpop.f32.mrf.mxu0
    %v968 = vpop.f32.mrf.mxu0
    %v969 = vadd.f32 0.0, %v968
    %v970 = vpop.f32.mrf.mxu0
    %971 = vmatprep.mubr.bf16.mxu0 0
    %972 = vmatmul.mubr.bf16.gmra.mxu0 %v637
    %v973 = vpop.f32.mrf.mxu0
    %v974 = vadd.f32 0.0, %v973
    %v975 = vpop.f32.mrf.mxu0
    %v976 = vpop.f32.mrf.mxu0
    %v977 = vadd.f32 0.0, %v976
    %v978 = vpop.f32.mrf.mxu0
    %979 = vmatprep.mubr.bf16.mxu0 0
    %980 = vmatmul.mubr.bf16.gmra.mxu0 %v905
    %v981 = vpop.f32.mrf.mxu0
    %v982 = vadd.f32 0.0, %v981
    %v983 = vpop.f32.mrf.mxu0
    %v984 = vpop.f32.mrf.mxu0
    %v985 = vadd.f32 0.0, %v984
    %v986 = vpop.f32.mrf.mxu0
    %987 = vdwg.mxu0
    %v988 = vadd.f32 %v867, %v942
    %v989 = vadd.f32 %v868, %v945
    %v990 = vadd.f32 %v869, %v950
    %v991 = vadd.f32 %v870, %v953
    %v992 = vadd.f32 %v871, %v958
    %v993 = vadd.f32 %v872, %v961
    %v994 = vadd.f32 %v873, %v966
    %v995 = vadd.f32 %v874, %v969
    %v996 = vadd.f32 %v875, %v974
    %v997 = vadd.f32 %v876, %v977
    %v998 = vadd.f32 %v877, %v982
    %v999 = vadd.f32 %v878, %v985
    %v1000 = vmax.f32 %v988, 0.0
    %v1001 = vmax.f32 %v989, 0.0
    %v1002 = vmax.f32 %v990, 0.0
    %v1003 = vmax.f32 %v991, 0.0
    %v1004 = vmax.f32 %v992, 0.0
    %v1005 = vmax.f32 %v993, 0.0
    %v1006 = vmax.f32 %v994, 0.0
    %v1007 = vmax.f32 %v995, 0.0
    %v1008 = vmax.f32 %v996, 0.0
    %v1009 = vmax.f32 %v997, 0.0
    %v1010 = vmax.f32 %v998, 0.0
    %v1011 = vmax.f32 %v999, 0.0
    %v1012 = vmax.f32 %v1000, %v1001
    %1013 = vst.msk [vmem:[#allocation2] sm:$0xff] %vm620, %v1012
    %v1014 = vmax.f32 %v1002, %v1003
    %1015 = vst.msk [vmem:[#allocation2 + $0x8] sm:$0xff] %vm620, %v1014
    %v1016 = vmax.f32 %v1004, %v1005
    %1017 = vst.msk [vmem:[#allocation2 + $0x10] sm:$0xff] %vm620, %v1016
    %v1018 = vmax.f32 %v1006, %v1007
    %1019 = vst.msk [vmem:[#allocation2 + $0x18] sm:$0xff] %vm620, %v1018
    %v1020 = vmax.f32 %v1008, %v1009
    %1021 = vst.msk [vmem:[#allocation2 + $0x20] sm:$0xff] %vm620, %v1020
    %v1022 = vmax.f32 %v1010, %v1011
    %1023 = vst.msk [vmem:[#allocation2 + $0x28] sm:$0xff] %vm620, %v1022
    %v1024 = vld [vmem:[#allocation2] sm:$0xff]
    %v1025 = vld [vmem:[#allocation2 + $0x8] sm:$0xff]
    %v1026 = vld [vmem:[#allocation2 + $0x10] sm:$0xff]
    %v1027 = vld [vmem:[#allocation2 + $0x18] sm:$0xff]
    %v1028 = vld [vmem:[#allocation2 + $0x20] sm:$0xff]
    %v1029 = vld [vmem:[#allocation2 + $0x28] sm:$0xff]
    %v1030 = vpack.c.bf16 %v1025, %v1024
    %v1031 = vpack.c.bf16 %v1027, %v1026
    %v1032 = vpack.c.bf16 %v1029, %v1028
    %v1033 = vld [vmem:[%s5] sm:$0xff]
    %v1034 = vld [vmem:[%s5 + $0x8] sm:$0xff]
    %v1035 = vld [vmem:[%s5 + $0x10] sm:$0xff]
    %v1036 = vld [vmem:[%s5 + $0x18] sm:$0xff]
    %v1037 = vld [vmem:[%s5 + $0x20] sm:$0xff]
    %v1038 = vld [vmem:[%s5 + $0x28] sm:$0xff]
    %v1039 = vld [vmem:[%s5 + $0x30] sm:$0xff]
    %v1040 = vld [vmem:[%s5 + $0x38] sm:$0xff]
    %v1041 = vld [vmem:[%s5 + $0x40] sm:$0xff]
    %v1042 = vld [vmem:[%s5 + $0x48] sm:$0xff]
    %v1043 = vld [vmem:[%s5 + $0x50] sm:$0xff]
    %v1044 = vld [vmem:[%s5 + $0x58] sm:$0xff]
    %v1045 = vld [vmem:[%s5 + $0x60] sm:$0xff]
    %v1046 = vld [vmem:[%s5 + $0x68] sm:$0xff]
    %v1047 = vld [vmem:[%s5 + $0x70] sm:$0xff]
    %v1048 = vld [vmem:[%s5 + $0x78] sm:$0xff]
    %v1049 = vld [vmem:[%s7] sm:$0xf]
    %v1051 = vlaneseq
    %v1052 = vshrl.u32 %v1051, 7
    %v1053 = vsub.s32 0, %v1052
    %v1054 = vrot.slane %v1049, %v1053
    %v1055 = vlaneseq
    %v1056 = vshrl.u32 %v1055, 7
    %v1057 = vsub.s32 1, %v1056
    %v1058 = vrot.slane %v1049, %v1057
    %v1059 = vlaneseq
    %v1060 = vshrl.u32 %v1059, 7
    %v1061 = vsub.s32 2, %v1060
    %v1062 = vrot.slane %v1049, %v1061
    %v1063 = vlaneseq
    %v1064 = vshrl.u32 %v1063, 7
    %v1065 = vsub.s32 3, %v1064
    %v1066 = vrot.slane %v1049, %v1065
    %v1087 = vunpack.c.l.b16 %v1033
    %v1088 = vunpack.c.h.b16 %v1033
    %v1089 = vunpack.c.l.b16 %v1034
    %v1090 = vunpack.c.h.b16 %v1034
    %v1091 = vunpack.c.l.b16 %v1035
    %v1092 = vunpack.c.h.b16 %v1035
    %v1093 = vunpack.c.l.b16 %v1036
    %v1094 = vunpack.c.h.b16 %v1036
    %v1095 = vunpack.c.l.b16 %v1037
    %v1096 = vunpack.c.h.b16 %v1037
    %v1097 = vunpack.c.l.b16 %v1038
    %v1098 = vunpack.c.h.b16 %v1038
    %v1099 = vunpack.c.l.b16 %v1039
    %v1100 = vunpack.c.h.b16 %v1039
    %v1101 = vunpack.c.l.b16 %v1040
    %v1102 = vunpack.c.h.b16 %v1040
    %v1103 = vunpack.c.l.b16 %v1041
    %v1104 = vunpack.c.h.b16 %v1041
    %v1105 = vunpack.c.l.b16 %v1042
    %v1106 = vunpack.c.h.b16 %v1042
    %v1107 = vunpack.c.l.b16 %v1043
    %v1108 = vunpack.c.h.b16 %v1043
    %v1109 = vunpack.c.l.b16 %v1044
    %v1110 = vunpack.c.h.b16 %v1044
    %v1111 = vunpack.c.l.b16 %v1045
    %v1112 = vunpack.c.h.b16 %v1045
    %v1113 = vunpack.c.l.b16 %v1046
    %v1114 = vunpack.c.h.b16 %v1046
    %v1115 = vunpack.c.l.b16 %v1047
    %v1116 = vunpack.c.h.b16 %v1047
    %v1117 = vunpack.c.l.b16 %v1048
    %v1118 = vunpack.c.h.b16 %v1048
    %v1119 = vpack.c.b16 %v1091, %v1087
    %v1120 = vpack.c.b16 %v1092, %v1088
    %v1121 = vpack.c.b16 %v1093, %v1089
    %v1122 = vpack.c.b16 %v1094, %v1090
    %v1123 = vpack.c.b16 %v1099, %v1095
    %v1124 = vpack.c.b16 %v1100, %v1096
    %v1125 = vpack.c.b16 %v1101, %v1097
    %v1126 = vpack.c.b16 %v1102, %v1098
    %v1127 = vpack.c.b16 %v1107, %v1103
    %v1128 = vpack.c.b16 %v1108, %v1104
    %v1129 = vpack.c.b16 %v1109, %v1105
    %v1130 = vpack.c.b16 %v1110, %v1106
    %v1131 = vpack.c.b16 %v1115, %v1111
    %v1132 = vpack.c.b16 %v1116, %v1112
    %v1133 = vpack.c.b16 %v1117, %v1113
    %v1134 = vpack.c.b16 %v1118, %v1114
    %v1152 = vsel %vm620, %v1030, 0
    %v1155 = vsel %vm620, %v1031, 0
    %v1158 = vsel %vm620, %v1032, 0
    %1160 = vmatprep.subr.bf16.mxu0 0
    %1161 = vmatpush1.bf16.msra.mxu0 0
    %1162 = vmatprep.subr.bf16.mxu0 0
    %1163 = vmatpush1.bf16.msra.mxu0 0
    %1164 = vmatprep.subr.bf16.mxu0 0
    %1165 = vmatpush1.bf16.msra.mxu0 0
    %1166 = vmatprep.subr.bf16.mxu0 0
    %1167 = vmatpush1.bf16.msra.mxu0 0
    %1168 = vmatprep.subr.bf16.mxu0 %v1132
    %1169 = vmatpush1.bf16.msra.mxu0 %v1131
    %1170 = vmatprep.subr.bf16.mxu0 %v1128
    %1171 = vmatpush1.bf16.msra.mxu0 %v1127
    %1172 = vmatprep.subr.bf16.mxu0 %v1124
    %1173 = vmatpush1.bf16.msra.mxu0 %v1123
    %1174 = vmatprep.subr.bf16.mxu0 %v1120
    %1175 = vmatpush1.bf16.msra.mxu0 %v1119
    %1176 = vmatprep.subr.bf16.mxu0 0
    %1177 = vmatpush2.bf16.msra.mxu0 0
    %1178 = vmatprep.subr.bf16.mxu0 0
    %1179 = vmatpush2.bf16.msra.mxu0 0
    %1180 = vmatprep.subr.bf16.mxu0 0
    %1181 = vmatpush2.bf16.msra.mxu0 0
    %1182 = vmatprep.subr.bf16.mxu0 0
    %1183 = vmatpush2.bf16.msra.mxu0 0
    %1184 = vmatprep.subr.bf16.mxu0 0
    %1185 = vmatpush2.bf16.msra.mxu0 0
    %1186 = vmatprep.subr.bf16.mxu0 0
    %1187 = vmatpush2.bf16.msra.mxu0 0
    %1188 = vmatprep.subr.bf16.mxu0 0
    %1189 = vmatpush2.bf16.msra.mxu0 0
    %1190 = vmatprep.subr.bf16.mxu0 0
    %1191 = vmatpush2.bf16.msra.mxu0 0
    %1192 = vmatprep.mubr.bf16.mxu0 0
    %1193 = vmatmul.mubr.bf16.gmra.mxu0 %v1152
    %v1194 = vpop.f32.mrf.mxu0
    %v1195 = vadd.f32 %v1054, %v1194
    %v1196 = vpop.f32.mrf.mxu0
    %v1197 = vadd.f32 %v1058, %v1196
    %v1198 = vpop.f32.mrf.mxu0
    %v1199 = vadd.f32 %v1054, %v1198
    %v1200 = vpop.f32.mrf.mxu0
    %v1201 = vadd.f32 %v1058, %v1200
    %1202 = vmatprep.mubr.bf16.mxu0 0
    %1203 = vmatmul.mubr.bf16.gmra.mxu0 %v1155
    %v1204 = vpop.f32.mrf.mxu0
    %v1205 = vadd.f32 %v1054, %v1204
    %v1206 = vpop.f32.mrf.mxu0
    %v1207 = vadd.f32 %v1058, %v1206
    %v1208 = vpop.f32.mrf.mxu0
    %v1209 = vadd.f32 %v1054, %v1208
    %v1210 = vpop.f32.mrf.mxu0
    %v1211 = vadd.f32 %v1058, %v1210
    %1212 = vmatprep.mubr.bf16.mxu0 0
    %1213 = vmatmul.mubr.bf16.gmra.mxu0 %v1158
    %v1214 = vpop.f32.mrf.mxu0
    %v1215 = vadd.f32 %v1054, %v1214
    %v1216 = vpop.f32.mrf.mxu0
    %v1217 = vadd.f32 %v1058, %v1216
    %v1218 = vpop.f32.mrf.mxu0
    %v1219 = vadd.f32 %v1054, %v1218
    %v1220 = vpop.f32.mrf.mxu0
    %v1221 = vadd.f32 %v1058, %v1220
    %1222 = vdwg.mxu0
    %1223 = vmatprep.subr.bf16.mxu0 0
    %1224 = vmatpush1.bf16.msra.mxu0 0
    %1225 = vmatprep.subr.bf16.mxu0 0
    %1226 = vmatpush1.bf16.msra.mxu0 0
    %1227 = vmatprep.subr.bf16.mxu0 0
    %1228 = vmatpush1.bf16.msra.mxu0 0
    %1229 = vmatprep.subr.bf16.mxu0 0
    %1230 = vmatpush1.bf16.msra.mxu0 0
    %1231 = vmatprep.subr.bf16.mxu0 %v1134
    %1232 = vmatpush1.bf16.msra.mxu0 %v1133
    %1233 = vmatprep.subr.bf16.mxu0 %v1130
    %1234 = vmatpush1.bf16.msra.mxu0 %v1129
    %1235 = vmatprep.subr.bf16.mxu0 %v1126
    %1236 = vmatpush1.bf16.msra.mxu0 %v1125
    %1237 = vmatprep.subr.bf16.mxu0 %v1122
    %1238 = vmatpush1.bf16.msra.mxu0 %v1121
    %1239 = vmatprep.subr.bf16.mxu0 0
    %1240 = vmatpush2.bf16.msra.mxu0 0
    %1241 = vmatprep.subr.bf16.mxu0 0
    %1242 = vmatpush2.bf16.msra.mxu0 0
    %1243 = vmatprep.subr.bf16.mxu0 0
    %1244 = vmatpush2.bf16.msra.mxu0 0
    %1245 = vmatprep.subr.bf16.mxu0 0
    %1246 = vmatpush2.bf16.msra.mxu0 0
    %1247 = vmatprep.subr.bf16.mxu0 0
    %1248 = vmatpush2.bf16.msra.mxu0 0
    %1249 = vmatprep.subr.bf16.mxu0 0
    %1250 = vmatpush2.bf16.msra.mxu0 0
    %1251 = vmatprep.subr.bf16.mxu0 0
    %1252 = vmatpush2.bf16.msra.mxu0 0
    %1253 = vmatprep.subr.bf16.mxu0 0
    %1254 = vmatpush2.bf16.msra.mxu0 0
    %1255 = vmatprep.mubr.bf16.mxu0 0
    %1256 = vmatmul.mubr.bf16.gmra.mxu0 %v1152
    %v1257 = vpop.f32.mrf.mxu0
    %v1258 = vadd.f32 %v1062, %v1257
    %v1259 = vpop.f32.mrf.mxu0
    %v1260 = vadd.f32 %v1066, %v1259
    %v1261 = vpop.f32.mrf.mxu0
    %v1262 = vadd.f32 %v1062, %v1261
    %v1263 = vpop.f32.mrf.mxu0
    %v1264 = vadd.f32 %v1066, %v1263
    %1265 = vmatprep.mubr.bf16.mxu0 0
    %1266 = vmatmul.mubr.bf16.gmra.mxu0 %v1155
    %v1267 = vpop.f32.mrf.mxu0
    %v1268 = vadd.f32 %v1062, %v1267
    %v1269 = vpop.f32.mrf.mxu0
    %v1270 = vadd.f32 %v1066, %v1269
    %v1271 = vpop.f32.mrf.mxu0
    %v1272 = vadd.f32 %v1062, %v1271
    %v1273 = vpop.f32.mrf.mxu0
    %v1274 = vadd.f32 %v1066, %v1273
    %1275 = vmatprep.mubr.bf16.mxu0 0
    %1276 = vmatmul.mubr.bf16.gmra.mxu0 %v1158
    %v1277 = vpop.f32.mrf.mxu0
    %v1278 = vadd.f32 %v1062, %v1277
    %v1279 = vpop.f32.mrf.mxu0
    %v1280 = vadd.f32 %v1066, %v1279
    %v1281 = vpop.f32.mrf.mxu0
    %v1282 = vadd.f32 %v1062, %v1281
    %v1283 = vpop.f32.mrf.mxu0
    %v1284 = vadd.f32 %v1066, %v1283
    %1285 = vdwg.mxu0
    %v1286 = vld [vmem:[#allocation7] sm:$0xff]
    %v1287 = vld [vmem:[#allocation7 + $0x8] sm:$0xff]
    %v1288 = vld [vmem:[#allocation7 + $0x10] sm:$0xff]
    %v1289 = vld [vmem:[#allocation7 + $0x18] sm:$0xff]
    %v1290 = vld [vmem:[#allocation7 + $0x20] sm:$0xff]
    %v1291 = vld [vmem:[#allocation7 + $0x28] sm:$0xff]
    %v1292 = vld [vmem:[#allocation7 + $0x30] sm:$0xff]
    %v1293 = vld [vmem:[#allocation7 + $0x38] sm:$0xff]
    %v1294 = vld [vmem:[#allocation7 + $0x40] sm:$0xff]
    %v1295 = vld [vmem:[#allocation7 + $0x48] sm:$0xff]
    %v1296 = vld [vmem:[#allocation7 + $0x50] sm:$0xff]
    %v1297 = vld [vmem:[#allocation7 + $0x58] sm:$0xff]
    %v1298 = vld [vmem:[#allocation7 + $0x60] sm:$0xff]
    %v1299 = vld [vmem:[#allocation7 + $0x68] sm:$0xff]
    %v1300 = vld [vmem:[#allocation7 + $0x70] sm:$0xff]
    %v1301 = vld [vmem:[#allocation7 + $0x78] sm:$0xff]
    %v1302 = vld [vmem:[%s10] sm:$0xf]
    %v1304 = vlaneseq
    %v1305 = vshrl.u32 %v1304, 7
    %v1306 = vsub.s32 0, %v1305
    %v1307 = vrot.slane %v1302, %v1306
    %v1308 = vlaneseq
    %v1309 = vshrl.u32 %v1308, 7
    %v1310 = vsub.s32 1, %v1309
    %v1311 = vrot.slane %v1302, %v1310
    %v1312 = vlaneseq
    %v1313 = vshrl.u32 %v1312, 7
    %v1314 = vsub.s32 2, %v1313
    %v1315 = vrot.slane %v1302, %v1314
    %v1316 = vlaneseq
    %v1317 = vshrl.u32 %v1316, 7
    %v1318 = vsub.s32 3, %v1317
    %v1319 = vrot.slane %v1302, %v1318
    %v1340 = vunpack.c.l.b16 %v1286
    %v1341 = vunpack.c.h.b16 %v1286
    %v1342 = vunpack.c.l.b16 %v1287
    %v1343 = vunpack.c.h.b16 %v1287
    %v1344 = vunpack.c.l.b16 %v1288
    %v1345 = vunpack.c.h.b16 %v1288
    %v1346 = vunpack.c.l.b16 %v1289
    %v1347 = vunpack.c.h.b16 %v1289
    %v1348 = vunpack.c.l.b16 %v1290
    %v1349 = vunpack.c.h.b16 %v1290
    %v1350 = vunpack.c.l.b16 %v1291
    %v1351 = vunpack.c.h.b16 %v1291
    %v1352 = vunpack.c.l.b16 %v1292
    %v1353 = vunpack.c.h.b16 %v1292
    %v1354 = vunpack.c.l.b16 %v1293
    %v1355 = vunpack.c.h.b16 %v1293
    %v1356 = vunpack.c.l.b16 %v1294
    %v1357 = vunpack.c.h.b16 %v1294
    %v1358 = vunpack.c.l.b16 %v1295
    %v1359 = vunpack.c.h.b16 %v1295
    %v1360 = vunpack.c.l.b16 %v1296
    %v1361 = vunpack.c.h.b16 %v1296
    %v1362 = vunpack.c.l.b16 %v1297
    %v1363 = vunpack.c.h.b16 %v1297
    %v1364 = vunpack.c.l.b16 %v1298
    %v1365 = vunpack.c.h.b16 %v1298
    %v1366 = vunpack.c.l.b16 %v1299
    %v1367 = vunpack.c.h.b16 %v1299
    %v1368 = vunpack.c.l.b16 %v1300
    %v1369 = vunpack.c.h.b16 %v1300
    %v1370 = vunpack.c.l.b16 %v1301
    %v1371 = vunpack.c.h.b16 %v1301
    %v1372 = vpack.c.b16 %v1344, %v1340
    %v1373 = vpack.c.b16 %v1345, %v1341
    %v1374 = vpack.c.b16 %v1346, %v1342
    %v1375 = vpack.c.b16 %v1347, %v1343
    %v1376 = vpack.c.b16 %v1352, %v1348
    %v1377 = vpack.c.b16 %v1353, %v1349
    %v1378 = vpack.c.b16 %v1354, %v1350
    %v1379 = vpack.c.b16 %v1355, %v1351
    %v1380 = vpack.c.b16 %v1360, %v1356
    %v1381 = vpack.c.b16 %v1361, %v1357
    %v1382 = vpack.c.b16 %v1362, %v1358
    %v1383 = vpack.c.b16 %v1363, %v1359
    %v1384 = vpack.c.b16 %v1368, %v1364
    %v1385 = vpack.c.b16 %v1369, %v1365
    %v1386 = vpack.c.b16 %v1370, %v1366
    %v1387 = vpack.c.b16 %v1371, %v1367
    %1404 = vmatprep.subr.bf16.mxu0 0
    %1405 = vmatpush1.bf16.msra.mxu0 0
    %1406 = vmatprep.subr.bf16.mxu0 0
    %1407 = vmatpush1.bf16.msra.mxu0 0
    %1408 = vmatprep.subr.bf16.mxu0 0
    %1409 = vmatpush1.bf16.msra.mxu0 0
    %1410 = vmatprep.subr.bf16.mxu0 0
    %1411 = vmatpush1.bf16.msra.mxu0 0
    %1412 = vmatprep.subr.bf16.mxu0 %v1385
    %1413 = vmatpush1.bf16.msra.mxu0 %v1384
    %1414 = vmatprep.subr.bf16.mxu0 %v1381
    %1415 = vmatpush1.bf16.msra.mxu0 %v1380
    %1416 = vmatprep.subr.bf16.mxu0 %v1377
    %1417 = vmatpush1.bf16.msra.mxu0 %v1376
    %1418 = vmatprep.subr.bf16.mxu0 %v1373
    %1419 = vmatpush1.bf16.msra.mxu0 %v1372
    %1420 = vmatprep.subr.bf16.mxu0 0
    %1421 = vmatpush2.bf16.msra.mxu0 0
    %1422 = vmatprep.subr.bf16.mxu0 0
    %1423 = vmatpush2.bf16.msra.mxu0 0
    %1424 = vmatprep.subr.bf16.mxu0 0
    %1425 = vmatpush2.bf16.msra.mxu0 0
    %1426 = vmatprep.subr.bf16.mxu0 0
    %1427 = vmatpush2.bf16.msra.mxu0 0
    %1428 = vmatprep.subr.bf16.mxu0 0
    %1429 = vmatpush2.bf16.msra.mxu0 0
    %1430 = vmatprep.subr.bf16.mxu0 0
    %1431 = vmatpush2.bf16.msra.mxu0 0
    %1432 = vmatprep.subr.bf16.mxu0 0
    %1433 = vmatpush2.bf16.msra.mxu0 0
    %1434 = vmatprep.subr.bf16.mxu0 0
    %1435 = vmatpush2.bf16.msra.mxu0 0
    %1436 = vmatprep.mubr.bf16.mxu0 0
    %1437 = vmatmul.mubr.bf16.gmra.mxu0 %v1152
    %v1438 = vpop.f32.mrf.mxu0
    %v1439 = vadd.f32 %v1307, %v1438
    %v1440 = vpop.f32.mrf.mxu0
    %v1441 = vadd.f32 %v1311, %v1440
    %v1442 = vpop.f32.mrf.mxu0
    %v1443 = vadd.f32 %v1307, %v1442
    %v1444 = vpop.f32.mrf.mxu0
    %v1445 = vadd.f32 %v1311, %v1444
    %1446 = vmatprep.mubr.bf16.mxu0 0
    %1447 = vmatmul.mubr.bf16.gmra.mxu0 %v1155
    %v1448 = vpop.f32.mrf.mxu0
    %v1449 = vadd.f32 %v1307, %v1448
    %v1450 = vpop.f32.mrf.mxu0
    %v1451 = vadd.f32 %v1311, %v1450
    %v1452 = vpop.f32.mrf.mxu0
    %v1453 = vadd.f32 %v1307, %v1452
    %v1454 = vpop.f32.mrf.mxu0
    %v1455 = vadd.f32 %v1311, %v1454
    %1456 = vmatprep.mubr.bf16.mxu0 0
    %1457 = vmatmul.mubr.bf16.gmra.mxu0 %v1158
    %v1458 = vpop.f32.mrf.mxu0
    %v1459 = vadd.f32 %v1307, %v1458
    %v1460 = vpop.f32.mrf.mxu0
    %v1461 = vadd.f32 %v1311, %v1460
    %v1462 = vpop.f32.mrf.mxu0
    %v1463 = vadd.f32 %v1307, %v1462
    %v1464 = vpop.f32.mrf.mxu0
    %v1465 = vadd.f32 %v1311, %v1464
    %1466 = vdwg.mxu0
    %1467 = vmatprep.subr.bf16.mxu0 0
    %1468 = vmatpush1.bf16.msra.mxu0 0
    %1469 = vmatprep.subr.bf16.mxu0 0
    %1470 = vmatpush1.bf16.msra.mxu0 0
    %1471 = vmatprep.subr.bf16.mxu0 0
    %1472 = vmatpush1.bf16.msra.mxu0 0
    %1473 = vmatprep.subr.bf16.mxu0 0
    %1474 = vmatpush1.bf16.msra.mxu0 0
    %1475 = vmatprep.subr.bf16.mxu0 %v1387
    %1476 = vmatpush1.bf16.msra.mxu0 %v1386
    %1477 = vmatprep.subr.bf16.mxu0 %v1383
    %1478 = vmatpush1.bf16.msra.mxu0 %v1382
    %1479 = vmatprep.subr.bf16.mxu0 %v1379
    %1480 = vmatpush1.bf16.msra.mxu0 %v1378
    %1481 = vmatprep.subr.bf16.mxu0 %v1375
    %1482 = vmatpush1.bf16.msra.mxu0 %v1374
    %1483 = vmatprep.subr.bf16.mxu0 0
    %1484 = vmatpush2.bf16.msra.mxu0 0
    %1485 = vmatprep.subr.bf16.mxu0 0
    %1486 = vmatpush2.bf16.msra.mxu0 0
    %1487 = vmatprep.subr.bf16.mxu0 0
    %1488 = vmatpush2.bf16.msra.mxu0 0
    %1489 = vmatprep.subr.bf16.mxu0 0
    %1490 = vmatpush2.bf16.msra.mxu0 0
    %1491 = vmatprep.subr.bf16.mxu0 0
    %1492 = vmatpush2.bf16.msra.mxu0 0
    %1493 = vmatprep.subr.bf16.mxu0 0
    %1494 = vmatpush2.bf16.msra.mxu0 0
    %1495 = vmatprep.subr.bf16.mxu0 0
    %1496 = vmatpush2.bf16.msra.mxu0 0
    %1497 = vmatprep.subr.bf16.mxu0 0
    %1498 = vmatpush2.bf16.msra.mxu0 0
    %1499 = vmatprep.mubr.bf16.mxu0 0
    %1500 = vmatmul.mubr.bf16.gmra.mxu0 %v1152
    %v1501 = vpop.f32.mrf.mxu0
    %v1502 = vadd.f32 %v1315, %v1501
    %v1503 = vpop.f32.mrf.mxu0
    %v1504 = vadd.f32 %v1319, %v1503
    %v1505 = vpop.f32.mrf.mxu0
    %v1506 = vadd.f32 %v1315, %v1505
    %v1507 = vpop.f32.mrf.mxu0
    %v1508 = vadd.f32 %v1319, %v1507
    %1509 = vmatprep.mubr.bf16.mxu0 0
    %1510 = vmatmul.mubr.bf16.gmra.mxu0 %v1155
    %v1511 = vpop.f32.mrf.mxu0
    %v1512 = vadd.f32 %v1315, %v1511
    %v1513 = vpop.f32.mrf.mxu0
    %v1514 = vadd.f32 %v1319, %v1513
    %v1515 = vpop.f32.mrf.mxu0
    %v1516 = vadd.f32 %v1315, %v1515
    %v1517 = vpop.f32.mrf.mxu0
    %v1518 = vadd.f32 %v1319, %v1517
    %1519 = vmatprep.mubr.bf16.mxu0 0
    %1520 = vmatmul.mubr.bf16.gmra.mxu0 %v1158
    %v1521 = vpop.f32.mrf.mxu0
    %v1522 = vadd.f32 %v1315, %v1521
    %v1523 = vpop.f32.mrf.mxu0
    %v1524 = vadd.f32 %v1319, %v1523
    %v1525 = vpop.f32.mrf.mxu0
    %v1526 = vadd.f32 %v1315, %v1525
    %v1527 = vpop.f32.mrf.mxu0
    %v1528 = vadd.f32 %v1319, %v1527
    %1529 = vdwg.mxu0
    %v1530 = vld [vmem:[%s6] sm:$0xff]
    %v1531 = vld [vmem:[%s6 + $0x8] sm:$0xff]
    %v1532 = vld [vmem:[%s6 + $0x10] sm:$0xff]
    %v1533 = vld [vmem:[%s6 + $0x18] sm:$0xff]
    %v1534 = vld [vmem:[%s6 + $0x20] sm:$0xff]
    %v1535 = vld [vmem:[%s6 + $0x28] sm:$0xff]
    %v1536 = vld [vmem:[%s6 + $0x30] sm:$0xff]
    %v1537 = vld [vmem:[%s6 + $0x38] sm:$0xff]
    %v1538 = vld [vmem:[%s6 + $0x40] sm:$0xff]
    %v1539 = vld [vmem:[%s6 + $0x48] sm:$0xff]
    %v1540 = vld [vmem:[%s6 + $0x50] sm:$0xff]
    %v1541 = vld [vmem:[%s6 + $0x58] sm:$0xff]
    %v1542 = vld [vmem:[%s6 + $0x60] sm:$0xff]
    %v1543 = vld [vmem:[%s6 + $0x68] sm:$0xff]
    %v1544 = vld [vmem:[%s6 + $0x70] sm:$0xff]
    %v1545 = vld [vmem:[%s6 + $0x78] sm:$0xff]
    %v1546 = vld [vmem:[%s6 + $0x80] sm:$0xff]
    %v1547 = vld [vmem:[%s6 + $0x88] sm:$0xff]
    %v1548 = vld [vmem:[%s6 + $0x90] sm:$0xff]
    %v1549 = vld [vmem:[%s6 + $0x98] sm:$0xff]
    %v1550 = vld [vmem:[%s6 + $0xa0] sm:$0xff]
    %v1551 = vld [vmem:[%s6 + $0xa8] sm:$0xff]
    %v1552 = vld [vmem:[%s6 + $0xb0] sm:$0xff]
    %v1553 = vld [vmem:[%s6 + $0xb8] sm:$0xff]
    %v1554 = vld [vmem:[%s6 + $0xc0] sm:$0xff]
    %v1555 = vld [vmem:[%s6 + $0xc8] sm:$0xff]
    %v1556 = vld [vmem:[%s6 + $0xd0] sm:$0xff]
    %v1557 = vld [vmem:[%s6 + $0xd8] sm:$0xff]
    %v1558 = vld [vmem:[%s6 + $0xe0] sm:$0xff]
    %v1559 = vld [vmem:[%s6 + $0xe8] sm:$0xff]
    %v1560 = vld [vmem:[%s6 + $0xf0] sm:$0xff]
    %v1561 = vld [vmem:[%s6 + $0xf8] sm:$0xff]
    %v1562 = vld [vmem:[#allocation9] sm:$0xff]
    %v1563 = vld [vmem:[#allocation9 + $0x8] sm:$0xff]
    %v1564 = vld [vmem:[#allocation9 + $0x10] sm:$0xff]
    %v1565 = vld [vmem:[#allocation9 + $0x18] sm:$0xff]
    %v1566 = vld [vmem:[#allocation9 + $0x20] sm:$0xff]
    %v1567 = vld [vmem:[#allocation9 + $0x28] sm:$0xff]
    %v1568 = vld [vmem:[#allocation9 + $0x30] sm:$0xff]
    %v1569 = vld [vmem:[#allocation9 + $0x38] sm:$0xff]
    %v1570 = vld [vmem:[#allocation9 + $0x40] sm:$0xff]
    %v1571 = vld [vmem:[#allocation9 + $0x48] sm:$0xff]
    %v1572 = vld [vmem:[#allocation9 + $0x50] sm:$0xff]
    %v1573 = vld [vmem:[#allocation9 + $0x58] sm:$0xff]
    %v1574 = vld [vmem:[#allocation9 + $0x60] sm:$0xff]
    %v1575 = vld [vmem:[#allocation9 + $0x68] sm:$0xff]
    %v1576 = vld [vmem:[#allocation9 + $0x70] sm:$0xff]
    %v1577 = vld [vmem:[#allocation9 + $0x78] sm:$0xff]
    %v1578 = vld [vmem:[#allocation9 + $0x80] sm:$0xff]
    %v1579 = vld [vmem:[#allocation9 + $0x88] sm:$0xff]
    %v1580 = vld [vmem:[#allocation9 + $0x90] sm:$0xff]
    %v1581 = vld [vmem:[#allocation9 + $0x98] sm:$0xff]
    %v1582 = vld [vmem:[#allocation9 + $0xa0] sm:$0xff]
    %v1583 = vld [vmem:[#allocation9 + $0xa8] sm:$0xff]
    %v1584 = vld [vmem:[#allocation9 + $0xb0] sm:$0xff]
    %v1585 = vld [vmem:[#allocation9 + $0xb8] sm:$0xff]
    %v1586 = vld [vmem:[#allocation9 + $0xc0] sm:$0xff]
    %v1587 = vld [vmem:[#allocation9 + $0xc8] sm:$0xff]
    %v1588 = vld [vmem:[#allocation9 + $0xd0] sm:$0xff]
    %v1589 = vld [vmem:[#allocation9 + $0xd8] sm:$0xff]
    %v1590 = vld [vmem:[#allocation9 + $0xe0] sm:$0xff]
    %v1591 = vld [vmem:[#allocation9 + $0xe8] sm:$0xff]
    %v1592 = vld [vmem:[#allocation9 + $0xf0] sm:$0xff]
    %v1593 = vld [vmem:[#allocation9 + $0xf8] sm:$0xff]
    %v1594 = vld [vmem:[#allocation13] sm:$0xff]
    %v1595 = vld [vmem:[#allocation13 + $0x8] sm:$0xff]
    %v1596 = vld [vmem:[#allocation13 + $0x10] sm:$0xff]
    %v1597 = vld [vmem:[#allocation13 + $0x18] sm:$0xff]
    %v1598 = vld [vmem:[#allocation13 + $0x20] sm:$0xff]
    %v1599 = vld [vmem:[#allocation13 + $0x28] sm:$0xff]
    %v1600 = vld [vmem:[#allocation13 + $0x30] sm:$0xff]
    %v1601 = vld [vmem:[#allocation13 + $0x38] sm:$0xff]
    %v1602 = vld [vmem:[#allocation13 + $0x40] sm:$0xff]
    %v1603 = vld [vmem:[#allocation13 + $0x48] sm:$0xff]
    %v1604 = vld [vmem:[#allocation13 + $0x50] sm:$0xff]
    %v1605 = vld [vmem:[#allocation13 + $0x58] sm:$0xff]
    %v1606 = vld [vmem:[#allocation13 + $0x60] sm:$0xff]
    %v1607 = vld [vmem:[#allocation13 + $0x68] sm:$0xff]
    %v1608 = vld [vmem:[#allocation13 + $0x70] sm:$0xff]
    %v1609 = vld [vmem:[#allocation13 + $0x78] sm:$0xff]
    %v1610 = vld [vmem:[#allocation13 + $0x80] sm:$0xff]
    %v1611 = vld [vmem:[#allocation13 + $0x88] sm:$0xff]
    %v1612 = vld [vmem:[#allocation13 + $0x90] sm:$0xff]
    %v1613 = vld [vmem:[#allocation13 + $0x98] sm:$0xff]
    %v1614 = vld [vmem:[#allocation13 + $0xa0] sm:$0xff]
    %v1615 = vld [vmem:[#allocation13 + $0xa8] sm:$0xff]
    %v1616 = vld [vmem:[#allocation13 + $0xb0] sm:$0xff]
    %v1617 = vld [vmem:[#allocation13 + $0xb8] sm:$0xff]
    %v1618 = vld [vmem:[#allocation13 + $0xc0] sm:$0xff]
    %v1619 = vld [vmem:[#allocation13 + $0xc8] sm:$0xff]
    %v1620 = vld [vmem:[#allocation13 + $0xd0] sm:$0xff]
    %v1621 = vld [vmem:[#allocation13 + $0xd8] sm:$0xff]
    %v1622 = vld [vmem:[#allocation13 + $0xe0] sm:$0xff]
    %v1623 = vld [vmem:[#allocation13 + $0xe8] sm:$0xff]
    %v1624 = vld [vmem:[#allocation13 + $0xf0] sm:$0xff]
    %v1625 = vld [vmem:[#allocation13 + $0xf8] sm:$0xff]
    %v1658 = vunpack.c.l.b16 %v1530
    %v1659 = vunpack.c.h.b16 %v1530
    %v1660 = vunpack.c.l.b16 %v1531
    %v1661 = vunpack.c.h.b16 %v1531
    %v1662 = vunpack.c.l.b16 %v1532
    %v1663 = vunpack.c.h.b16 %v1532
    %v1664 = vunpack.c.l.b16 %v1533
    %v1665 = vunpack.c.h.b16 %v1533
    %v1666 = vunpack.c.l.b16 %v1534
    %v1667 = vunpack.c.h.b16 %v1534
    %v1668 = vunpack.c.l.b16 %v1535
    %v1669 = vunpack.c.h.b16 %v1535
    %v1670 = vunpack.c.l.b16 %v1536
    %v1671 = vunpack.c.h.b16 %v1536
    %v1672 = vunpack.c.l.b16 %v1537
    %v1673 = vunpack.c.h.b16 %v1537
    %v1674 = vunpack.c.l.b16 %v1538
    %v1675 = vunpack.c.h.b16 %v1538
    %v1676 = vunpack.c.l.b16 %v1539
    %v1677 = vunpack.c.h.b16 %v1539
    %v1678 = vunpack.c.l.b16 %v1540
    %v1679 = vunpack.c.h.b16 %v1540
    %v1680 = vunpack.c.l.b16 %v1541
    %v1681 = vunpack.c.h.b16 %v1541
    %v1682 = vunpack.c.l.b16 %v1542
    %v1683 = vunpack.c.h.b16 %v1542
    %v1684 = vunpack.c.l.b16 %v1543
    %v1685 = vunpack.c.h.b16 %v1543
    %v1686 = vunpack.c.l.b16 %v1544
    %v1687 = vunpack.c.h.b16 %v1544
    %v1688 = vunpack.c.l.b16 %v1545
    %v1689 = vunpack.c.h.b16 %v1545
    %v1690 = vunpack.c.l.b16 %v1546
    %v1691 = vunpack.c.h.b16 %v1546
    %v1692 = vunpack.c.l.b16 %v1547
    %v1693 = vunpack.c.h.b16 %v1547
    %v1694 = vunpack.c.l.b16 %v1548
    %v1695 = vunpack.c.h.b16 %v1548
    %v1696 = vunpack.c.l.b16 %v1549
    %v1697 = vunpack.c.h.b16 %v1549
    %v1698 = vunpack.c.l.b16 %v1550
    %v1699 = vunpack.c.h.b16 %v1550
    %v1700 = vunpack.c.l.b16 %v1551
    %v1701 = vunpack.c.h.b16 %v1551
    %v1702 = vunpack.c.l.b16 %v1552
    %v1703 = vunpack.c.h.b16 %v1552
    %v1704 = vunpack.c.l.b16 %v1553
    %v1705 = vunpack.c.h.b16 %v1553
    %v1706 = vunpack.c.l.b16 %v1554
    %v1707 = vunpack.c.h.b16 %v1554
    %v1708 = vunpack.c.l.b16 %v1555
    %v1709 = vunpack.c.h.b16 %v1555
    %v1710 = vunpack.c.l.b16 %v1556
    %v1711 = vunpack.c.h.b16 %v1556
    %v1712 = vunpack.c.l.b16 %v1557
    %v1713 = vunpack.c.h.b16 %v1557
    %v1714 = vunpack.c.l.b16 %v1558
    %v1715 = vunpack.c.h.b16 %v1558
    %v1716 = vunpack.c.l.b16 %v1559
    %v1717 = vunpack.c.h.b16 %v1559
    %v1718 = vunpack.c.l.b16 %v1560
    %v1719 = vunpack.c.h.b16 %v1560
    %v1720 = vunpack.c.l.b16 %v1561
    %v1721 = vunpack.c.h.b16 %v1561
    %v1722 = vpack.c.b16 %v1662, %v1658
    %v1723 = vpack.c.b16 %v1663, %v1659
    %v1724 = vpack.c.b16 %v1664, %v1660
    %v1725 = vpack.c.b16 %v1665, %v1661
    %v1726 = vpack.c.b16 %v1670, %v1666
    %v1727 = vpack.c.b16 %v1671, %v1667
    %v1728 = vpack.c.b16 %v1672, %v1668
    %v1729 = vpack.c.b16 %v1673, %v1669
    %v1730 = vpack.c.b16 %v1678, %v1674
    %v1731 = vpack.c.b16 %v1679, %v1675
    %v1732 = vpack.c.b16 %v1680, %v1676
    %v1733 = vpack.c.b16 %v1681, %v1677
    %v1734 = vpack.c.b16 %v1686, %v1682
    %v1735 = vpack.c.b16 %v1687, %v1683
    %v1736 = vpack.c.b16 %v1688, %v1684
    %v1737 = vpack.c.b16 %v1689, %v1685
    %v1738 = vpack.c.b16 %v1694, %v1690
    %v1739 = vpack.c.b16 %v1695, %v1691
    %v1740 = vpack.c.b16 %v1696, %v1692
    %v1741 = vpack.c.b16 %v1697, %v1693
    %v1742 = vpack.c.b16 %v1702, %v1698
    %v1743 = vpack.c.b16 %v1703, %v1699
    %v1744 = vpack.c.b16 %v1704, %v1700
    %v1745 = vpack.c.b16 %v1705, %v1701
    %v1746 = vpack.c.b16 %v1710, %v1706
    %v1747 = vpack.c.b16 %v1711, %v1707
    %v1748 = vpack.c.b16 %v1712, %v1708
    %v1749 = vpack.c.b16 %v1713, %v1709
    %v1750 = vpack.c.b16 %v1718, %v1714
    %v1751 = vpack.c.b16 %v1719, %v1715
    %v1752 = vpack.c.b16 %v1720, %v1716
    %v1753 = vpack.c.b16 %v1721, %v1717
    %1786 = vmatprep.subr.bf16.mxu0 %v1751
    %1787 = vmatpush1.bf16.msra.mxu0 %v1750
    %1788 = vmatprep.subr.bf16.mxu0 %v1747
    %1789 = vmatpush1.bf16.msra.mxu0 %v1746
    %1790 = vmatprep.subr.bf16.mxu0 %v1743
    %1791 = vmatpush1.bf16.msra.mxu0 %v1742
    %1792 = vmatprep.subr.bf16.mxu0 %v1739
    %1793 = vmatpush1.bf16.msra.mxu0 %v1738
    %1794 = vmatprep.subr.bf16.mxu0 %v1735
    %1795 = vmatpush1.bf16.msra.mxu0 %v1734
    %1796 = vmatprep.subr.bf16.mxu0 %v1731
    %1797 = vmatpush1.bf16.msra.mxu0 %v1730
    %1798 = vmatprep.subr.bf16.mxu0 %v1727
    %1799 = vmatpush1.bf16.msra.mxu0 %v1726
    %1800 = vmatprep.subr.bf16.mxu0 %v1723
    %1801 = vmatpush1.bf16.msra.mxu0 %v1722
    %1802 = vmatprep.subr.bf16.mxu0 0
    %1803 = vmatpush2.bf16.msra.mxu0 0
    %1804 = vmatprep.subr.bf16.mxu0 0
    %1805 = vmatpush2.bf16.msra.mxu0 0
    %1806 = vmatprep.subr.bf16.mxu0 0
    %1807 = vmatpush2.bf16.msra.mxu0 0
    %1808 = vmatprep.subr.bf16.mxu0 0
    %1809 = vmatpush2.bf16.msra.mxu0 0
    %1810 = vmatprep.subr.bf16.mxu0 0
    %1811 = vmatpush2.bf16.msra.mxu0 0
    %1812 = vmatprep.subr.bf16.mxu0 0
    %1813 = vmatpush2.bf16.msra.mxu0 0
    %1814 = vmatprep.subr.bf16.mxu0 0
    %1815 = vmatpush2.bf16.msra.mxu0 0
    %1816 = vmatprep.subr.bf16.mxu0 0
    %1817 = vmatpush2.bf16.msra.mxu0 0
    %1818 = vmatprep.mubr.bf16.mxu0 0
    %1819 = vmatmul.mubr.bf16.gmra.mxu0 0
    %v1820 = vpop.f32.mrf.mxu0
    %v1821 = vadd.f32 0.0, %v1820
    %v1822 = vpop.f32.mrf.mxu0
    %v1823 = vadd.f32 0.0, %v1822
    %v1824 = vpop.f32.mrf.mxu0
    %v1825 = vpop.f32.mrf.mxu0
    %1826 = vdwg.mxu0
    %1827 = vmatprep.subr.bf16.mxu0 %v1753
    %1828 = vmatpush1.bf16.msra.mxu0 %v1752
    %1829 = vmatprep.subr.bf16.mxu0 %v1749
    %1830 = vmatpush1.bf16.msra.mxu0 %v1748
    %1831 = vmatprep.subr.bf16.mxu0 %v1745
    %1832 = vmatpush1.bf16.msra.mxu0 %v1744
    %1833 = vmatprep.subr.bf16.mxu0 %v1741
    %1834 = vmatpush1.bf16.msra.mxu0 %v1740
    %1835 = vmatprep.subr.bf16.mxu0 %v1737
    %1836 = vmatpush1.bf16.msra.mxu0 %v1736
    %1837 = vmatprep.subr.bf16.mxu0 %v1733
    %1838 = vmatpush1.bf16.msra.mxu0 %v1732
    %1839 = vmatprep.subr.bf16.mxu0 %v1729
    %1840 = vmatpush1.bf16.msra.mxu0 %v1728
    %1841 = vmatprep.subr.bf16.mxu0 %v1725
    %1842 = vmatpush1.bf16.msra.mxu0 %v1724
    %1843 = vmatprep.subr.bf16.mxu0 0
    %1844 = vmatpush2.bf16.msra.mxu0 0
    %1845 = vmatprep.subr.bf16.mxu0 0
    %1846 = vmatpush2.bf16.msra.mxu0 0
    %1847 = vmatprep.subr.bf16.mxu0 0
    %1848 = vmatpush2.bf16.msra.mxu0 0
    %1849 = vmatprep.subr.bf16.mxu0 0
    %1850 = vmatpush2.bf16.msra.mxu0 0
    %1851 = vmatprep.subr.bf16.mxu0 0
    %1852 = vmatpush2.bf16.msra.mxu0 0
    %1853 = vmatprep.subr.bf16.mxu0 0
    %1854 = vmatpush2.bf16.msra.mxu0 0
    %1855 = vmatprep.subr.bf16.mxu0 0
    %1856 = vmatpush2.bf16.msra.mxu0 0
    %1857 = vmatprep.subr.bf16.mxu0 0
    %1858 = vmatpush2.bf16.msra.mxu0 0
    %1859 = vmatprep.mubr.bf16.mxu0 0
    %1860 = vmatmul.mubr.bf16.gmra.mxu0 0
    %v1861 = vpop.f32.mrf.mxu0
    %v1862 = vadd.f32 0.0, %v1861
    %v1863 = vpop.f32.mrf.mxu0
    %v1864 = vadd.f32 0.0, %v1863
    %v1865 = vpop.f32.mrf.mxu0
    %v1866 = vpop.f32.mrf.mxu0
    %1867 = vdwg.mxu0
    %v1868 = vadd.f32 %v1195, %v1821
    %v1869 = vadd.f32 %v1197, %v1823
    %v1870 = vadd.f32 %v1258, %v1862
    %v1871 = vadd.f32 %v1260, %v1864
    %v1872 = vxor.u32 %v1868, 2147483648
    %v1873 = vmul.f32 %v1872, 1.442695
    %v1874 = vpow.pop %v1873
    %v1875 = vadd.f32 %v1874, 1.0
    %v1876 = vrcp.pop %v1875
    %v1877 = vmul.f32 1.0, %v1876
    %v1878 = vxor.u32 %v1869, 2147483648
    %v1879 = vmul.f32 %v1878, 1.442695
    %v1880 = vpow.pop %v1879
    %v1881 = vadd.f32 %v1880, 1.0
    %v1882 = vrcp.pop %v1881
    %v1883 = vmul.f32 1.0, %v1882
    %v1884 = vtanh.pop %v1870
    %v1885 = vxor.u32 %v1871, 2147483648
    %v1886 = vmul.f32 %v1885, 1.442695
    %v1887 = vpow.pop %v1886
    %v1888 = vadd.f32 %v1887, 1.0
    %v1889 = vrcp.pop %v1888
    %v1890 = vmul.f32 1.0, %v1889
    %v1891 = vmul.f32 %v1883, 0.0
    %v1892 = vmul.f32 %v1877, %v1884
    %v1893 = vadd.f32 %v1891, %v1892
    %v1894 = vtanh.pop %v1893
    %v1895 = vmul.f32 %v1890, %v1894
    %1896 = vst [vmem:[#allocation3] sm:$0xff] %v1895
    %v1897 = vpack.c.bf16 %v1895, %v1895
    %1898 = vmatprep.subr.bf16.mxu0 %v1751
    %1899 = vmatpush1.bf16.msra.mxu0 %v1750
    %1900 = vmatprep.subr.bf16.mxu0 %v1747
    %1901 = vmatpush1.bf16.msra.mxu0 %v1746
    %1902 = vmatprep.subr.bf16.mxu0 %v1743
    %1903 = vmatpush1.bf16.msra.mxu0 %v1742
    %1904 = vmatprep.subr.bf16.mxu0 %v1739
    %1905 = vmatpush1.bf16.msra.mxu0 %v1738
    %1906 = vmatprep.subr.bf16.mxu0 %v1735
    %1907 = vmatpush1.bf16.msra.mxu0 %v1734
    %1908 = vmatprep.subr.bf16.mxu0 %v1731
    %1909 = vmatpush1.bf16.msra.mxu0 %v1730
    %1910 = vmatprep.subr.bf16.mxu0 %v1727
    %1911 = vmatpush1.bf16.msra.mxu0 %v1726
    %1912 = vmatprep.subr.bf16.mxu0 %v1723
    %1913 = vmatpush1.bf16.msra.mxu0 %v1722
    %1914 = vmatprep.subr.bf16.mxu0 0
    %1915 = vmatpush2.bf16.msra.mxu0 0
    %1916 = vmatprep.subr.bf16.mxu0 0
    %1917 = vmatpush2.bf16.msra.mxu0 0
    %1918 = vmatprep.subr.bf16.mxu0 0
    %1919 = vmatpush2.bf16.msra.mxu0 0
    %1920 = vmatprep.subr.bf16.mxu0 0
    %1921 = vmatpush2.bf16.msra.mxu0 0
    %1922 = vmatprep.subr.bf16.mxu0 0
    %1923 = vmatpush2.bf16.msra.mxu0 0
    %1924 = vmatprep.subr.bf16.mxu0 0
    %1925 = vmatpush2.bf16.msra.mxu0 0
    %1926 = vmatprep.subr.bf16.mxu0 0
    %1927 = vmatpush2.bf16.msra.mxu0 0
    %1928 = vmatprep.subr.bf16.mxu0 0
    %1929 = vmatpush2.bf16.msra.mxu0 0
    %1930 = vmatprep.mubr.bf16.mxu0 0
    %1931 = vmatmul.mubr.bf16.gmra.mxu0 %v1897
    %v1932 = vpop.f32.mrf.mxu0
    %v1933 = vadd.f32 0.0, %v1932
    %v1934 = vpop.f32.mrf.mxu0
    %v1935 = vadd.f32 0.0, %v1934
    %v1936 = vpop.f32.mrf.mxu0
    %v1937 = vpop.f32.mrf.mxu0
    %1938 = vdwg.mxu0
    %1939 = vmatprep.subr.bf16.mxu0 %v1753
    %1940 = vmatpush1.bf16.msra.mxu0 %v1752
    %1941 = vmatprep.subr.bf16.mxu0 %v1749
    %1942 = vmatpush1.bf16.msra.mxu0 %v1748
    %1943 = vmatprep.subr.bf16.mxu0 %v1745
    %1944 = vmatpush1.bf16.msra.mxu0 %v1744
    %1945 = vmatprep.subr.bf16.mxu0 %v1741
    %1946 = vmatpush1.bf16.msra.mxu0 %v1740
    %1947 = vmatprep.subr.bf16.mxu0 %v1737
    %1948 = vmatpush1.bf16.msra.mxu0 %v1736
    %1949 = vmatprep.subr.bf16.mxu0 %v1733
    %1950 = vmatpush1.bf16.msra.mxu0 %v1732
    %1951 = vmatprep.subr.bf16.mxu0 %v1729
    %1952 = vmatpush1.bf16.msra.mxu0 %v1728
    %1953 = vmatprep.subr.bf16.mxu0 %v1725
    %1954 = vmatpush1.bf16.msra.mxu0 %v1724
    %1955 = vmatprep.subr.bf16.mxu0 0
    %1956 = vmatpush2.bf16.msra.mxu0 0
    %1957 = vmatprep.subr.bf16.mxu0 0
    %1958 = vmatpush2.bf16.msra.mxu0 0
    %1959 = vmatprep.subr.bf16.mxu0 0
    %1960 = vmatpush2.bf16.msra.mxu0 0
    %1961 = vmatprep.subr.bf16.mxu0 0
    %1962 = vmatpush2.bf16.msra.mxu0 0
    %1963 = vmatprep.subr.bf16.mxu0 0
    %1964 = vmatpush2.bf16.msra.mxu0 0
    %1965 = vmatprep.subr.bf16.mxu0 0
    %1966 = vmatpush2.bf16.msra.mxu0 0
    %1967 = vmatprep.subr.bf16.mxu0 0
    %1968 = vmatpush2.bf16.msra.mxu0 0
    %1969 = vmatprep.subr.bf16.mxu0 0
    %1970 = vmatpush2.bf16.msra.mxu0 0
    %1971 = vmatprep.mubr.bf16.mxu0 0
    %1972 = vmatmul.mubr.bf16.gmra.mxu0 %v1897
    %v1973 = vpop.f32.mrf.mxu0
    %v1974 = vadd.f32 0.0, %v1973
    %v1975 = vpop.f32.mrf.mxu0
    %v1976 = vadd.f32 0.0, %v1975
    %v1977 = vpop.f32.mrf.mxu0
    %v1978 = vpop.f32.mrf.mxu0
    %1979 = vdwg.mxu0
    %v1980 = vadd.f32 %v1199, %v1933
    %v1981 = vadd.f32 %v1201, %v1935
    %v1982 = vadd.f32 %v1262, %v1974
    %v1983 = vadd.f32 %v1264, %v1976
    %v1984 = vxor.u32 %v1980, 2147483648
    %v1985 = vmul.f32 %v1984, 1.442695
    %v1986 = vpow.pop %v1985
    %v1987 = vadd.f32 %v1986, 1.0
    %v1988 = vrcp.pop %v1987
    %v1989 = vmul.f32 1.0, %v1988
    %v1990 = vxor.u32 %v1981, 2147483648
    %v1991 = vmul.f32 %v1990, 1.442695
    %v1992 = vpow.pop %v1991
    %v1993 = vadd.f32 %v1992, 1.0
    %v1994 = vrcp.pop %v1993
    %v1995 = vmul.f32 1.0, %v1994
    %v1996 = vtanh.pop %v1982
    %v1997 = vxor.u32 %v1983, 2147483648
    %v1998 = vmul.f32 %v1997, 1.442695
    %v1999 = vpow.pop %v1998
    %v2000 = vadd.f32 %v1999, 1.0
    %v2001 = vrcp.pop %v2000
    %v2002 = vmul.f32 1.0, %v2001
    %v2003 = vmul.f32 %v1995, %v1893
    %v2004 = vmul.f32 %v1989, %v1996
    %v2005 = vadd.f32 %v2003, %v2004
    %v2006 = vtanh.pop %v2005
    %v2007 = vmul.f32 %v2002, %v2006
    %2008 = vst [vmem:[#allocation3 + $0x8] sm:$0xff] %v2007
    %v2009 = vpack.c.bf16 %v2007, %v2007
    %2010 = vmatprep.subr.bf16.mxu0 %v1751
    %2011 = vmatpush1.bf16.msra.mxu0 %v1750
    %2012 = vmatprep.subr.bf16.mxu0 %v1747
    %2013 = vmatpush1.bf16.msra.mxu0 %v1746
    %2014 = vmatprep.subr.bf16.mxu0 %v1743
    %2015 = vmatpush1.bf16.msra.mxu0 %v1742
    %2016 = vmatprep.subr.bf16.mxu0 %v1739
    %2017 = vmatpush1.bf16.msra.mxu0 %v1738
    %2018 = vmatprep.subr.bf16.mxu0 %v1735
    %2019 = vmatpush1.bf16.msra.mxu0 %v1734
    %2020 = vmatprep.subr.bf16.mxu0 %v1731
    %2021 = vmatpush1.bf16.msra.mxu0 %v1730
    %2022 = vmatprep.subr.bf16.mxu0 %v1727
    %2023 = vmatpush1.bf16.msra.mxu0 %v1726
    %2024 = vmatprep.subr.bf16.mxu0 %v1723
    %2025 = vmatpush1.bf16.msra.mxu0 %v1722
    %2026 = vmatprep.subr.bf16.mxu0 0
    %2027 = vmatpush2.bf16.msra.mxu0 0
    %2028 = vmatprep.subr.bf16.mxu0 0
    %2029 = vmatpush2.bf16.msra.mxu0 0
    %2030 = vmatprep.subr.bf16.mxu0 0
    %2031 = vmatpush2.bf16.msra.mxu0 0
    %2032 = vmatprep.subr.bf16.mxu0 0
    %2033 = vmatpush2.bf16.msra.mxu0 0
    %2034 = vmatprep.subr.bf16.mxu0 0
    %2035 = vmatpush2.bf16.msra.mxu0 0
    %2036 = vmatprep.subr.bf16.mxu0 0
    %2037 = vmatpush2.bf16.msra.mxu0 0
    %2038 = vmatprep.subr.bf16.mxu0 0
    %2039 = vmatpush2.bf16.msra.mxu0 0
    %2040 = vmatprep.subr.bf16.mxu0 0
    %2041 = vmatpush2.bf16.msra.mxu0 0
    %2042 = vmatprep.mubr.bf16.mxu0 0
    %2043 = vmatmul.mubr.bf16.gmra.mxu0 %v2009
    %v2044 = vpop.f32.mrf.mxu0
    %v2045 = vadd.f32 0.0, %v2044
    %v2046 = vpop.f32.mrf.mxu0
    %v2047 = vadd.f32 0.0, %v2046
    %v2048 = vpop.f32.mrf.mxu0
    %v2049 = vpop.f32.mrf.mxu0
    %2050 = vdwg.mxu0
    %2051 = vmatprep.subr.bf16.mxu0 %v1753
    %2052 = vmatpush1.bf16.msra.mxu0 %v1752
    %2053 = vmatprep.subr.bf16.mxu0 %v1749
    %2054 = vmatpush1.bf16.msra.mxu0 %v1748
    %2055 = vmatprep.subr.bf16.mxu0 %v1745
    %2056 = vmatpush1.bf16.msra.mxu0 %v1744
    %2057 = vmatprep.subr.bf16.mxu0 %v1741
    %2058 = vmatpush1.bf16.msra.mxu0 %v1740
    %2059 = vmatprep.subr.bf16.mxu0 %v1737
    %2060 = vmatpush1.bf16.msra.mxu0 %v1736
    %2061 = vmatprep.subr.bf16.mxu0 %v1733
    %2062 = vmatpush1.bf16.msra.mxu0 %v1732
    %2063 = vmatprep.subr.bf16.mxu0 %v1729
    %2064 = vmatpush1.bf16.msra.mxu0 %v1728
    %2065 = vmatprep.subr.bf16.mxu0 %v1725
    %2066 = vmatpush1.bf16.msra.mxu0 %v1724
    %2067 = vmatprep.subr.bf16.mxu0 0
    %2068 = vmatpush2.bf16.msra.mxu0 0
    %2069 = vmatprep.subr.bf16.mxu0 0
    %2070 = vmatpush2.bf16.msra.mxu0 0
    %2071 = vmatprep.subr.bf16.mxu0 0
    %2072 = vmatpush2.bf16.msra.mxu0 0
    %2073 = vmatprep.subr.bf16.mxu0 0
    %2074 = vmatpush2.bf16.msra.mxu0 0
    %2075 = vmatprep.subr.bf16.mxu0 0
    %2076 = vmatpush2.bf16.msra.mxu0 0
    %2077 = vmatprep.subr.bf16.mxu0 0
    %2078 = vmatpush2.bf16.msra.mxu0 0
    %2079 = vmatprep.subr.bf16.mxu0 0
    %2080 = vmatpush2.bf16.msra.mxu0 0
    %2081 = vmatprep.subr.bf16.mxu0 0
    %2082 = vmatpush2.bf16.msra.mxu0 0
    %2083 = vmatprep.mubr.bf16.mxu0 0
    %2084 = vmatmul.mubr.bf16.gmra.mxu0 %v2009
    %v2085 = vpop.f32.mrf.mxu0
    %v2086 = vadd.f32 0.0, %v2085
    %v2087 = vpop.f32.mrf.mxu0
    %v2088 = vadd.f32 0.0, %v2087
    %v2089 = vpop.f32.mrf.mxu0
    %v2090 = vpop.f32.mrf.mxu0
    %2091 = vdwg.mxu0
    %v2092 = vadd.f32 %v1205, %v2045
    %v2093 = vadd.f32 %v1207, %v2047
    %v2094 = vadd.f32 %v1268, %v2086
    %v2095 = vadd.f32 %v1270, %v2088
    %v2096 = vxor.u32 %v2092, 2147483648
    %v2097 = vmul.f32 %v2096, 1.442695
    %v2098 = vpow.pop %v2097
    %v2099 = vadd.f32 %v2098, 1.0
    %v2100 = vrcp.pop %v2099
    %v2101 = vmul.f32 1.0, %v2100
    %v2102 = vxor.u32 %v2093, 2147483648
    %v2103 = vmul.f32 %v2102, 1.442695
    %v2104 = vpow.pop %v2103
    %v2105 = vadd.f32 %v2104, 1.0
    %v2106 = vrcp.pop %v2105
    %v2107 = vmul.f32 1.0, %v2106
    %v2108 = vtanh.pop %v2094
    %v2109 = vxor.u32 %v2095, 2147483648
    %v2110 = vmul.f32 %v2109, 1.442695
    %v2111 = vpow.pop %v2110
    %v2112 = vadd.f32 %v2111, 1.0
    %v2113 = vrcp.pop %v2112
    %v2114 = vmul.f32 1.0, %v2113
    %v2115 = vmul.f32 %v2107, %v2005
    %v2116 = vmul.f32 %v2101, %v2108
    %v2117 = vadd.f32 %v2115, %v2116
    %v2118 = vtanh.pop %v2117
    %v2119 = vmul.f32 %v2114, %v2118
    %2120 = vst [vmem:[#allocation3 + $0x10] sm:$0xff] %v2119
    %v2121 = vpack.c.bf16 %v2119, %v2119
    %2122 = vmatprep.subr.bf16.mxu0 %v1751
    %2123 = vmatpush1.bf16.msra.mxu0 %v1750
    %2124 = vmatprep.subr.bf16.mxu0 %v1747
    %2125 = vmatpush1.bf16.msra.mxu0 %v1746
    %2126 = vmatprep.subr.bf16.mxu0 %v1743
    %2127 = vmatpush1.bf16.msra.mxu0 %v1742
    %2128 = vmatprep.subr.bf16.mxu0 %v1739
    %2129 = vmatpush1.bf16.msra.mxu0 %v1738
    %2130 = vmatprep.subr.bf16.mxu0 %v1735
    %2131 = vmatpush1.bf16.msra.mxu0 %v1734
    %2132 = vmatprep.subr.bf16.mxu0 %v1731
    %2133 = vmatpush1.bf16.msra.mxu0 %v1730
    %2134 = vmatprep.subr.bf16.mxu0 %v1727
    %2135 = vmatpush1.bf16.msra.mxu0 %v1726
    %2136 = vmatprep.subr.bf16.mxu0 %v1723
    %2137 = vmatpush1.bf16.msra.mxu0 %v1722
    %2138 = vmatprep.subr.bf16.mxu0 0
    %2139 = vmatpush2.bf16.msra.mxu0 0
    %2140 = vmatprep.subr.bf16.mxu0 0
    %2141 = vmatpush2.bf16.msra.mxu0 0
    %2142 = vmatprep.subr.bf16.mxu0 0
    %2143 = vmatpush2.bf16.msra.mxu0 0
    %2144 = vmatprep.subr.bf16.mxu0 0
    %2145 = vmatpush2.bf16.msra.mxu0 0
    %2146 = vmatprep.subr.bf16.mxu0 0
    %2147 = vmatpush2.bf16.msra.mxu0 0
    %2148 = vmatprep.subr.bf16.mxu0 0
    %2149 = vmatpush2.bf16.msra.mxu0 0
    %2150 = vmatprep.subr.bf16.mxu0 0
    %2151 = vmatpush2.bf16.msra.mxu0 0
    %2152 = vmatprep.subr.bf16.mxu0 0
    %2153 = vmatpush2.bf16.msra.mxu0 0
    %2154 = vmatprep.mubr.bf16.mxu0 0
    %2155 = vmatmul.mubr.bf16.gmra.mxu0 %v2121
    %v2156 = vpop.f32.mrf.mxu0
    %v2157 = vadd.f32 0.0, %v2156
    %v2158 = vpop.f32.mrf.mxu0
    %v2159 = vadd.f32 0.0, %v2158
    %v2160 = vpop.f32.mrf.mxu0
    %v2161 = vpop.f32.mrf.mxu0
    %2162 = vdwg.mxu0
    %2163 = vmatprep.subr.bf16.mxu0 %v1753
    %2164 = vmatpush1.bf16.msra.mxu0 %v1752
    %2165 = vmatprep.subr.bf16.mxu0 %v1749
    %2166 = vmatpush1.bf16.msra.mxu0 %v1748
    %2167 = vmatprep.subr.bf16.mxu0 %v1745
    %2168 = vmatpush1.bf16.msra.mxu0 %v1744
    %2169 = vmatprep.subr.bf16.mxu0 %v1741
    %2170 = vmatpush1.bf16.msra.mxu0 %v1740
    %2171 = vmatprep.subr.bf16.mxu0 %v1737
    %2172 = vmatpush1.bf16.msra.mxu0 %v1736
    %2173 = vmatprep.subr.bf16.mxu0 %v1733
    %2174 = vmatpush1.bf16.msra.mxu0 %v1732
    %2175 = vmatprep.subr.bf16.mxu0 %v1729
    %2176 = vmatpush1.bf16.msra.mxu0 %v1728
    %2177 = vmatprep.subr.bf16.mxu0 %v1725
    %2178 = vmatpush1.bf16.msra.mxu0 %v1724
    %2179 = vmatprep.subr.bf16.mxu0 0
    %2180 = vmatpush2.bf16.msra.mxu0 0
    %2181 = vmatprep.subr.bf16.mxu0 0
    %2182 = vmatpush2.bf16.msra.mxu0 0
    %2183 = vmatprep.subr.bf16.mxu0 0
    %2184 = vmatpush2.bf16.msra.mxu0 0
    %2185 = vmatprep.subr.bf16.mxu0 0
    %2186 = vmatpush2.bf16.msra.mxu0 0
    %2187 = vmatprep.subr.bf16.mxu0 0
    %2188 = vmatpush2.bf16.msra.mxu0 0
    %2189 = vmatprep.subr.bf16.mxu0 0
    %2190 = vmatpush2.bf16.msra.mxu0 0
    %2191 = vmatprep.subr.bf16.mxu0 0
    %2192 = vmatpush2.bf16.msra.mxu0 0
    %2193 = vmatprep.subr.bf16.mxu0 0
    %2194 = vmatpush2.bf16.msra.mxu0 0
    %2195 = vmatprep.mubr.bf16.mxu0 0
    %2196 = vmatmul.mubr.bf16.gmra.mxu0 %v2121
    %v2197 = vpop.f32.mrf.mxu0
    %v2198 = vadd.f32 0.0, %v2197
    %v2199 = vpop.f32.mrf.mxu0
    %v2200 = vadd.f32 0.0, %v2199
    %v2201 = vpop.f32.mrf.mxu0
    %v2202 = vpop.f32.mrf.mxu0
    %2203 = vdwg.mxu0
    %v2204 = vadd.f32 %v1209, %v2157
    %v2205 = vadd.f32 %v1211, %v2159
    %v2206 = vadd.f32 %v1272, %v2198
    %v2207 = vadd.f32 %v1274, %v2200
    %v2208 = vxor.u32 %v2204, 2147483648
    %v2209 = vmul.f32 %v2208, 1.442695
    %v2210 = vpow.pop %v2209
    %v2211 = vadd.f32 %v2210, 1.0
    %v2212 = vrcp.pop %v2211
    %v2213 = vmul.f32 1.0, %v2212
    %v2214 = vxor.u32 %v2205, 2147483648
    %v2215 = vmul.f32 %v2214, 1.442695
    %v2216 = vpow.pop %v2215
    %v2217 = vadd.f32 %v2216, 1.0
    %v2218 = vrcp.pop %v2217
    %v2219 = vmul.f32 1.0, %v2218
    %v2220 = vtanh.pop %v2206
    %v2221 = vxor.u32 %v2207, 2147483648
    %v2222 = vmul.f32 %v2221, 1.442695
    %v2223 = vpow.pop %v2222
    %v2224 = vadd.f32 %v2223, 1.0
    %v2225 = vrcp.pop %v2224
    %v2226 = vmul.f32 1.0, %v2225
    %v2227 = vmul.f32 %v2219, %v2117
    %v2228 = vmul.f32 %v2213, %v2220
    %v2229 = vadd.f32 %v2227, %v2228
    %v2230 = vtanh.pop %v2229
    %v2231 = vmul.f32 %v2226, %v2230
    %2232 = vst [vmem:[#allocation3 + $0x18] sm:$0xff] %v2231
    %v2233 = vpack.c.bf16 %v2231, %v2231
    %2234 = vmatprep.subr.bf16.mxu0 %v1751
    %2235 = vmatpush1.bf16.msra.mxu0 %v1750
    %2236 = vmatprep.subr.bf16.mxu0 %v1747
    %2237 = vmatpush1.bf16.msra.mxu0 %v1746
    %2238 = vmatprep.subr.bf16.mxu0 %v1743
    %2239 = vmatpush1.bf16.msra.mxu0 %v1742
    %2240 = vmatprep.subr.bf16.mxu0 %v1739
    %2241 = vmatpush1.bf16.msra.mxu0 %v1738
    %2242 = vmatprep.subr.bf16.mxu0 %v1735
    %2243 = vmatpush1.bf16.msra.mxu0 %v1734
    %2244 = vmatprep.subr.bf16.mxu0 %v1731
    %2245 = vmatpush1.bf16.msra.mxu0 %v1730
    %2246 = vmatprep.subr.bf16.mxu0 %v1727
    %2247 = vmatpush1.bf16.msra.mxu0 %v1726
    %2248 = vmatprep.subr.bf16.mxu0 %v1723
    %2249 = vmatpush1.bf16.msra.mxu0 %v1722
    %2250 = vmatprep.subr.bf16.mxu0 0
    %2251 = vmatpush2.bf16.msra.mxu0 0
    %2252 = vmatprep.subr.bf16.mxu0 0
    %2253 = vmatpush2.bf16.msra.mxu0 0
    %2254 = vmatprep.subr.bf16.mxu0 0
    %2255 = vmatpush2.bf16.msra.mxu0 0
    %2256 = vmatprep.subr.bf16.mxu0 0
    %2257 = vmatpush2.bf16.msra.mxu0 0
    %2258 = vmatprep.subr.bf16.mxu0 0
    %2259 = vmatpush2.bf16.msra.mxu0 0
    %2260 = vmatprep.subr.bf16.mxu0 0
    %2261 = vmatpush2.bf16.msra.mxu0 0
    %2262 = vmatprep.subr.bf16.mxu0 0
    %2263 = vmatpush2.bf16.msra.mxu0 0
    %2264 = vmatprep.subr.bf16.mxu0 0
    %2265 = vmatpush2.bf16.msra.mxu0 0
    %2266 = vmatprep.mubr.bf16.mxu0 0
    %2267 = vmatmul.mubr.bf16.gmra.mxu0 %v2233
    %v2268 = vpop.f32.mrf.mxu0
    %v2269 = vadd.f32 0.0, %v2268
    %v2270 = vpop.f32.mrf.mxu0
    %v2271 = vadd.f32 0.0, %v2270
    %v2272 = vpop.f32.mrf.mxu0
    %v2273 = vpop.f32.mrf.mxu0
    %2274 = vdwg.mxu0
    %2275 = vmatprep.subr.bf16.mxu0 %v1753
    %2276 = vmatpush1.bf16.msra.mxu0 %v1752
    %2277 = vmatprep.subr.bf16.mxu0 %v1749
    %2278 = vmatpush1.bf16.msra.mxu0 %v1748
    %2279 = vmatprep.subr.bf16.mxu0 %v1745
    %2280 = vmatpush1.bf16.msra.mxu0 %v1744
    %2281 = vmatprep.subr.bf16.mxu0 %v1741
    %2282 = vmatpush1.bf16.msra.mxu0 %v1740
    %2283 = vmatprep.subr.bf16.mxu0 %v1737
    %2284 = vmatpush1.bf16.msra.mxu0 %v1736
    %2285 = vmatprep.subr.bf16.mxu0 %v1733
    %2286 = vmatpush1.bf16.msra.mxu0 %v1732
    %2287 = vmatprep.subr.bf16.mxu0 %v1729
    %2288 = vmatpush1.bf16.msra.mxu0 %v1728
    %2289 = vmatprep.subr.bf16.mxu0 %v1725
    %2290 = vmatpush1.bf16.msra.mxu0 %v1724
    %2291 = vmatprep.subr.bf16.mxu0 0
    %2292 = vmatpush2.bf16.msra.mxu0 0
    %2293 = vmatprep.subr.bf16.mxu0 0
    %2294 = vmatpush2.bf16.msra.mxu0 0
    %2295 = vmatprep.subr.bf16.mxu0 0
    %2296 = vmatpush2.bf16.msra.mxu0 0
    %2297 = vmatprep.subr.bf16.mxu0 0
    %2298 = vmatpush2.bf16.msra.mxu0 0
    %2299 = vmatprep.subr.bf16.mxu0 0
    %2300 = vmatpush2.bf16.msra.mxu0 0
    %2301 = vmatprep.subr.bf16.mxu0 0
    %2302 = vmatpush2.bf16.msra.mxu0 0
    %2303 = vmatprep.subr.bf16.mxu0 0
    %2304 = vmatpush2.bf16.msra.mxu0 0
    %2305 = vmatprep.subr.bf16.mxu0 0
    %2306 = vmatpush2.bf16.msra.mxu0 0
    %2307 = vmatprep.mubr.bf16.mxu0 0
    %2308 = vmatmul.mubr.bf16.gmra.mxu0 %v2233
    %v2309 = vpop.f32.mrf.mxu0
    %v2310 = vadd.f32 0.0, %v2309
    %v2311 = vpop.f32.mrf.mxu0
    %v2312 = vadd.f32 0.0, %v2311
    %v2313 = vpop.f32.mrf.mxu0
    %v2314 = vpop.f32.mrf.mxu0
    %2315 = vdwg.mxu0
    %v2316 = vadd.f32 %v1215, %v2269
    %v2317 = vadd.f32 %v1217, %v2271
    %v2318 = vadd.f32 %v1278, %v2310
    %v2319 = vadd.f32 %v1280, %v2312
    %v2320 = vxor.u32 %v2316, 2147483648
    %v2321 = vmul.f32 %v2320, 1.442695
    %v2322 = vpow.pop %v2321
    %v2323 = vadd.f32 %v2322, 1.0
    %v2324 = vrcp.pop %v2323
    %v2325 = vmul.f32 1.0, %v2324
    %v2326 = vxor.u32 %v2317, 2147483648
    %v2327 = vmul.f32 %v2326, 1.442695
    %v2328 = vpow.pop %v2327
    %v2329 = vadd.f32 %v2328, 1.0
    %v2330 = vrcp.pop %v2329
    %v2331 = vmul.f32 1.0, %v2330
    %v2332 = vtanh.pop %v2318
    %v2333 = vxor.u32 %v2319, 2147483648
    %v2334 = vmul.f32 %v2333, 1.442695
    %v2335 = vpow.pop %v2334
    %v2336 = vadd.f32 %v2335, 1.0
    %v2337 = vrcp.pop %v2336
    %v2338 = vmul.f32 1.0, %v2337
    %v2339 = vmul.f32 %v2331, %v2229
    %v2340 = vmul.f32 %v2325, %v2332
    %v2341 = vadd.f32 %v2339, %v2340
    %v2342 = vtanh.pop %v2341
    %v2343 = vmul.f32 %v2338, %v2342
    %2344 = vst [vmem:[#allocation3 + $0x20] sm:$0xff] %v2343
    %v2345 = vpack.c.bf16 %v2343, %v2343
    %2346 = vmatprep.subr.bf16.mxu0 %v1751
    %2347 = vmatpush1.bf16.msra.mxu0 %v1750
    %2348 = vmatprep.subr.bf16.mxu0 %v1747
    %2349 = vmatpush1.bf16.msra.mxu0 %v1746
    %2350 = vmatprep.subr.bf16.mxu0 %v1743
    %2351 = vmatpush1.bf16.msra.mxu0 %v1742
    %2352 = vmatprep.subr.bf16.mxu0 %v1739
    %2353 = vmatpush1.bf16.msra.mxu0 %v1738
    %2354 = vmatprep.subr.bf16.mxu0 %v1735
    %2355 = vmatpush1.bf16.msra.mxu0 %v1734
    %2356 = vmatprep.subr.bf16.mxu0 %v1731
    %2357 = vmatpush1.bf16.msra.mxu0 %v1730
    %2358 = vmatprep.subr.bf16.mxu0 %v1727
    %2359 = vmatpush1.bf16.msra.mxu0 %v1726
    %2360 = vmatprep.subr.bf16.mxu0 %v1723
    %2361 = vmatpush1.bf16.msra.mxu0 %v1722
    %2362 = vmatprep.subr.bf16.mxu0 0
    %2363 = vmatpush2.bf16.msra.mxu0 0
    %2364 = vmatprep.subr.bf16.mxu0 0
    %2365 = vmatpush2.bf16.msra.mxu0 0
    %2366 = vmatprep.subr.bf16.mxu0 0
    %2367 = vmatpush2.bf16.msra.mxu0 0
    %2368 = vmatprep.subr.bf16.mxu0 0
    %2369 = vmatpush2.bf16.msra.mxu0 0
    %2370 = vmatprep.subr.bf16.mxu0 0
    %2371 = vmatpush2.bf16.msra.mxu0 0
    %2372 = vmatprep.subr.bf16.mxu0 0
    %2373 = vmatpush2.bf16.msra.mxu0 0
    %2374 = vmatprep.subr.bf16.mxu0 0
    %2375 = vmatpush2.bf16.msra.mxu0 0
    %2376 = vmatprep.subr.bf16.mxu0 0
    %2377 = vmatpush2.bf16.msra.mxu0 0
    %2378 = vmatprep.mubr.bf16.mxu0 0
    %2379 = vmatmul.mubr.bf16.gmra.mxu0 %v2345
    %v2380 = vpop.f32.mrf.mxu0
    %v2381 = vadd.f32 0.0, %v2380
    %v2382 = vpop.f32.mrf.mxu0
    %v2383 = vadd.f32 0.0, %v2382
    %v2384 = vpop.f32.mrf.mxu0
    %v2385 = vpop.f32.mrf.mxu0
    %2386 = vdwg.mxu0
    %2387 = vmatprep.subr.bf16.mxu0 %v1753
    %2388 = vmatpush1.bf16.msra.mxu0 %v1752
    %2389 = vmatprep.subr.bf16.mxu0 %v1749
    %2390 = vmatpush1.bf16.msra.mxu0 %v1748
    %2391 = vmatprep.subr.bf16.mxu0 %v1745
    %2392 = vmatpush1.bf16.msra.mxu0 %v1744
    %2393 = vmatprep.subr.bf16.mxu0 %v1741
    %2394 = vmatpush1.bf16.msra.mxu0 %v1740
    %2395 = vmatprep.subr.bf16.mxu0 %v1737
    %2396 = vmatpush1.bf16.msra.mxu0 %v1736
    %2397 = vmatprep.subr.bf16.mxu0 %v1733
    %2398 = vmatpush1.bf16.msra.mxu0 %v1732
    %2399 = vmatprep.subr.bf16.mxu0 %v1729
    %2400 = vmatpush1.bf16.msra.mxu0 %v1728
    %2401 = vmatprep.subr.bf16.mxu0 %v1725
    %2402 = vmatpush1.bf16.msra.mxu0 %v1724
    %2403 = vmatprep.subr.bf16.mxu0 0
    %2404 = vmatpush2.bf16.msra.mxu0 0
    %2405 = vmatprep.subr.bf16.mxu0 0
    %2406 = vmatpush2.bf16.msra.mxu0 0
    %2407 = vmatprep.subr.bf16.mxu0 0
    %2408 = vmatpush2.bf16.msra.mxu0 0
    %2409 = vmatprep.subr.bf16.mxu0 0
    %2410 = vmatpush2.bf16.msra.mxu0 0
    %2411 = vmatprep.subr.bf16.mxu0 0
    %2412 = vmatpush2.bf16.msra.mxu0 0
    %2413 = vmatprep.subr.bf16.mxu0 0
    %2414 = vmatpush2.bf16.msra.mxu0 0
    %2415 = vmatprep.subr.bf16.mxu0 0
    %2416 = vmatpush2.bf16.msra.mxu0 0
    %2417 = vmatprep.subr.bf16.mxu0 0
    %2418 = vmatpush2.bf16.msra.mxu0 0
    %2419 = vmatprep.mubr.bf16.mxu0 0
    %2420 = vmatmul.mubr.bf16.gmra.mxu0 %v2345
    %v2421 = vpop.f32.mrf.mxu0
    %v2422 = vadd.f32 0.0, %v2421
    %v2423 = vpop.f32.mrf.mxu0
    %v2424 = vadd.f32 0.0, %v2423
    %v2425 = vpop.f32.mrf.mxu0
    %v2426 = vpop.f32.mrf.mxu0
    %2427 = vdwg.mxu0
    %v2428 = vadd.f32 %v1219, %v2381
    %v2429 = vadd.f32 %v1221, %v2383
    %v2430 = vadd.f32 %v1282, %v2422
    %v2431 = vadd.f32 %v1284, %v2424
    %v2432 = vxor.u32 %v2428, 2147483648
    %v2433 = vmul.f32 %v2432, 1.442695
    %v2434 = vpow.pop %v2433
    %v2435 = vadd.f32 %v2434, 1.0
    %v2436 = vrcp.pop %v2435
    %v2437 = vmul.f32 1.0, %v2436
    %v2438 = vxor.u32 %v2429, 2147483648
    %v2439 = vmul.f32 %v2438, 1.442695
    %v2440 = vpow.pop %v2439
    %v2441 = vadd.f32 %v2440, 1.0
    %v2442 = vrcp.pop %v2441
    %v2443 = vmul.f32 1.0, %v2442
    %v2444 = vtanh.pop %v2430
    %v2445 = vxor.u32 %v2431, 2147483648
    %v2446 = vmul.f32 %v2445, 1.442695
    %v2447 = vpow.pop %v2446
    %v2448 = vadd.f32 %v2447, 1.0
    %v2449 = vrcp.pop %v2448
    %v2450 = vmul.f32 1.0, %v2449
    %v2451 = vmul.f32 %v2443, %v2341
    %v2452 = vmul.f32 %v2437, %v2444
    %v2453 = vadd.f32 %v2451, %v2452
    %v2454 = vtanh.pop %v2453
    %v2455 = vmul.f32 %v2450, %v2454
    %2456 = vst [vmem:[#allocation3 + $0x28] sm:$0xff] %v2455
    %v2489 = vunpack.c.l.b16 %v1562
    %v2490 = vunpack.c.h.b16 %v1562
    %v2491 = vunpack.c.l.b16 %v1563
    %v2492 = vunpack.c.h.b16 %v1563
    %v2493 = vunpack.c.l.b16 %v1564
    %v2494 = vunpack.c.h.b16 %v1564
    %v2495 = vunpack.c.l.b16 %v1565
    %v2496 = vunpack.c.h.b16 %v1565
    %v2497 = vunpack.c.l.b16 %v1566
    %v2498 = vunpack.c.h.b16 %v1566
    %v2499 = vunpack.c.l.b16 %v1567
    %v2500 = vunpack.c.h.b16 %v1567
    %v2501 = vunpack.c.l.b16 %v1568
    %v2502 = vunpack.c.h.b16 %v1568
    %v2503 = vunpack.c.l.b16 %v1569
    %v2504 = vunpack.c.h.b16 %v1569
    %v2505 = vunpack.c.l.b16 %v1570
    %v2506 = vunpack.c.h.b16 %v1570
    %v2507 = vunpack.c.l.b16 %v1571
    %v2508 = vunpack.c.h.b16 %v1571
    %v2509 = vunpack.c.l.b16 %v1572
    %v2510 = vunpack.c.h.b16 %v1572
    %v2511 = vunpack.c.l.b16 %v1573
    %v2512 = vunpack.c.h.b16 %v1573
    %v2513 = vunpack.c.l.b16 %v1574
    %v2514 = vunpack.c.h.b16 %v1574
    %v2515 = vunpack.c.l.b16 %v1575
    %v2516 = vunpack.c.h.b16 %v1575
    %v2517 = vunpack.c.l.b16 %v1576
    %v2518 = vunpack.c.h.b16 %v1576
    %v2519 = vunpack.c.l.b16 %v1577
    %v2520 = vunpack.c.h.b16 %v1577
    %v2521 = vunpack.c.l.b16 %v1578
    %v2522 = vunpack.c.h.b16 %v1578
    %v2523 = vunpack.c.l.b16 %v1579
    %v2524 = vunpack.c.h.b16 %v1579
    %v2525 = vunpack.c.l.b16 %v1580
    %v2526 = vunpack.c.h.b16 %v1580
    %v2527 = vunpack.c.l.b16 %v1581
    %v2528 = vunpack.c.h.b16 %v1581
    %v2529 = vunpack.c.l.b16 %v1582
    %v2530 = vunpack.c.h.b16 %v1582
    %v2531 = vunpack.c.l.b16 %v1583
    %v2532 = vunpack.c.h.b16 %v1583
    %v2533 = vunpack.c.l.b16 %v1584
    %v2534 = vunpack.c.h.b16 %v1584
    %v2535 = vunpack.c.l.b16 %v1585
    %v2536 = vunpack.c.h.b16 %v1585
    %v2537 = vunpack.c.l.b16 %v1586
    %v2538 = vunpack.c.h.b16 %v1586
    %v2539 = vunpack.c.l.b16 %v1587
    %v2540 = vunpack.c.h.b16 %v1587
    %v2541 = vunpack.c.l.b16 %v1588
    %v2542 = vunpack.c.h.b16 %v1588
    %v2543 = vunpack.c.l.b16 %v1589
    %v2544 = vunpack.c.h.b16 %v1589
    %v2545 = vunpack.c.l.b16 %v1590
    %v2546 = vunpack.c.h.b16 %v1590
    %v2547 = vunpack.c.l.b16 %v1591
    %v2548 = vunpack.c.h.b16 %v1591
    %v2549 = vunpack.c.l.b16 %v1592
    %v2550 = vunpack.c.h.b16 %v1592
    %v2551 = vunpack.c.l.b16 %v1593
    %v2552 = vunpack.c.h.b16 %v1593
    %v2553 = vpack.c.b16 %v2493, %v2489
    %v2554 = vpack.c.b16 %v2494, %v2490
    %v2555 = vpack.c.b16 %v2495, %v2491
    %v2556 = vpack.c.b16 %v2496, %v2492
    %v2557 = vpack.c.b16 %v2501, %v2497
    %v2558 = vpack.c.b16 %v2502, %v2498
    %v2559 = vpack.c.b16 %v2503, %v2499
    %v2560 = vpack.c.b16 %v2504, %v2500
    %v2561 = vpack.c.b16 %v2509, %v2505
    %v2562 = vpack.c.b16 %v2510, %v2506
    %v2563 = vpack.c.b16 %v2511, %v2507
    %v2564 = vpack.c.b16 %v2512, %v2508
    %v2565 = vpack.c.b16 %v2517, %v2513
    %v2566 = vpack.c.b16 %v2518, %v2514
    %v2567 = vpack.c.b16 %v2519, %v2515
    %v2568 = vpack.c.b16 %v2520, %v2516
    %v2569 = vpack.c.b16 %v2525, %v2521
    %v2570 = vpack.c.b16 %v2526, %v2522
    %v2571 = vpack.c.b16 %v2527, %v2523
    %v2572 = vpack.c.b16 %v2528, %v2524
    %v2573 = vpack.c.b16 %v2533, %v2529
    %v2574 = vpack.c.b16 %v2534, %v2530
    %v2575 = vpack.c.b16 %v2535, %v2531
    %v2576 = vpack.c.b16 %v2536, %v2532
    %v2577 = vpack.c.b16 %v2541, %v2537
    %v2578 = vpack.c.b16 %v2542, %v2538
    %v2579 = vpack.c.b16 %v2543, %v2539
    %v2580 = vpack.c.b16 %v2544, %v2540
    %v2581 = vpack.c.b16 %v2549, %v2545
    %v2582 = vpack.c.b16 %v2550, %v2546
    %v2583 = vpack.c.b16 %v2551, %v2547
    %v2584 = vpack.c.b16 %v2552, %v2548
    %2617 = vmatprep.subr.bf16.mxu0 %v2582
    %2618 = vmatpush1.bf16.msra.mxu0 %v2581
    %2619 = vmatprep.subr.bf16.mxu0 %v2578
    %2620 = vmatpush1.bf16.msra.mxu0 %v2577
    %2621 = vmatprep.subr.bf16.mxu0 %v2574
    %2622 = vmatpush1.bf16.msra.mxu0 %v2573
    %2623 = vmatprep.subr.bf16.mxu0 %v2570
    %2624 = vmatpush1.bf16.msra.mxu0 %v2569
    %2625 = vmatprep.subr.bf16.mxu0 %v2566
    %2626 = vmatpush1.bf16.msra.mxu0 %v2565
    %2627 = vmatprep.subr.bf16.mxu0 %v2562
    %2628 = vmatpush1.bf16.msra.mxu0 %v2561
    %2629 = vmatprep.subr.bf16.mxu0 %v2558
    %2630 = vmatpush1.bf16.msra.mxu0 %v2557
    %2631 = vmatprep.subr.bf16.mxu0 %v2554
    %2632 = vmatpush1.bf16.msra.mxu0 %v2553
    %2633 = vmatprep.subr.bf16.mxu0 0
    %2634 = vmatpush2.bf16.msra.mxu0 0
    %2635 = vmatprep.subr.bf16.mxu0 0
    %2636 = vmatpush2.bf16.msra.mxu0 0
    %2637 = vmatprep.subr.bf16.mxu0 0
    %2638 = vmatpush2.bf16.msra.mxu0 0
    %2639 = vmatprep.subr.bf16.mxu0 0
    %2640 = vmatpush2.bf16.msra.mxu0 0
    %2641 = vmatprep.subr.bf16.mxu0 0
    %2642 = vmatpush2.bf16.msra.mxu0 0
    %2643 = vmatprep.subr.bf16.mxu0 0
    %2644 = vmatpush2.bf16.msra.mxu0 0
    %2645 = vmatprep.subr.bf16.mxu0 0
    %2646 = vmatpush2.bf16.msra.mxu0 0
    %2647 = vmatprep.subr.bf16.mxu0 0
    %2648 = vmatpush2.bf16.msra.mxu0 0
    %2649 = vmatprep.mubr.bf16.mxu0 0
    %2650 = vmatmul.mubr.bf16.gmra.mxu0 0
    %v2651 = vpop.f32.mrf.mxu0
    %v2652 = vadd.f32 0.0, %v2651
    %v2653 = vpop.f32.mrf.mxu0
    %v2654 = vadd.f32 0.0, %v2653
    %v2655 = vpop.f32.mrf.mxu0
    %v2656 = vpop.f32.mrf.mxu0
    %2657 = vdwg.mxu0
    %2658 = vmatprep.subr.bf16.mxu0 %v2584
    %2659 = vmatpush1.bf16.msra.mxu0 %v2583
    %2660 = vmatprep.subr.bf16.mxu0 %v2580
    %2661 = vmatpush1.bf16.msra.mxu0 %v2579
    %2662 = vmatprep.subr.bf16.mxu0 %v2576
    %2663 = vmatpush1.bf16.msra.mxu0 %v2575
    %2664 = vmatprep.subr.bf16.mxu0 %v2572
    %2665 = vmatpush1.bf16.msra.mxu0 %v2571
    %2666 = vmatprep.subr.bf16.mxu0 %v2568
    %2667 = vmatpush1.bf16.msra.mxu0 %v2567
    %2668 = vmatprep.subr.bf16.mxu0 %v2564
    %2669 = vmatpush1.bf16.msra.mxu0 %v2563
    %2670 = vmatprep.subr.bf16.mxu0 %v2560
    %2671 = vmatpush1.bf16.msra.mxu0 %v2559
    %2672 = vmatprep.subr.bf16.mxu0 %v2556
    %2673 = vmatpush1.bf16.msra.mxu0 %v2555
    %2674 = vmatprep.subr.bf16.mxu0 0
    %2675 = vmatpush2.bf16.msra.mxu0 0
    %2676 = vmatprep.subr.bf16.mxu0 0
    %2677 = vmatpush2.bf16.msra.mxu0 0
    %2678 = vmatprep.subr.bf16.mxu0 0
    %2679 = vmatpush2.bf16.msra.mxu0 0
    %2680 = vmatprep.subr.bf16.mxu0 0
    %2681 = vmatpush2.bf16.msra.mxu0 0
    %2682 = vmatprep.subr.bf16.mxu0 0
    %2683 = vmatpush2.bf16.msra.mxu0 0
    %2684 = vmatprep.subr.bf16.mxu0 0
    %2685 = vmatpush2.bf16.msra.mxu0 0
    %2686 = vmatprep.subr.bf16.mxu0 0
    %2687 = vmatpush2.bf16.msra.mxu0 0
    %2688 = vmatprep.subr.bf16.mxu0 0
    %2689 = vmatpush2.bf16.msra.mxu0 0
    %2690 = vmatprep.mubr.bf16.mxu0 0
    %2691 = vmatmul.mubr.bf16.gmra.mxu0 0
    %v2692 = vpop.f32.mrf.mxu0
    %v2693 = vadd.f32 0.0, %v2692
    %v2694 = vpop.f32.mrf.mxu0
    %v2695 = vadd.f32 0.0, %v2694
    %v2696 = vpop.f32.mrf.mxu0
    %v2697 = vpop.f32.mrf.mxu0
    %2698 = vdwg.mxu0
    %v2699 = vadd.f32 %v1463, %v2652
    %v2700 = vadd.f32 %v1465, %v2654
    %v2701 = vadd.f32 %v1526, %v2693
    %v2702 = vadd.f32 %v1528, %v2695
    %v2703 = vxor.u32 %v2699, 2147483648
    %v2704 = vmul.f32 %v2703, 1.442695
    %v2705 = vpow.pop %v2704
    %v2706 = vadd.f32 %v2705, 1.0
    %v2707 = vrcp.pop %v2706
    %v2708 = vmul.f32 1.0, %v2707
    %v2709 = vxor.u32 %v2700, 2147483648
    %v2710 = vmul.f32 %v2709, 1.442695
    %v2711 = vpow.pop %v2710
    %v2712 = vadd.f32 %v2711, 1.0
    %v2713 = vrcp.pop %v2712
    %v2714 = vmul.f32 1.0, %v2713
    %v2715 = vtanh.pop %v2701
    %v2716 = vxor.u32 %v2702, 2147483648
    %v2717 = vmul.f32 %v2716, 1.442695
    %v2718 = vpow.pop %v2717
    %v2719 = vadd.f32 %v2718, 1.0
    %v2720 = vrcp.pop %v2719
    %v2721 = vmul.f32 1.0, %v2720
    %v2722 = vmul.f32 %v2714, 0.0
    %v2723 = vmul.f32 %v2708, %v2715
    %v2724 = vadd.f32 %v2722, %v2723
    %v2725 = vtanh.pop %v2724
    %v2726 = vmul.f32 %v2721, %v2725
    %2727 = vst [vmem:[#allocation4 + $0x28] sm:$0xff] %v2726
    %v2728 = vpack.c.bf16 %v2726, %v2726
    %2729 = vmatprep.subr.bf16.mxu0 %v2582
    %2730 = vmatpush1.bf16.msra.mxu0 %v2581
    %2731 = vmatprep.subr.bf16.mxu0 %v2578
    %2732 = vmatpush1.bf16.msra.mxu0 %v2577
    %2733 = vmatprep.subr.bf16.mxu0 %v2574
    %2734 = vmatpush1.bf16.msra.mxu0 %v2573
    %2735 = vmatprep.subr.bf16.mxu0 %v2570
    %2736 = vmatpush1.bf16.msra.mxu0 %v2569
    %2737 = vmatprep.subr.bf16.mxu0 %v2566
    %2738 = vmatpush1.bf16.msra.mxu0 %v2565
    %2739 = vmatprep.subr.bf16.mxu0 %v2562
    %2740 = vmatpush1.bf16.msra.mxu0 %v2561
    %2741 = vmatprep.subr.bf16.mxu0 %v2558
    %2742 = vmatpush1.bf16.msra.mxu0 %v2557
    %2743 = vmatprep.subr.bf16.mxu0 %v2554
    %2744 = vmatpush1.bf16.msra.mxu0 %v2553
    %2745 = vmatprep.subr.bf16.mxu0 0
    %2746 = vmatpush2.bf16.msra.mxu0 0
    %2747 = vmatprep.subr.bf16.mxu0 0
    %2748 = vmatpush2.bf16.msra.mxu0 0
    %2749 = vmatprep.subr.bf16.mxu0 0
    %2750 = vmatpush2.bf16.msra.mxu0 0
    %2751 = vmatprep.subr.bf16.mxu0 0
    %2752 = vmatpush2.bf16.msra.mxu0 0
    %2753 = vmatprep.subr.bf16.mxu0 0
    %2754 = vmatpush2.bf16.msra.mxu0 0
    %2755 = vmatprep.subr.bf16.mxu0 0
    %2756 = vmatpush2.bf16.msra.mxu0 0
    %2757 = vmatprep.subr.bf16.mxu0 0
    %2758 = vmatpush2.bf16.msra.mxu0 0
    %2759 = vmatprep.subr.bf16.mxu0 0
    %2760 = vmatpush2.bf16.msra.mxu0 0
    %2761 = vmatprep.mubr.bf16.mxu0 0
    %2762 = vmatmul.mubr.bf16.gmra.mxu0 %v2728
    %v2763 = vpop.f32.mrf.mxu0
    %v2764 = vadd.f32 0.0, %v2763
    %v2765 = vpop.f32.mrf.mxu0
    %v2766 = vadd.f32 0.0, %v2765
    %v2767 = vpop.f32.mrf.mxu0
    %v2768 = vpop.f32.mrf.mxu0
    %2769 = vdwg.mxu0
    %2770 = vmatprep.subr.bf16.mxu0 %v2584
    %2771 = vmatpush1.bf16.msra.mxu0 %v2583
    %2772 = vmatprep.subr.bf16.mxu0 %v2580
    %2773 = vmatpush1.bf16.msra.mxu0 %v2579
    %2774 = vmatprep.subr.bf16.mxu0 %v2576
    %2775 = vmatpush1.bf16.msra.mxu0 %v2575
    %2776 = vmatprep.subr.bf16.mxu0 %v2572
    %2777 = vmatpush1.bf16.msra.mxu0 %v2571
    %2778 = vmatprep.subr.bf16.mxu0 %v2568
    %2779 = vmatpush1.bf16.msra.mxu0 %v2567
    %2780 = vmatprep.subr.bf16.mxu0 %v2564
    %2781 = vmatpush1.bf16.msra.mxu0 %v2563
    %2782 = vmatprep.subr.bf16.mxu0 %v2560
    %2783 = vmatpush1.bf16.msra.mxu0 %v2559
    %2784 = vmatprep.subr.bf16.mxu0 %v2556
    %2785 = vmatpush1.bf16.msra.mxu0 %v2555
    %2786 = vmatprep.subr.bf16.mxu0 0
    %2787 = vmatpush2.bf16.msra.mxu0 0
    %2788 = vmatprep.subr.bf16.mxu0 0
    %2789 = vmatpush2.bf16.msra.mxu0 0
    %2790 = vmatprep.subr.bf16.mxu0 0
    %2791 = vmatpush2.bf16.msra.mxu0 0
    %2792 = vmatprep.subr.bf16.mxu0 0
    %2793 = vmatpush2.bf16.msra.mxu0 0
    %2794 = vmatprep.subr.bf16.mxu0 0
    %2795 = vmatpush2.bf16.msra.mxu0 0
    %2796 = vmatprep.subr.bf16.mxu0 0
    %2797 = vmatpush2.bf16.msra.mxu0 0
    %2798 = vmatprep.subr.bf16.mxu0 0
    %2799 = vmatpush2.bf16.msra.mxu0 0
    %2800 = vmatprep.subr.bf16.mxu0 0
    %2801 = vmatpush2.bf16.msra.mxu0 0
    %2802 = vmatprep.mubr.bf16.mxu0 0
    %2803 = vmatmul.mubr.bf16.gmra.mxu0 %v2728
    %v2804 = vpop.f32.mrf.mxu0
    %v2805 = vadd.f32 0.0, %v2804
    %v2806 = vpop.f32.mrf.mxu0
    %v2807 = vadd.f32 0.0, %v2806
    %v2808 = vpop.f32.mrf.mxu0
    %v2809 = vpop.f32.mrf.mxu0
    %2810 = vdwg.mxu0
    %v2811 = vadd.f32 %v1459, %v2764
    %v2812 = vadd.f32 %v1461, %v2766
    %v2813 = vadd.f32 %v1522, %v2805
    %v2814 = vadd.f32 %v1524, %v2807
    %v2815 = vxor.u32 %v2811, 2147483648
    %v2816 = vmul.f32 %v2815, 1.442695
    %v2817 = vpow.pop %v2816
    %v2818 = vadd.f32 %v2817, 1.0
    %v2819 = vrcp.pop %v2818
    %v2820 = vmul.f32 1.0, %v2819
    %v2821 = vxor.u32 %v2812, 2147483648
    %v2822 = vmul.f32 %v2821, 1.442695
    %v2823 = vpow.pop %v2822
    %v2824 = vadd.f32 %v2823, 1.0
    %v2825 = vrcp.pop %v2824
    %v2826 = vmul.f32 1.0, %v2825
    %v2827 = vtanh.pop %v2813
    %v2828 = vxor.u32 %v2814, 2147483648
    %v2829 = vmul.f32 %v2828, 1.442695
    %v2830 = vpow.pop %v2829
    %v2831 = vadd.f32 %v2830, 1.0
    %v2832 = vrcp.pop %v2831
    %v2833 = vmul.f32 1.0, %v2832
    %v2834 = vmul.f32 %v2826, %v2724
    %v2835 = vmul.f32 %v2820, %v2827
    %v2836 = vadd.f32 %v2834, %v2835
    %v2837 = vtanh.pop %v2836
    %v2838 = vmul.f32 %v2833, %v2837
    %2839 = vst [vmem:[#allocation4 + $0x20] sm:$0xff] %v2838
    %v2840 = vpack.c.bf16 %v2838, %v2838
    %2841 = vmatprep.subr.bf16.mxu0 %v2582
    %2842 = vmatpush1.bf16.msra.mxu0 %v2581
    %2843 = vmatprep.subr.bf16.mxu0 %v2578
    %2844 = vmatpush1.bf16.msra.mxu0 %v2577
    %2845 = vmatprep.subr.bf16.mxu0 %v2574
    %2846 = vmatpush1.bf16.msra.mxu0 %v2573
    %2847 = vmatprep.subr.bf16.mxu0 %v2570
    %2848 = vmatpush1.bf16.msra.mxu0 %v2569
    %2849 = vmatprep.subr.bf16.mxu0 %v2566
    %2850 = vmatpush1.bf16.msra.mxu0 %v2565
    %2851 = vmatprep.subr.bf16.mxu0 %v2562
    %2852 = vmatpush1.bf16.msra.mxu0 %v2561
    %2853 = vmatprep.subr.bf16.mxu0 %v2558
    %2854 = vmatpush1.bf16.msra.mxu0 %v2557
    %2855 = vmatprep.subr.bf16.mxu0 %v2554
    %2856 = vmatpush1.bf16.msra.mxu0 %v2553
    %2857 = vmatprep.subr.bf16.mxu0 0
    %2858 = vmatpush2.bf16.msra.mxu0 0
    %2859 = vmatprep.subr.bf16.mxu0 0
    %2860 = vmatpush2.bf16.msra.mxu0 0
    %2861 = vmatprep.subr.bf16.mxu0 0
    %2862 = vmatpush2.bf16.msra.mxu0 0
    %2863 = vmatprep.subr.bf16.mxu0 0
    %2864 = vmatpush2.bf16.msra.mxu0 0
    %2865 = vmatprep.subr.bf16.mxu0 0
    %2866 = vmatpush2.bf16.msra.mxu0 0
    %2867 = vmatprep.subr.bf16.mxu0 0
    %2868 = vmatpush2.bf16.msra.mxu0 0
    %2869 = vmatprep.subr.bf16.mxu0 0
    %2870 = vmatpush2.bf16.msra.mxu0 0
    %2871 = vmatprep.subr.bf16.mxu0 0
    %2872 = vmatpush2.bf16.msra.mxu0 0
    %2873 = vmatprep.mubr.bf16.mxu0 0
    %2874 = vmatmul.mubr.bf16.gmra.mxu0 %v2840
    %v2875 = vpop.f32.mrf.mxu0
    %v2876 = vadd.f32 0.0, %v2875
    %v2877 = vpop.f32.mrf.mxu0
    %v2878 = vadd.f32 0.0, %v2877
    %v2879 = vpop.f32.mrf.mxu0
    %v2880 = vpop.f32.mrf.mxu0
    %2881 = vdwg.mxu0
    %2882 = vmatprep.subr.bf16.mxu0 %v2584
    %2883 = vmatpush1.bf16.msra.mxu0 %v2583
    %2884 = vmatprep.subr.bf16.mxu0 %v2580
    %2885 = vmatpush1.bf16.msra.mxu0 %v2579
    %2886 = vmatprep.subr.bf16.mxu0 %v2576
    %2887 = vmatpush1.bf16.msra.mxu0 %v2575
    %2888 = vmatprep.subr.bf16.mxu0 %v2572
    %2889 = vmatpush1.bf16.msra.mxu0 %v2571
    %2890 = vmatprep.subr.bf16.mxu0 %v2568
    %2891 = vmatpush1.bf16.msra.mxu0 %v2567
    %2892 = vmatprep.subr.bf16.mxu0 %v2564
    %2893 = vmatpush1.bf16.msra.mxu0 %v2563
    %2894 = vmatprep.subr.bf16.mxu0 %v2560
    %2895 = vmatpush1.bf16.msra.mxu0 %v2559
    %2896 = vmatprep.subr.bf16.mxu0 %v2556
    %2897 = vmatpush1.bf16.msra.mxu0 %v2555
    %2898 = vmatprep.subr.bf16.mxu0 0
    %2899 = vmatpush2.bf16.msra.mxu0 0
    %2900 = vmatprep.subr.bf16.mxu0 0
    %2901 = vmatpush2.bf16.msra.mxu0 0
    %2902 = vmatprep.subr.bf16.mxu0 0
    %2903 = vmatpush2.bf16.msra.mxu0 0
    %2904 = vmatprep.subr.bf16.mxu0 0
    %2905 = vmatpush2.bf16.msra.mxu0 0
    %2906 = vmatprep.subr.bf16.mxu0 0
    %2907 = vmatpush2.bf16.msra.mxu0 0
    %2908 = vmatprep.subr.bf16.mxu0 0
    %2909 = vmatpush2.bf16.msra.mxu0 0
    %2910 = vmatprep.subr.bf16.mxu0 0
    %2911 = vmatpush2.bf16.msra.mxu0 0
    %2912 = vmatprep.subr.bf16.mxu0 0
    %2913 = vmatpush2.bf16.msra.mxu0 0
    %2914 = vmatprep.mubr.bf16.mxu0 0
    %2915 = vmatmul.mubr.bf16.gmra.mxu0 %v2840
    %v2916 = vpop.f32.mrf.mxu0
    %v2917 = vadd.f32 0.0, %v2916
    %v2918 = vpop.f32.mrf.mxu0
    %v2919 = vadd.f32 0.0, %v2918
    %v2920 = vpop.f32.mrf.mxu0
    %v2921 = vpop.f32.mrf.mxu0
    %2922 = vdwg.mxu0
    %v2923 = vadd.f32 %v1453, %v2876
    %v2924 = vadd.f32 %v1455, %v2878
    %v2925 = vadd.f32 %v1516, %v2917
    %v2926 = vadd.f32 %v1518, %v2919
    %v2927 = vxor.u32 %v2923, 2147483648
    %v2928 = vmul.f32 %v2927, 1.442695
    %v2929 = vpow.pop %v2928
    %v2930 = vadd.f32 %v2929, 1.0
    %v2931 = vrcp.pop %v2930
    %v2932 = vmul.f32 1.0, %v2931
    %v2933 = vxor.u32 %v2924, 2147483648
    %v2934 = vmul.f32 %v2933, 1.442695
    %v2935 = vpow.pop %v2934
    %v2936 = vadd.f32 %v2935, 1.0
    %v2937 = vrcp.pop %v2936
    %v2938 = vmul.f32 1.0, %v2937
    %v2939 = vtanh.pop %v2925
    %v2940 = vxor.u32 %v2926, 2147483648
    %v2941 = vmul.f32 %v2940, 1.442695
    %v2942 = vpow.pop %v2941
    %v2943 = vadd.f32 %v2942, 1.0
    %v2944 = vrcp.pop %v2943
    %v2945 = vmul.f32 1.0, %v2944
    %v2946 = vmul.f32 %v2938, %v2836
    %v2947 = vmul.f32 %v2932, %v2939
    %v2948 = vadd.f32 %v2946, %v2947
    %v2949 = vtanh.pop %v2948
    %v2950 = vmul.f32 %v2945, %v2949
    %2951 = vst [vmem:[#allocation4 + $0x18] sm:$0xff] %v2950
    %v2952 = vpack.c.bf16 %v2950, %v2950
    %2953 = vmatprep.subr.bf16.mxu0 %v2582
    %2954 = vmatpush1.bf16.msra.mxu0 %v2581
    %2955 = vmatprep.subr.bf16.mxu0 %v2578
    %2956 = vmatpush1.bf16.msra.mxu0 %v2577
    %2957 = vmatprep.subr.bf16.mxu0 %v2574
    %2958 = vmatpush1.bf16.msra.mxu0 %v2573
    %2959 = vmatprep.subr.bf16.mxu0 %v2570
    %2960 = vmatpush1.bf16.msra.mxu0 %v2569
    %2961 = vmatprep.subr.bf16.mxu0 %v2566
    %2962 = vmatpush1.bf16.msra.mxu0 %v2565
    %2963 = vmatprep.subr.bf16.mxu0 %v2562
    %2964 = vmatpush1.bf16.msra.mxu0 %v2561
    %2965 = vmatprep.subr.bf16.mxu0 %v2558
    %2966 = vmatpush1.bf16.msra.mxu0 %v2557
    %2967 = vmatprep.subr.bf16.mxu0 %v2554
    %2968 = vmatpush1.bf16.msra.mxu0 %v2553
    %2969 = vmatprep.subr.bf16.mxu0 0
    %2970 = vmatpush2.bf16.msra.mxu0 0
    %2971 = vmatprep.subr.bf16.mxu0 0
    %2972 = vmatpush2.bf16.msra.mxu0 0
    %2973 = vmatprep.subr.bf16.mxu0 0
    %2974 = vmatpush2.bf16.msra.mxu0 0
    %2975 = vmatprep.subr.bf16.mxu0 0
    %2976 = vmatpush2.bf16.msra.mxu0 0
    %2977 = vmatprep.subr.bf16.mxu0 0
    %2978 = vmatpush2.bf16.msra.mxu0 0
    %2979 = vmatprep.subr.bf16.mxu0 0
    %2980 = vmatpush2.bf16.msra.mxu0 0
    %2981 = vmatprep.subr.bf16.mxu0 0
    %2982 = vmatpush2.bf16.msra.mxu0 0
    %2983 = vmatprep.subr.bf16.mxu0 0
    %2984 = vmatpush2.bf16.msra.mxu0 0
    %2985 = vmatprep.mubr.bf16.mxu0 0
    %2986 = vmatmul.mubr.bf16.gmra.mxu0 %v2952
    %v2987 = vpop.f32.mrf.mxu0
    %v2988 = vadd.f32 0.0, %v2987
    %v2989 = vpop.f32.mrf.mxu0
    %v2990 = vadd.f32 0.0, %v2989
    %v2991 = vpop.f32.mrf.mxu0
    %v2992 = vpop.f32.mrf.mxu0
    %2993 = vdwg.mxu0
    %2994 = vmatprep.subr.bf16.mxu0 %v2584
    %2995 = vmatpush1.bf16.msra.mxu0 %v2583
    %2996 = vmatprep.subr.bf16.mxu0 %v2580
    %2997 = vmatpush1.bf16.msra.mxu0 %v2579
    %2998 = vmatprep.subr.bf16.mxu0 %v2576
    %2999 = vmatpush1.bf16.msra.mxu0 %v2575
    %3000 = vmatprep.subr.bf16.mxu0 %v2572
    %3001 = vmatpush1.bf16.msra.mxu0 %v2571
    %3002 = vmatprep.subr.bf16.mxu0 %v2568
    %3003 = vmatpush1.bf16.msra.mxu0 %v2567
    %3004 = vmatprep.subr.bf16.mxu0 %v2564
    %3005 = vmatpush1.bf16.msra.mxu0 %v2563
    %3006 = vmatprep.subr.bf16.mxu0 %v2560
    %3007 = vmatpush1.bf16.msra.mxu0 %v2559
    %3008 = vmatprep.subr.bf16.mxu0 %v2556
    %3009 = vmatpush1.bf16.msra.mxu0 %v2555
    %3010 = vmatprep.subr.bf16.mxu0 0
    %3011 = vmatpush2.bf16.msra.mxu0 0
    %3012 = vmatprep.subr.bf16.mxu0 0
    %3013 = vmatpush2.bf16.msra.mxu0 0
    %3014 = vmatprep.subr.bf16.mxu0 0
    %3015 = vmatpush2.bf16.msra.mxu0 0
    %3016 = vmatprep.subr.bf16.mxu0 0
    %3017 = vmatpush2.bf16.msra.mxu0 0
    %3018 = vmatprep.subr.bf16.mxu0 0
    %3019 = vmatpush2.bf16.msra.mxu0 0
    %3020 = vmatprep.subr.bf16.mxu0 0
    %3021 = vmatpush2.bf16.msra.mxu0 0
    %3022 = vmatprep.subr.bf16.mxu0 0
    %3023 = vmatpush2.bf16.msra.mxu0 0
    %3024 = vmatprep.subr.bf16.mxu0 0
    %3025 = vmatpush2.bf16.msra.mxu0 0
    %3026 = vmatprep.mubr.bf16.mxu0 0
    %3027 = vmatmul.mubr.bf16.gmra.mxu0 %v2952
    %v3028 = vpop.f32.mrf.mxu0
    %v3029 = vadd.f32 0.0, %v3028
    %v3030 = vpop.f32.mrf.mxu0
    %v3031 = vadd.f32 0.0, %v3030
    %v3032 = vpop.f32.mrf.mxu0
    %v3033 = vpop.f32.mrf.mxu0
    %3034 = vdwg.mxu0
    %v3035 = vadd.f32 %v1449, %v2988
    %v3036 = vadd.f32 %v1451, %v2990
    %v3037 = vadd.f32 %v1512, %v3029
    %v3038 = vadd.f32 %v1514, %v3031
    %v3039 = vxor.u32 %v3035, 2147483648
    %v3040 = vmul.f32 %v3039, 1.442695
    %v3041 = vpow.pop %v3040
    %v3042 = vadd.f32 %v3041, 1.0
    %v3043 = vrcp.pop %v3042
    %v3044 = vmul.f32 1.0, %v3043
    %v3045 = vxor.u32 %v3036, 2147483648
    %v3046 = vmul.f32 %v3045, 1.442695
    %v3047 = vpow.pop %v3046
    %v3048 = vadd.f32 %v3047, 1.0
    %v3049 = vrcp.pop %v3048
    %v3050 = vmul.f32 1.0, %v3049
    %v3051 = vtanh.pop %v3037
    %v3052 = vxor.u32 %v3038, 2147483648
    %v3053 = vmul.f32 %v3052, 1.442695
    %v3054 = vpow.pop %v3053
    %v3055 = vadd.f32 %v3054, 1.0
    %v3056 = vrcp.pop %v3055
    %v3057 = vmul.f32 1.0, %v3056
    %v3058 = vmul.f32 %v3050, %v2948
    %v3059 = vmul.f32 %v3044, %v3051
    %v3060 = vadd.f32 %v3058, %v3059
    %v3061 = vtanh.pop %v3060
    %v3062 = vmul.f32 %v3057, %v3061
    %3063 = vst [vmem:[#allocation4 + $0x10] sm:$0xff] %v3062
    %v3064 = vpack.c.bf16 %v3062, %v3062
    %3065 = vmatprep.subr.bf16.mxu0 %v2582
    %3066 = vmatpush1.bf16.msra.mxu0 %v2581
    %3067 = vmatprep.subr.bf16.mxu0 %v2578
    %3068 = vmatpush1.bf16.msra.mxu0 %v2577
    %3069 = vmatprep.subr.bf16.mxu0 %v2574
    %3070 = vmatpush1.bf16.msra.mxu0 %v2573
    %3071 = vmatprep.subr.bf16.mxu0 %v2570
    %3072 = vmatpush1.bf16.msra.mxu0 %v2569
    %3073 = vmatprep.subr.bf16.mxu0 %v2566
    %3074 = vmatpush1.bf16.msra.mxu0 %v2565
    %3075 = vmatprep.subr.bf16.mxu0 %v2562
    %3076 = vmatpush1.bf16.msra.mxu0 %v2561
    %3077 = vmatprep.subr.bf16.mxu0 %v2558
    %3078 = vmatpush1.bf16.msra.mxu0 %v2557
    %3079 = vmatprep.subr.bf16.mxu0 %v2554
    %3080 = vmatpush1.bf16.msra.mxu0 %v2553
    %3081 = vmatprep.subr.bf16.mxu0 0
    %3082 = vmatpush2.bf16.msra.mxu0 0
    %3083 = vmatprep.subr.bf16.mxu0 0
    %3084 = vmatpush2.bf16.msra.mxu0 0
    %3085 = vmatprep.subr.bf16.mxu0 0
    %3086 = vmatpush2.bf16.msra.mxu0 0
    %3087 = vmatprep.subr.bf16.mxu0 0
    %3088 = vmatpush2.bf16.msra.mxu0 0
    %3089 = vmatprep.subr.bf16.mxu0 0
    %3090 = vmatpush2.bf16.msra.mxu0 0
    %3091 = vmatprep.subr.bf16.mxu0 0
    %3092 = vmatpush2.bf16.msra.mxu0 0
    %3093 = vmatprep.subr.bf16.mxu0 0
    %3094 = vmatpush2.bf16.msra.mxu0 0
    %3095 = vmatprep.subr.bf16.mxu0 0
    %3096 = vmatpush2.bf16.msra.mxu0 0
    %3097 = vmatprep.mubr.bf16.mxu0 0
    %3098 = vmatmul.mubr.bf16.gmra.mxu0 %v3064
    %v3099 = vpop.f32.mrf.mxu0
    %v3100 = vadd.f32 0.0, %v3099
    %v3101 = vpop.f32.mrf.mxu0
    %v3102 = vadd.f32 0.0, %v3101
    %v3103 = vpop.f32.mrf.mxu0
    %v3104 = vpop.f32.mrf.mxu0
    %3105 = vdwg.mxu0
    %3106 = vmatprep.subr.bf16.mxu0 %v2584
    %3107 = vmatpush1.bf16.msra.mxu0 %v2583
    %3108 = vmatprep.subr.bf16.mxu0 %v2580
    %3109 = vmatpush1.bf16.msra.mxu0 %v2579
    %3110 = vmatprep.subr.bf16.mxu0 %v2576
    %3111 = vmatpush1.bf16.msra.mxu0 %v2575
    %3112 = vmatprep.subr.bf16.mxu0 %v2572
    %3113 = vmatpush1.bf16.msra.mxu0 %v2571
    %3114 = vmatprep.subr.bf16.mxu0 %v2568
    %3115 = vmatpush1.bf16.msra.mxu0 %v2567
    %3116 = vmatprep.subr.bf16.mxu0 %v2564
    %3117 = vmatpush1.bf16.msra.mxu0 %v2563
    %3118 = vmatprep.subr.bf16.mxu0 %v2560
    %3119 = vmatpush1.bf16.msra.mxu0 %v2559
    %3120 = vmatprep.subr.bf16.mxu0 %v2556
    %3121 = vmatpush1.bf16.msra.mxu0 %v2555
    %3122 = vmatprep.subr.bf16.mxu0 0
    %3123 = vmatpush2.bf16.msra.mxu0 0
    %3124 = vmatprep.subr.bf16.mxu0 0
    %3125 = vmatpush2.bf16.msra.mxu0 0
    %3126 = vmatprep.subr.bf16.mxu0 0
    %3127 = vmatpush2.bf16.msra.mxu0 0
    %3128 = vmatprep.subr.bf16.mxu0 0
    %3129 = vmatpush2.bf16.msra.mxu0 0
    %3130 = vmatprep.subr.bf16.mxu0 0
    %3131 = vmatpush2.bf16.msra.mxu0 0
    %3132 = vmatprep.subr.bf16.mxu0 0
    %3133 = vmatpush2.bf16.msra.mxu0 0
    %3134 = vmatprep.subr.bf16.mxu0 0
    %3135 = vmatpush2.bf16.msra.mxu0 0
    %3136 = vmatprep.subr.bf16.mxu0 0
    %3137 = vmatpush2.bf16.msra.mxu0 0
    %3138 = vmatprep.mubr.bf16.mxu0 0
    %3139 = vmatmul.mubr.bf16.gmra.mxu0 %v3064
    %v3140 = vpop.f32.mrf.mxu0
    %v3141 = vadd.f32 0.0, %v3140
    %v3142 = vpop.f32.mrf.mxu0
    %v3143 = vadd.f32 0.0, %v3142
    %v3144 = vpop.f32.mrf.mxu0
    %v3145 = vpop.f32.mrf.mxu0
    %3146 = vdwg.mxu0
    %v3147 = vadd.f32 %v1443, %v3100
    %v3148 = vadd.f32 %v1445, %v3102
    %v3149 = vadd.f32 %v1506, %v3141
    %v3150 = vadd.f32 %v1508, %v3143
    %v3151 = vxor.u32 %v3147, 2147483648
    %v3152 = vmul.f32 %v3151, 1.442695
    %v3153 = vpow.pop %v3152
    %v3154 = vadd.f32 %v3153, 1.0
    %v3155 = vrcp.pop %v3154
    %v3156 = vmul.f32 1.0, %v3155
    %v3157 = vxor.u32 %v3148, 2147483648
    %v3158 = vmul.f32 %v3157, 1.442695
    %v3159 = vpow.pop %v3158
    %v3160 = vadd.f32 %v3159, 1.0
    %v3161 = vrcp.pop %v3160
    %v3162 = vmul.f32 1.0, %v3161
    %v3163 = vtanh.pop %v3149
    %v3164 = vxor.u32 %v3150, 2147483648
    %v3165 = vmul.f32 %v3164, 1.442695
    %v3166 = vpow.pop %v3165
    %v3167 = vadd.f32 %v3166, 1.0
    %v3168 = vrcp.pop %v3167
    %v3169 = vmul.f32 1.0, %v3168
    %v3170 = vmul.f32 %v3162, %v3060
    %v3171 = vmul.f32 %v3156, %v3163
    %v3172 = vadd.f32 %v3170, %v3171
    %v3173 = vtanh.pop %v3172
    %v3174 = vmul.f32 %v3169, %v3173
    %3175 = vst [vmem:[#allocation4 + $0x8] sm:$0xff] %v3174
    %v3176 = vpack.c.bf16 %v3174, %v3174
    %3177 = vmatprep.subr.bf16.mxu0 %v2582
    %3178 = vmatpush1.bf16.msra.mxu0 %v2581
    %3179 = vmatprep.subr.bf16.mxu0 %v2578
    %3180 = vmatpush1.bf16.msra.mxu0 %v2577
    %3181 = vmatprep.subr.bf16.mxu0 %v2574
    %3182 = vmatpush1.bf16.msra.mxu0 %v2573
    %3183 = vmatprep.subr.bf16.mxu0 %v2570
    %3184 = vmatpush1.bf16.msra.mxu0 %v2569
    %3185 = vmatprep.subr.bf16.mxu0 %v2566
    %3186 = vmatpush1.bf16.msra.mxu0 %v2565
    %3187 = vmatprep.subr.bf16.mxu0 %v2562
    %3188 = vmatpush1.bf16.msra.mxu0 %v2561
    %3189 = vmatprep.subr.bf16.mxu0 %v2558
    %3190 = vmatpush1.bf16.msra.mxu0 %v2557
    %3191 = vmatprep.subr.bf16.mxu0 %v2554
    %3192 = vmatpush1.bf16.msra.mxu0 %v2553
    %3193 = vmatprep.subr.bf16.mxu0 0
    %3194 = vmatpush2.bf16.msra.mxu0 0
    %3195 = vmatprep.subr.bf16.mxu0 0
    %3196 = vmatpush2.bf16.msra.mxu0 0
    %3197 = vmatprep.subr.bf16.mxu0 0
    %3198 = vmatpush2.bf16.msra.mxu0 0
    %3199 = vmatprep.subr.bf16.mxu0 0
    %3200 = vmatpush2.bf16.msra.mxu0 0
    %3201 = vmatprep.subr.bf16.mxu0 0
    %3202 = vmatpush2.bf16.msra.mxu0 0
    %3203 = vmatprep.subr.bf16.mxu0 0
    %3204 = vmatpush2.bf16.msra.mxu0 0
    %3205 = vmatprep.subr.bf16.mxu0 0
    %3206 = vmatpush2.bf16.msra.mxu0 0
    %3207 = vmatprep.subr.bf16.mxu0 0
    %3208 = vmatpush2.bf16.msra.mxu0 0
    %3209 = vmatprep.mubr.bf16.mxu0 0
    %3210 = vmatmul.mubr.bf16.gmra.mxu0 %v3176
    %v3211 = vpop.f32.mrf.mxu0
    %v3212 = vadd.f32 0.0, %v3211
    %v3213 = vpop.f32.mrf.mxu0
    %v3214 = vadd.f32 0.0, %v3213
    %v3215 = vpop.f32.mrf.mxu0
    %v3216 = vpop.f32.mrf.mxu0
    %3217 = vdwg.mxu0
    %3218 = vmatprep.subr.bf16.mxu0 %v2584
    %3219 = vmatpush1.bf16.msra.mxu0 %v2583
    %3220 = vmatprep.subr.bf16.mxu0 %v2580
    %3221 = vmatpush1.bf16.msra.mxu0 %v2579
    %3222 = vmatprep.subr.bf16.mxu0 %v2576
    %3223 = vmatpush1.bf16.msra.mxu0 %v2575
    %3224 = vmatprep.subr.bf16.mxu0 %v2572
    %3225 = vmatpush1.bf16.msra.mxu0 %v2571
    %3226 = vmatprep.subr.bf16.mxu0 %v2568
    %3227 = vmatpush1.bf16.msra.mxu0 %v2567
    %3228 = vmatprep.subr.bf16.mxu0 %v2564
    %3229 = vmatpush1.bf16.msra.mxu0 %v2563
    %3230 = vmatprep.subr.bf16.mxu0 %v2560
    %3231 = vmatpush1.bf16.msra.mxu0 %v2559
    %3232 = vmatprep.subr.bf16.mxu0 %v2556
    %3233 = vmatpush1.bf16.msra.mxu0 %v2555
    %3234 = vmatprep.subr.bf16.mxu0 0
    %3235 = vmatpush2.bf16.msra.mxu0 0
    %3236 = vmatprep.subr.bf16.mxu0 0
    %3237 = vmatpush2.bf16.msra.mxu0 0
    %3238 = vmatprep.subr.bf16.mxu0 0
    %3239 = vmatpush2.bf16.msra.mxu0 0
    %3240 = vmatprep.subr.bf16.mxu0 0
    %3241 = vmatpush2.bf16.msra.mxu0 0
    %3242 = vmatprep.subr.bf16.mxu0 0
    %3243 = vmatpush2.bf16.msra.mxu0 0
    %3244 = vmatprep.subr.bf16.mxu0 0
    %3245 = vmatpush2.bf16.msra.mxu0 0
    %3246 = vmatprep.subr.bf16.mxu0 0
    %3247 = vmatpush2.bf16.msra.mxu0 0
    %3248 = vmatprep.subr.bf16.mxu0 0
    %3249 = vmatpush2.bf16.msra.mxu0 0
    %3250 = vmatprep.mubr.bf16.mxu0 0
    %3251 = vmatmul.mubr.bf16.gmra.mxu0 %v3176
    %v3252 = vpop.f32.mrf.mxu0
    %v3253 = vadd.f32 0.0, %v3252
    %v3254 = vpop.f32.mrf.mxu0
    %v3255 = vadd.f32 0.0, %v3254
    %v3256 = vpop.f32.mrf.mxu0
    %v3257 = vpop.f32.mrf.mxu0
    %3258 = vdwg.mxu0
    %v3259 = vadd.f32 %v1439, %v3212
    %v3260 = vadd.f32 %v1441, %v3214
    %v3261 = vadd.f32 %v1502, %v3253
    %v3262 = vadd.f32 %v1504, %v3255
    %v3263 = vxor.u32 %v3259, 2147483648
    %v3264 = vmul.f32 %v3263, 1.442695
    %v3265 = vpow.pop %v3264
    %v3266 = vadd.f32 %v3265, 1.0
    %v3267 = vrcp.pop %v3266
    %v3268 = vmul.f32 1.0, %v3267
    %v3269 = vxor.u32 %v3260, 2147483648
    %v3270 = vmul.f32 %v3269, 1.442695
    %v3271 = vpow.pop %v3270
    %v3272 = vadd.f32 %v3271, 1.0
    %v3273 = vrcp.pop %v3272
    %v3274 = vmul.f32 1.0, %v3273
    %v3275 = vtanh.pop %v3261
    %v3276 = vxor.u32 %v3262, 2147483648
    %v3277 = vmul.f32 %v3276, 1.442695
    %v3278 = vpow.pop %v3277
    %v3279 = vadd.f32 %v3278, 1.0
    %v3280 = vrcp.pop %v3279
    %v3281 = vmul.f32 1.0, %v3280
    %v3282 = vmul.f32 %v3274, %v3172
    %v3283 = vmul.f32 %v3268, %v3275
    %v3284 = vadd.f32 %v3282, %v3283
    %v3285 = vtanh.pop %v3284
    %v3286 = vmul.f32 %v3281, %v3285
    %3287 = vst [vmem:[#allocation4] sm:$0xff] %v3286
    %v3288 = vld [vmem:[#allocation3] sm:$0xff]
    %v3289 = vld [vmem:[#allocation3 + $0x8] sm:$0xff]
    %v3290 = vld [vmem:[#allocation3 + $0x10] sm:$0xff]
    %v3291 = vld [vmem:[#allocation3 + $0x18] sm:$0xff]
    %v3292 = vld [vmem:[#allocation3 + $0x20] sm:$0xff]
    %v3293 = vld [vmem:[#allocation3 + $0x28] sm:$0xff]
    %v3294 = vpack.c.bf16 %v3289, %v3288
    %v3295 = vpack.c.bf16 %v3291, %v3290
    %v3296 = vpack.c.bf16 %v3293, %v3292
    %v3297 = vld [vmem:[#allocation10] sm:$0xff]
    %v3298 = vld [vmem:[#allocation10 + $0x8] sm:$0xff]
    %v3299 = vld [vmem:[#allocation10 + $0x10] sm:$0xff]
    %v3300 = vld [vmem:[#allocation10 + $0x18] sm:$0xff]
    %v3301 = vld [vmem:[#allocation10 + $0x20] sm:$0xff]
    %v3302 = vld [vmem:[#allocation10 + $0x28] sm:$0xff]
    %v3303 = vld [vmem:[#allocation10 + $0x30] sm:$0xff]
    %v3304 = vld [vmem:[#allocation10 + $0x38] sm:$0xff]
    %v3305 = vld [vmem:[#allocation10 + $0x40] sm:$0xff]
    %v3306 = vld [vmem:[#allocation10 + $0x48] sm:$0xff]
    %v3307 = vld [vmem:[#allocation10 + $0x50] sm:$0xff]
    %v3308 = vld [vmem:[#allocation10 + $0x58] sm:$0xff]
    %v3309 = vld [vmem:[#allocation10 + $0x60] sm:$0xff]
    %v3310 = vld [vmem:[#allocation10 + $0x68] sm:$0xff]
    %v3311 = vld [vmem:[#allocation10 + $0x70] sm:$0xff]
    %v3312 = vld [vmem:[#allocation10 + $0x78] sm:$0xff]
    %v3313 = vld [vmem:[#allocation10 + $0x80] sm:$0xff]
    %v3314 = vld [vmem:[#allocation10 + $0x88] sm:$0xff]
    %v3315 = vld [vmem:[#allocation10 + $0x90] sm:$0xff]
    %v3316 = vld [vmem:[#allocation10 + $0x98] sm:$0xff]
    %v3317 = vld [vmem:[#allocation10 + $0xa0] sm:$0xff]
    %v3318 = vld [vmem:[#allocation10 + $0xa8] sm:$0xff]
    %v3319 = vld [vmem:[#allocation10 + $0xb0] sm:$0xff]
    %v3320 = vld [vmem:[#allocation10 + $0xb8] sm:$0xff]
    %v3321 = vld [vmem:[#allocation10 + $0xc0] sm:$0xff]
    %v3322 = vld [vmem:[#allocation10 + $0xc8] sm:$0xff]
    %v3323 = vld [vmem:[#allocation10 + $0xd0] sm:$0xff]
    %v3324 = vld [vmem:[#allocation10 + $0xd8] sm:$0xff]
    %v3325 = vld [vmem:[#allocation10 + $0xe0] sm:$0xff]
    %v3326 = vld [vmem:[#allocation10 + $0xe8] sm:$0xff]
    %v3327 = vld [vmem:[#allocation10 + $0xf0] sm:$0xff]
    %v3328 = vld [vmem:[#allocation10 + $0xf8] sm:$0xff]
    %v3329 = vld [vmem:[#allocation4] sm:$0xff]
    %v3330 = vld [vmem:[#allocation4 + $0x8] sm:$0xff]
    %v3331 = vld [vmem:[#allocation4 + $0x10] sm:$0xff]
    %v3332 = vld [vmem:[#allocation4 + $0x18] sm:$0xff]
    %v3333 = vld [vmem:[#allocation4 + $0x20] sm:$0xff]
    %v3334 = vld [vmem:[#allocation4 + $0x28] sm:$0xff]
    %v3335 = vpack.c.bf16 %v3330, %v3329
    %v3336 = vpack.c.bf16 %v3332, %v3331
    %v3337 = vpack.c.bf16 %v3334, %v3333
    %v3338 = vld [vmem:[#allocation12] sm:$0xff]
    %v3339 = vld [vmem:[#allocation12 + $0x8] sm:$0xff]
    %v3340 = vld [vmem:[#allocation12 + $0x10] sm:$0xff]
    %v3341 = vld [vmem:[#allocation12 + $0x18] sm:$0xff]
    %v3342 = vld [vmem:[#allocation12 + $0x20] sm:$0xff]
    %v3343 = vld [vmem:[#allocation12 + $0x28] sm:$0xff]
    %v3344 = vld [vmem:[#allocation12 + $0x30] sm:$0xff]
    %v3345 = vld [vmem:[#allocation12 + $0x38] sm:$0xff]
    %v3346 = vld [vmem:[#allocation12 + $0x40] sm:$0xff]
    %v3347 = vld [vmem:[#allocation12 + $0x48] sm:$0xff]
    %v3348 = vld [vmem:[#allocation12 + $0x50] sm:$0xff]
    %v3349 = vld [vmem:[#allocation12 + $0x58] sm:$0xff]
    %v3350 = vld [vmem:[#allocation12 + $0x60] sm:$0xff]
    %v3351 = vld [vmem:[#allocation12 + $0x68] sm:$0xff]
    %v3352 = vld [vmem:[#allocation12 + $0x70] sm:$0xff]
    %v3353 = vld [vmem:[#allocation12 + $0x78] sm:$0xff]
    %v3354 = vld [vmem:[#allocation12 + $0x80] sm:$0xff]
    %v3355 = vld [vmem:[#allocation12 + $0x88] sm:$0xff]
    %v3356 = vld [vmem:[#allocation12 + $0x90] sm:$0xff]
    %v3357 = vld [vmem:[#allocation12 + $0x98] sm:$0xff]
    %v3358 = vld [vmem:[#allocation12 + $0xa0] sm:$0xff]
    %v3359 = vld [vmem:[#allocation12 + $0xa8] sm:$0xff]
    %v3360 = vld [vmem:[#allocation12 + $0xb0] sm:$0xff]
    %v3361 = vld [vmem:[#allocation12 + $0xb8] sm:$0xff]
    %v3362 = vld [vmem:[#allocation12 + $0xc0] sm:$0xff]
    %v3363 = vld [vmem:[#allocation12 + $0xc8] sm:$0xff]
    %v3364 = vld [vmem:[#allocation12 + $0xd0] sm:$0xff]
    %v3365 = vld [vmem:[#allocation12 + $0xd8] sm:$0xff]
    %v3366 = vld [vmem:[#allocation12 + $0xe0] sm:$0xff]
    %v3367 = vld [vmem:[#allocation12 + $0xe8] sm:$0xff]
    %v3368 = vld [vmem:[#allocation12 + $0xf0] sm:$0xff]
    %v3369 = vld [vmem:[#allocation12 + $0xf8] sm:$0xff]
    %v3402 = vunpack.c.l.b16 %v3338
    %v3403 = vunpack.c.h.b16 %v3338
    %v3404 = vunpack.c.l.b16 %v3339
    %v3405 = vunpack.c.h.b16 %v3339
    %v3406 = vunpack.c.l.b16 %v3340
    %v3407 = vunpack.c.h.b16 %v3340
    %v3408 = vunpack.c.l.b16 %v3341
    %v3409 = vunpack.c.h.b16 %v3341
    %v3410 = vunpack.c.l.b16 %v3342
    %v3411 = vunpack.c.h.b16 %v3342
    %v3412 = vunpack.c.l.b16 %v3343
    %v3413 = vunpack.c.h.b16 %v3343
    %v3414 = vunpack.c.l.b16 %v3344
    %v3415 = vunpack.c.h.b16 %v3344
    %v3416 = vunpack.c.l.b16 %v3345
    %v3417 = vunpack.c.h.b16 %v3345
    %v3418 = vunpack.c.l.b16 %v3346
    %v3419 = vunpack.c.h.b16 %v3346
    %v3420 = vunpack.c.l.b16 %v3347
    %v3421 = vunpack.c.h.b16 %v3347
    %v3422 = vunpack.c.l.b16 %v3348
    %v3423 = vunpack.c.h.b16 %v3348
    %v3424 = vunpack.c.l.b16 %v3349
    %v3425 = vunpack.c.h.b16 %v3349
    %v3426 = vunpack.c.l.b16 %v3350
    %v3427 = vunpack.c.h.b16 %v3350
    %v3428 = vunpack.c.l.b16 %v3351
    %v3429 = vunpack.c.h.b16 %v3351
    %v3430 = vunpack.c.l.b16 %v3352
    %v3431 = vunpack.c.h.b16 %v3352
    %v3432 = vunpack.c.l.b16 %v3353
    %v3433 = vunpack.c.h.b16 %v3353
    %v3434 = vunpack.c.l.b16 %v3354
    %v3435 = vunpack.c.h.b16 %v3354
    %v3436 = vunpack.c.l.b16 %v3355
    %v3437 = vunpack.c.h.b16 %v3355
    %v3438 = vunpack.c.l.b16 %v3356
    %v3439 = vunpack.c.h.b16 %v3356
    %v3440 = vunpack.c.l.b16 %v3357
    %v3441 = vunpack.c.h.b16 %v3357
    %v3442 = vunpack.c.l.b16 %v3358
    %v3443 = vunpack.c.h.b16 %v3358
    %v3444 = vunpack.c.l.b16 %v3359
    %v3445 = vunpack.c.h.b16 %v3359
    %v3446 = vunpack.c.l.b16 %v3360
    %v3447 = vunpack.c.h.b16 %v3360
    %v3448 = vunpack.c.l.b16 %v3361
    %v3449 = vunpack.c.h.b16 %v3361
    %v3450 = vunpack.c.l.b16 %v3362
    %v3451 = vunpack.c.h.b16 %v3362
    %v3452 = vunpack.c.l.b16 %v3363
    %v3453 = vunpack.c.h.b16 %v3363
    %v3454 = vunpack.c.l.b16 %v3364
    %v3455 = vunpack.c.h.b16 %v3364
    %v3456 = vunpack.c.l.b16 %v3365
    %v3457 = vunpack.c.h.b16 %v3365
    %v3458 = vunpack.c.l.b16 %v3366
    %v3459 = vunpack.c.h.b16 %v3366
    %v3460 = vunpack.c.l.b16 %v3367
    %v3461 = vunpack.c.h.b16 %v3367
    %v3462 = vunpack.c.l.b16 %v3368
    %v3463 = vunpack.c.h.b16 %v3368
    %v3464 = vunpack.c.l.b16 %v3369
    %v3465 = vunpack.c.h.b16 %v3369
    %v3466 = vpack.c.b16 %v3406, %v3402
    %v3467 = vpack.c.b16 %v3407, %v3403
    %v3468 = vpack.c.b16 %v3408, %v3404
    %v3469 = vpack.c.b16 %v3409, %v3405
    %v3470 = vpack.c.b16 %v3414, %v3410
    %v3471 = vpack.c.b16 %v3415, %v3411
    %v3472 = vpack.c.b16 %v3416, %v3412
    %v3473 = vpack.c.b16 %v3417, %v3413
    %v3474 = vpack.c.b16 %v3422, %v3418
    %v3475 = vpack.c.b16 %v3423, %v3419
    %v3476 = vpack.c.b16 %v3424, %v3420
    %v3477 = vpack.c.b16 %v3425, %v3421
    %v3478 = vpack.c.b16 %v3430, %v3426
    %v3479 = vpack.c.b16 %v3431, %v3427
    %v3480 = vpack.c.b16 %v3432, %v3428
    %v3481 = vpack.c.b16 %v3433, %v3429
    %v3482 = vpack.c.b16 %v3438, %v3434
    %v3483 = vpack.c.b16 %v3439, %v3435
    %v3484 = vpack.c.b16 %v3440, %v3436
    %v3485 = vpack.c.b16 %v3441, %v3437
    %v3486 = vpack.c.b16 %v3446, %v3442
    %v3487 = vpack.c.b16 %v3447, %v3443
    %v3488 = vpack.c.b16 %v3448, %v3444
    %v3489 = vpack.c.b16 %v3449, %v3445
    %v3490 = vpack.c.b16 %v3454, %v3450
    %v3491 = vpack.c.b16 %v3455, %v3451
    %v3492 = vpack.c.b16 %v3456, %v3452
    %v3493 = vpack.c.b16 %v3457, %v3453
    %v3494 = vpack.c.b16 %v3462, %v3458
    %v3495 = vpack.c.b16 %v3463, %v3459
    %v3496 = vpack.c.b16 %v3464, %v3460
    %v3497 = vpack.c.b16 %v3465, %v3461
    %3530 = vmatprep.subr.bf16.mxu0 %v3495
    %3531 = vmatpush1.bf16.msra.mxu0 %v3494
    %3532 = vmatprep.subr.bf16.mxu0 %v3491
    %3533 = vmatpush1.bf16.msra.mxu0 %v3490
    %3534 = vmatprep.subr.bf16.mxu0 %v3487
    %3535 = vmatpush1.bf16.msra.mxu0 %v3486
    %3536 = vmatprep.subr.bf16.mxu0 %v3483
    %3537 = vmatpush1.bf16.msra.mxu0 %v3482
    %3538 = vmatprep.subr.bf16.mxu0 %v3479
    %3539 = vmatpush1.bf16.msra.mxu0 %v3478
    %3540 = vmatprep.subr.bf16.mxu0 %v3475
    %3541 = vmatpush1.bf16.msra.mxu0 %v3474
    %3542 = vmatprep.subr.bf16.mxu0 %v3471
    %3543 = vmatpush1.bf16.msra.mxu0 %v3470
    %3544 = vmatprep.subr.bf16.mxu0 %v3467
    %3545 = vmatpush1.bf16.msra.mxu0 %v3466
    %3546 = vmatprep.subr.bf16.mxu0 0
    %3547 = vmatpush2.bf16.msra.mxu0 0
    %3548 = vmatprep.subr.bf16.mxu0 0
    %3549 = vmatpush2.bf16.msra.mxu0 0
    %3550 = vmatprep.subr.bf16.mxu0 0
    %3551 = vmatpush2.bf16.msra.mxu0 0
    %3552 = vmatprep.subr.bf16.mxu0 0
    %3553 = vmatpush2.bf16.msra.mxu0 0
    %3554 = vmatprep.subr.bf16.mxu0 0
    %3555 = vmatpush2.bf16.msra.mxu0 0
    %3556 = vmatprep.subr.bf16.mxu0 0
    %3557 = vmatpush2.bf16.msra.mxu0 0
    %3558 = vmatprep.subr.bf16.mxu0 0
    %3559 = vmatpush2.bf16.msra.mxu0 0
    %3560 = vmatprep.subr.bf16.mxu0 0
    %3561 = vmatpush2.bf16.msra.mxu0 0
    %3562 = vmatprep.mubr.bf16.mxu0 0
    %3563 = vmatmul.mubr.bf16.gmra.mxu0 %v3335
    %v3564 = vpop.f32.mrf.mxu0
    %v3565 = vadd.f32 0.0, %v3564
    %v3566 = vpop.f32.mrf.mxu0
    %v3567 = vadd.f32 0.0, %v3566
    %v3568 = vpop.f32.mrf.mxu0
    %v3569 = vadd.f32 0.0, %v3568
    %v3570 = vpop.f32.mrf.mxu0
    %v3571 = vadd.f32 0.0, %v3570
    %3572 = vmatprep.mubr.bf16.mxu0 0
    %3573 = vmatmul.mubr.bf16.gmra.mxu0 %v3336
    %v3574 = vpop.f32.mrf.mxu0
    %v3575 = vadd.f32 0.0, %v3574
    %v3576 = vpop.f32.mrf.mxu0
    %v3577 = vadd.f32 0.0, %v3576
    %v3578 = vpop.f32.mrf.mxu0
    %v3579 = vadd.f32 0.0, %v3578
    %v3580 = vpop.f32.mrf.mxu0
    %v3581 = vadd.f32 0.0, %v3580
    %3582 = vmatprep.mubr.bf16.mxu0 0
    %3583 = vmatmul.mubr.bf16.gmra.mxu0 %v3337
    %v3584 = vpop.f32.mrf.mxu0
    %v3585 = vadd.f32 0.0, %v3584
    %v3586 = vpop.f32.mrf.mxu0
    %v3587 = vadd.f32 0.0, %v3586
    %v3588 = vpop.f32.mrf.mxu0
    %v3589 = vadd.f32 0.0, %v3588
    %v3590 = vpop.f32.mrf.mxu0
    %v3591 = vadd.f32 0.0, %v3590
    %3592 = vdwg.mxu0
    %3593 = vmatprep.subr.bf16.mxu0 %v3497
    %3594 = vmatpush1.bf16.msra.mxu0 %v3496
    %3595 = vmatprep.subr.bf16.mxu0 %v3493
    %3596 = vmatpush1.bf16.msra.mxu0 %v3492
    %3597 = vmatprep.subr.bf16.mxu0 %v3489
    %3598 = vmatpush1.bf16.msra.mxu0 %v3488
    %3599 = vmatprep.subr.bf16.mxu0 %v3485
    %3600 = vmatpush1.bf16.msra.mxu0 %v3484
    %3601 = vmatprep.subr.bf16.mxu0 %v3481
    %3602 = vmatpush1.bf16.msra.mxu0 %v3480
    %3603 = vmatprep.subr.bf16.mxu0 %v3477
    %3604 = vmatpush1.bf16.msra.mxu0 %v3476
    %3605 = vmatprep.subr.bf16.mxu0 %v3473
    %3606 = vmatpush1.bf16.msra.mxu0 %v3472
    %3607 = vmatprep.subr.bf16.mxu0 %v3469
    %3608 = vmatpush1.bf16.msra.mxu0 %v3468
    %3609 = vmatprep.subr.bf16.mxu0 0
    %3610 = vmatpush2.bf16.msra.mxu0 0
    %3611 = vmatprep.subr.bf16.mxu0 0
    %3612 = vmatpush2.bf16.msra.mxu0 0
    %3613 = vmatprep.subr.bf16.mxu0 0
    %3614 = vmatpush2.bf16.msra.mxu0 0
    %3615 = vmatprep.subr.bf16.mxu0 0
    %3616 = vmatpush2.bf16.msra.mxu0 0
    %3617 = vmatprep.subr.bf16.mxu0 0
    %3618 = vmatpush2.bf16.msra.mxu0 0
    %3619 = vmatprep.subr.bf16.mxu0 0
    %3620 = vmatpush2.bf16.msra.mxu0 0
    %3621 = vmatprep.subr.bf16.mxu0 0
    %3622 = vmatpush2.bf16.msra.mxu0 0
    %3623 = vmatprep.subr.bf16.mxu0 0
    %3624 = vmatpush2.bf16.msra.mxu0 0
    %3625 = vmatprep.mubr.bf16.mxu0 0
    %3626 = vmatmul.mubr.bf16.gmra.mxu0 %v3335
    %v3627 = vpop.f32.mrf.mxu0
    %v3628 = vadd.f32 0.0, %v3627
    %v3629 = vpop.f32.mrf.mxu0
    %v3630 = vadd.f32 0.0, %v3629
    %v3631 = vpop.f32.mrf.mxu0
    %v3632 = vadd.f32 0.0, %v3631
    %v3633 = vpop.f32.mrf.mxu0
    %v3634 = vadd.f32 0.0, %v3633
    %3635 = vmatprep.mubr.bf16.mxu0 0
    %3636 = vmatmul.mubr.bf16.gmra.mxu0 %v3336
    %v3637 = vpop.f32.mrf.mxu0
    %v3638 = vadd.f32 0.0, %v3637
    %v3639 = vpop.f32.mrf.mxu0
    %v3640 = vadd.f32 0.0, %v3639
    %v3641 = vpop.f32.mrf.mxu0
    %v3642 = vadd.f32 0.0, %v3641
    %v3643 = vpop.f32.mrf.mxu0
    %v3644 = vadd.f32 0.0, %v3643
    %3645 = vmatprep.mubr.bf16.mxu0 0
    %3646 = vmatmul.mubr.bf16.gmra.mxu0 %v3337
    %v3647 = vpop.f32.mrf.mxu0
    %v3648 = vadd.f32 0.0, %v3647
    %v3649 = vpop.f32.mrf.mxu0
    %v3650 = vadd.f32 0.0, %v3649
    %v3651 = vpop.f32.mrf.mxu0
    %v3652 = vadd.f32 0.0, %v3651
    %v3653 = vpop.f32.mrf.mxu0
    %v3654 = vadd.f32 0.0, %v3653
    %3655 = vdwg.mxu0
    %v3688 = vunpack.c.l.b16 %v3297
    %v3689 = vunpack.c.h.b16 %v3297
    %v3690 = vunpack.c.l.b16 %v3298
    %v3691 = vunpack.c.h.b16 %v3298
    %v3692 = vunpack.c.l.b16 %v3299
    %v3693 = vunpack.c.h.b16 %v3299
    %v3694 = vunpack.c.l.b16 %v3300
    %v3695 = vunpack.c.h.b16 %v3300
    %v3696 = vunpack.c.l.b16 %v3301
    %v3697 = vunpack.c.h.b16 %v3301
    %v3698 = vunpack.c.l.b16 %v3302
    %v3699 = vunpack.c.h.b16 %v3302
    %v3700 = vunpack.c.l.b16 %v3303
    %v3701 = vunpack.c.h.b16 %v3303
    %v3702 = vunpack.c.l.b16 %v3304
    %v3703 = vunpack.c.h.b16 %v3304
    %v3704 = vunpack.c.l.b16 %v3305
    %v3705 = vunpack.c.h.b16 %v3305
    %v3706 = vunpack.c.l.b16 %v3306
    %v3707 = vunpack.c.h.b16 %v3306
    %v3708 = vunpack.c.l.b16 %v3307
    %v3709 = vunpack.c.h.b16 %v3307
    %v3710 = vunpack.c.l.b16 %v3308
    %v3711 = vunpack.c.h.b16 %v3308
    %v3712 = vunpack.c.l.b16 %v3309
    %v3713 = vunpack.c.h.b16 %v3309
    %v3714 = vunpack.c.l.b16 %v3310
    %v3715 = vunpack.c.h.b16 %v3310
    %v3716 = vunpack.c.l.b16 %v3311
    %v3717 = vunpack.c.h.b16 %v3311
    %v3718 = vunpack.c.l.b16 %v3312
    %v3719 = vunpack.c.h.b16 %v3312
    %v3720 = vunpack.c.l.b16 %v3313
    %v3721 = vunpack.c.h.b16 %v3313
    %v3722 = vunpack.c.l.b16 %v3314
    %v3723 = vunpack.c.h.b16 %v3314
    %v3724 = vunpack.c.l.b16 %v3315
    %v3725 = vunpack.c.h.b16 %v3315
    %v3726 = vunpack.c.l.b16 %v3316
    %v3727 = vunpack.c.h.b16 %v3316
    %v3728 = vunpack.c.l.b16 %v3317
    %v3729 = vunpack.c.h.b16 %v3317
    %v3730 = vunpack.c.l.b16 %v3318
    %v3731 = vunpack.c.h.b16 %v3318
    %v3732 = vunpack.c.l.b16 %v3319
    %v3733 = vunpack.c.h.b16 %v3319
    %v3734 = vunpack.c.l.b16 %v3320
    %v3735 = vunpack.c.h.b16 %v3320
    %v3736 = vunpack.c.l.b16 %v3321
    %v3737 = vunpack.c.h.b16 %v3321
    %v3738 = vunpack.c.l.b16 %v3322
    %v3739 = vunpack.c.h.b16 %v3322
    %v3740 = vunpack.c.l.b16 %v3323
    %v3741 = vunpack.c.h.b16 %v3323
    %v3742 = vunpack.c.l.b16 %v3324
    %v3743 = vunpack.c.h.b16 %v3324
    %v3744 = vunpack.c.l.b16 %v3325
    %v3745 = vunpack.c.h.b16 %v3325
    %v3746 = vunpack.c.l.b16 %v3326
    %v3747 = vunpack.c.h.b16 %v3326
    %v3748 = vunpack.c.l.b16 %v3327
    %v3749 = vunpack.c.h.b16 %v3327
    %v3750 = vunpack.c.l.b16 %v3328
    %v3751 = vunpack.c.h.b16 %v3328
    %v3752 = vpack.c.b16 %v3692, %v3688
    %v3753 = vpack.c.b16 %v3693, %v3689
    %v3754 = vpack.c.b16 %v3694, %v3690
    %v3755 = vpack.c.b16 %v3695, %v3691
    %v3756 = vpack.c.b16 %v3700, %v3696
    %v3757 = vpack.c.b16 %v3701, %v3697
    %v3758 = vpack.c.b16 %v3702, %v3698
    %v3759 = vpack.c.b16 %v3703, %v3699
    %v3760 = vpack.c.b16 %v3708, %v3704
    %v3761 = vpack.c.b16 %v3709, %v3705
    %v3762 = vpack.c.b16 %v3710, %v3706
    %v3763 = vpack.c.b16 %v3711, %v3707
    %v3764 = vpack.c.b16 %v3716, %v3712
    %v3765 = vpack.c.b16 %v3717, %v3713
    %v3766 = vpack.c.b16 %v3718, %v3714
    %v3767 = vpack.c.b16 %v3719, %v3715
    %v3768 = vpack.c.b16 %v3724, %v3720
    %v3769 = vpack.c.b16 %v3725, %v3721
    %v3770 = vpack.c.b16 %v3726, %v3722
    %v3771 = vpack.c.b16 %v3727, %v3723
    %v3772 = vpack.c.b16 %v3732, %v3728
    %v3773 = vpack.c.b16 %v3733, %v3729
    %v3774 = vpack.c.b16 %v3734, %v3730
    %v3775 = vpack.c.b16 %v3735, %v3731
    %v3776 = vpack.c.b16 %v3740, %v3736
    %v3777 = vpack.c.b16 %v3741, %v3737
    %v3778 = vpack.c.b16 %v3742, %v3738
    %v3779 = vpack.c.b16 %v3743, %v3739
    %v3780 = vpack.c.b16 %v3748, %v3744
    %v3781 = vpack.c.b16 %v3749, %v3745
    %v3782 = vpack.c.b16 %v3750, %v3746
    %v3783 = vpack.c.b16 %v3751, %v3747
    %3816 = vmatprep.subr.bf16.mxu0 %v3781
    %3817 = vmatpush1.bf16.msra.mxu0 %v3780
    %3818 = vmatprep.subr.bf16.mxu0 %v3777
    %3819 = vmatpush1.bf16.msra.mxu0 %v3776
    %3820 = vmatprep.subr.bf16.mxu0 %v3773
    %3821 = vmatpush1.bf16.msra.mxu0 %v3772
    %3822 = vmatprep.subr.bf16.mxu0 %v3769
    %3823 = vmatpush1.bf16.msra.mxu0 %v3768
    %3824 = vmatprep.subr.bf16.mxu0 %v3765
    %3825 = vmatpush1.bf16.msra.mxu0 %v3764
    %3826 = vmatprep.subr.bf16.mxu0 %v3761
    %3827 = vmatpush1.bf16.msra.mxu0 %v3760
    %3828 = vmatprep.subr.bf16.mxu0 %v3757
    %3829 = vmatpush1.bf16.msra.mxu0 %v3756
    %3830 = vmatprep.subr.bf16.mxu0 %v3753
    %3831 = vmatpush1.bf16.msra.mxu0 %v3752
    %3832 = vmatprep.subr.bf16.mxu0 0
    %3833 = vmatpush2.bf16.msra.mxu0 0
    %3834 = vmatprep.subr.bf16.mxu0 0
    %3835 = vmatpush2.bf16.msra.mxu0 0
    %3836 = vmatprep.subr.bf16.mxu0 0
    %3837 = vmatpush2.bf16.msra.mxu0 0
    %3838 = vmatprep.subr.bf16.mxu0 0
    %3839 = vmatpush2.bf16.msra.mxu0 0
    %3840 = vmatprep.subr.bf16.mxu0 0
    %3841 = vmatpush2.bf16.msra.mxu0 0
    %3842 = vmatprep.subr.bf16.mxu0 0
    %3843 = vmatpush2.bf16.msra.mxu0 0
    %3844 = vmatprep.subr.bf16.mxu0 0
    %3845 = vmatpush2.bf16.msra.mxu0 0
    %3846 = vmatprep.subr.bf16.mxu0 0
    %3847 = vmatpush2.bf16.msra.mxu0 0
    %3848 = vmatprep.mubr.bf16.mxu0 0
    %3849 = vmatmul.mubr.bf16.gmra.mxu0 %v3294
    %v3850 = vpop.f32.mrf.mxu0
    %v3851 = vadd.f32 %v3565, %v3850
    %v3852 = vpop.f32.mrf.mxu0
    %v3853 = vadd.f32 %v3567, %v3852
    %v3854 = vpop.f32.mrf.mxu0
    %v3855 = vadd.f32 %v3569, %v3854
    %v3856 = vpop.f32.mrf.mxu0
    %v3857 = vadd.f32 %v3571, %v3856
    %3858 = vmatprep.mubr.bf16.mxu0 0
    %3859 = vmatmul.mubr.bf16.gmra.mxu0 %v3295
    %v3860 = vpop.f32.mrf.mxu0
    %v3861 = vadd.f32 %v3575, %v3860
    %v3862 = vpop.f32.mrf.mxu0
    %v3863 = vadd.f32 %v3577, %v3862
    %v3864 = vpop.f32.mrf.mxu0
    %v3865 = vadd.f32 %v3579, %v3864
    %v3866 = vpop.f32.mrf.mxu0
    %v3867 = vadd.f32 %v3581, %v3866
    %3868 = vmatprep.mubr.bf16.mxu0 0
    %3869 = vmatmul.mubr.bf16.gmra.mxu0 %v3296
    %v3870 = vpop.f32.mrf.mxu0
    %v3871 = vadd.f32 %v3585, %v3870
    %v3872 = vpop.f32.mrf.mxu0
    %v3873 = vadd.f32 %v3587, %v3872
    %v3874 = vpop.f32.mrf.mxu0
    %v3875 = vadd.f32 %v3589, %v3874
    %v3876 = vpop.f32.mrf.mxu0
    %v3877 = vadd.f32 %v3591, %v3876
    %3878 = vdwg.mxu0
    %3879 = vmatprep.subr.bf16.mxu0 %v3783
    %3880 = vmatpush1.bf16.msra.mxu0 %v3782
    %3881 = vmatprep.subr.bf16.mxu0 %v3779
    %3882 = vmatpush1.bf16.msra.mxu0 %v3778
    %3883 = vmatprep.subr.bf16.mxu0 %v3775
    %3884 = vmatpush1.bf16.msra.mxu0 %v3774
    %3885 = vmatprep.subr.bf16.mxu0 %v3771
    %3886 = vmatpush1.bf16.msra.mxu0 %v3770
    %3887 = vmatprep.subr.bf16.mxu0 %v3767
    %3888 = vmatpush1.bf16.msra.mxu0 %v3766
    %3889 = vmatprep.subr.bf16.mxu0 %v3763
    %3890 = vmatpush1.bf16.msra.mxu0 %v3762
    %3891 = vmatprep.subr.bf16.mxu0 %v3759
    %3892 = vmatpush1.bf16.msra.mxu0 %v3758
    %3893 = vmatprep.subr.bf16.mxu0 %v3755
    %3894 = vmatpush1.bf16.msra.mxu0 %v3754
    %3895 = vmatprep.subr.bf16.mxu0 0
    %3896 = vmatpush2.bf16.msra.mxu0 0
    %3897 = vmatprep.subr.bf16.mxu0 0
    %3898 = vmatpush2.bf16.msra.mxu0 0
    %3899 = vmatprep.subr.bf16.mxu0 0
    %3900 = vmatpush2.bf16.msra.mxu0 0
    %3901 = vmatprep.subr.bf16.mxu0 0
    %3902 = vmatpush2.bf16.msra.mxu0 0
    %3903 = vmatprep.subr.bf16.mxu0 0
    %3904 = vmatpush2.bf16.msra.mxu0 0
    %3905 = vmatprep.subr.bf16.mxu0 0
    %3906 = vmatpush2.bf16.msra.mxu0 0
    %3907 = vmatprep.subr.bf16.mxu0 0
    %3908 = vmatpush2.bf16.msra.mxu0 0
    %3909 = vmatprep.subr.bf16.mxu0 0
    %3910 = vmatpush2.bf16.msra.mxu0 0
    %3911 = vmatprep.mubr.bf16.mxu0 0
    %3912 = vmatmul.mubr.bf16.gmra.mxu0 %v3294
    %v3913 = vpop.f32.mrf.mxu0
    %v3914 = vadd.f32 %v3628, %v3913
    %v3915 = vpop.f32.mrf.mxu0
    %v3916 = vadd.f32 %v3630, %v3915
    %v3917 = vpop.f32.mrf.mxu0
    %v3918 = vadd.f32 %v3632, %v3917
    %v3919 = vpop.f32.mrf.mxu0
    %v3920 = vadd.f32 %v3634, %v3919
    %3921 = vmatprep.mubr.bf16.mxu0 0
    %3922 = vmatmul.mubr.bf16.gmra.mxu0 %v3295
    %v3923 = vpop.f32.mrf.mxu0
    %v3924 = vadd.f32 %v3638, %v3923
    %v3925 = vpop.f32.mrf.mxu0
    %v3926 = vadd.f32 %v3640, %v3925
    %v3927 = vpop.f32.mrf.mxu0
    %v3928 = vadd.f32 %v3642, %v3927
    %v3929 = vpop.f32.mrf.mxu0
    %v3930 = vadd.f32 %v3644, %v3929
    %3931 = vmatprep.mubr.bf16.mxu0 0
    %3932 = vmatmul.mubr.bf16.gmra.mxu0 %v3296
    %v3933 = vpop.f32.mrf.mxu0
    %v3934 = vadd.f32 %v3648, %v3933
    %v3935 = vpop.f32.mrf.mxu0
    %v3936 = vadd.f32 %v3650, %v3935
    %v3937 = vpop.f32.mrf.mxu0
    %v3938 = vadd.f32 %v3652, %v3937
    %v3939 = vpop.f32.mrf.mxu0
    %v3940 = vadd.f32 %v3654, %v3939
    %3941 = vdwg.mxu0
    %v3942 = vld [vmem:[%s14] sm:$0xf]
    %v3944 = vlaneseq
    %v3945 = vshrl.u32 %v3944, 7
    %v3946 = vsub.s32 0, %v3945
    %v3947 = vrot.slane %v3942, %v3946
    %v3948 = vlaneseq
    %v3949 = vshrl.u32 %v3948, 7
    %v3950 = vsub.s32 1, %v3949
    %v3951 = vrot.slane %v3942, %v3950
    %v3952 = vlaneseq
    %v3953 = vshrl.u32 %v3952, 7
    %v3954 = vsub.s32 2, %v3953
    %v3955 = vrot.slane %v3942, %v3954
    %v3956 = vlaneseq
    %v3957 = vshrl.u32 %v3956, 7
    %v3958 = vsub.s32 3, %v3957
    %v3959 = vrot.slane %v3942, %v3958
    %v3964 = vadd.f32 %v3851, %v3947
    %v3965 = vadd.f32 %v3853, %v3951
    %v3966 = vadd.f32 %v3914, %v3955
    %v3967 = vadd.f32 %v3916, %v3959
    %v3968 = vadd.f32 %v3855, %v3947
    %v3969 = vadd.f32 %v3857, %v3951
    %v3970 = vadd.f32 %v3918, %v3955
    %v3971 = vadd.f32 %v3920, %v3959
    %v3972 = vadd.f32 %v3861, %v3947
    %v3973 = vadd.f32 %v3863, %v3951
    %v3974 = vadd.f32 %v3924, %v3955
    %v3975 = vadd.f32 %v3926, %v3959
    %v3976 = vadd.f32 %v3865, %v3947
    %v3977 = vadd.f32 %v3867, %v3951
    %v3978 = vadd.f32 %v3928, %v3955
    %v3979 = vadd.f32 %v3930, %v3959
    %v3980 = vadd.f32 %v3871, %v3947
    %v3981 = vadd.f32 %v3873, %v3951
    %v3982 = vadd.f32 %v3934, %v3955
    %v3983 = vadd.f32 %v3936, %v3959
    %v3984 = vadd.f32 %v3875, %v3947
    %v3985 = vadd.f32 %v3877, %v3951
    %v3986 = vadd.f32 %v3938, %v3955
    %v3987 = vadd.f32 %v3940, %v3959
    %v4020 = vunpack.c.l.b16 %v1594
    %v4021 = vunpack.c.h.b16 %v1594
    %v4022 = vunpack.c.l.b16 %v1595
    %v4023 = vunpack.c.h.b16 %v1595
    %v4024 = vunpack.c.l.b16 %v1596
    %v4025 = vunpack.c.h.b16 %v1596
    %v4026 = vunpack.c.l.b16 %v1597
    %v4027 = vunpack.c.h.b16 %v1597
    %v4028 = vunpack.c.l.b16 %v1598
    %v4029 = vunpack.c.h.b16 %v1598
    %v4030 = vunpack.c.l.b16 %v1599
    %v4031 = vunpack.c.h.b16 %v1599
    %v4032 = vunpack.c.l.b16 %v1600
    %v4033 = vunpack.c.h.b16 %v1600
    %v4034 = vunpack.c.l.b16 %v1601
    %v4035 = vunpack.c.h.b16 %v1601
    %v4036 = vunpack.c.l.b16 %v1602
    %v4037 = vunpack.c.h.b16 %v1602
    %v4038 = vunpack.c.l.b16 %v1603
    %v4039 = vunpack.c.h.b16 %v1603
    %v4040 = vunpack.c.l.b16 %v1604
    %v4041 = vunpack.c.h.b16 %v1604
    %v4042 = vunpack.c.l.b16 %v1605
    %v4043 = vunpack.c.h.b16 %v1605
    %v4044 = vunpack.c.l.b16 %v1606
    %v4045 = vunpack.c.h.b16 %v1606
    %v4046 = vunpack.c.l.b16 %v1607
    %v4047 = vunpack.c.h.b16 %v1607
    %v4048 = vunpack.c.l.b16 %v1608
    %v4049 = vunpack.c.h.b16 %v1608
    %v4050 = vunpack.c.l.b16 %v1609
    %v4051 = vunpack.c.h.b16 %v1609
    %v4052 = vunpack.c.l.b16 %v1610
    %v4053 = vunpack.c.h.b16 %v1610
    %v4054 = vunpack.c.l.b16 %v1611
    %v4055 = vunpack.c.h.b16 %v1611
    %v4056 = vunpack.c.l.b16 %v1612
    %v4057 = vunpack.c.h.b16 %v1612
    %v4058 = vunpack.c.l.b16 %v1613
    %v4059 = vunpack.c.h.b16 %v1613
    %v4060 = vunpack.c.l.b16 %v1614
    %v4061 = vunpack.c.h.b16 %v1614
    %v4062 = vunpack.c.l.b16 %v1615
    %v4063 = vunpack.c.h.b16 %v1615
    %v4064 = vunpack.c.l.b16 %v1616
    %v4065 = vunpack.c.h.b16 %v1616
    %v4066 = vunpack.c.l.b16 %v1617
    %v4067 = vunpack.c.h.b16 %v1617
    %v4068 = vunpack.c.l.b16 %v1618
    %v4069 = vunpack.c.h.b16 %v1618
    %v4070 = vunpack.c.l.b16 %v1619
    %v4071 = vunpack.c.h.b16 %v1619
    %v4072 = vunpack.c.l.b16 %v1620
    %v4073 = vunpack.c.h.b16 %v1620
    %v4074 = vunpack.c.l.b16 %v1621
    %v4075 = vunpack.c.h.b16 %v1621
    %v4076 = vunpack.c.l.b16 %v1622
    %v4077 = vunpack.c.h.b16 %v1622
    %v4078 = vunpack.c.l.b16 %v1623
    %v4079 = vunpack.c.h.b16 %v1623
    %v4080 = vunpack.c.l.b16 %v1624
    %v4081 = vunpack.c.h.b16 %v1624
    %v4082 = vunpack.c.l.b16 %v1625
    %v4083 = vunpack.c.h.b16 %v1625
    %v4084 = vpack.c.b16 %v4024, %v4020
    %v4085 = vpack.c.b16 %v4025, %v4021
    %v4086 = vpack.c.b16 %v4026, %v4022
    %v4087 = vpack.c.b16 %v4027, %v4023
    %v4088 = vpack.c.b16 %v4032, %v4028
    %v4089 = vpack.c.b16 %v4033, %v4029
    %v4090 = vpack.c.b16 %v4034, %v4030
    %v4091 = vpack.c.b16 %v4035, %v4031
    %v4092 = vpack.c.b16 %v4040, %v4036
    %v4093 = vpack.c.b16 %v4041, %v4037
    %v4094 = vpack.c.b16 %v4042, %v4038
    %v4095 = vpack.c.b16 %v4043, %v4039
    %v4096 = vpack.c.b16 %v4048, %v4044
    %v4097 = vpack.c.b16 %v4049, %v4045
    %v4098 = vpack.c.b16 %v4050, %v4046
    %v4099 = vpack.c.b16 %v4051, %v4047
    %v4100 = vpack.c.b16 %v4056, %v4052
    %v4101 = vpack.c.b16 %v4057, %v4053
    %v4102 = vpack.c.b16 %v4058, %v4054
    %v4103 = vpack.c.b16 %v4059, %v4055
    %v4104 = vpack.c.b16 %v4064, %v4060
    %v4105 = vpack.c.b16 %v4065, %v4061
    %v4106 = vpack.c.b16 %v4066, %v4062
    %v4107 = vpack.c.b16 %v4067, %v4063
    %v4108 = vpack.c.b16 %v4072, %v4068
    %v4109 = vpack.c.b16 %v4073, %v4069
    %v4110 = vpack.c.b16 %v4074, %v4070
    %v4111 = vpack.c.b16 %v4075, %v4071
    %v4112 = vpack.c.b16 %v4080, %v4076
    %v4113 = vpack.c.b16 %v4081, %v4077
    %v4114 = vpack.c.b16 %v4082, %v4078
    %v4115 = vpack.c.b16 %v4083, %v4079
    %4148 = vmatprep.subr.bf16.mxu0 %v4113
    %4149 = vmatpush1.bf16.msra.mxu0 %v4112
    %4150 = vmatprep.subr.bf16.mxu0 %v4109
    %4151 = vmatpush1.bf16.msra.mxu0 %v4108
    %4152 = vmatprep.subr.bf16.mxu0 %v4105
    %4153 = vmatpush1.bf16.msra.mxu0 %v4104
    %4154 = vmatprep.subr.bf16.mxu0 %v4101
    %4155 = vmatpush1.bf16.msra.mxu0 %v4100
    %4156 = vmatprep.subr.bf16.mxu0 %v4097
    %4157 = vmatpush1.bf16.msra.mxu0 %v4096
    %4158 = vmatprep.subr.bf16.mxu0 %v4093
    %4159 = vmatpush1.bf16.msra.mxu0 %v4092
    %4160 = vmatprep.subr.bf16.mxu0 %v4089
    %4161 = vmatpush1.bf16.msra.mxu0 %v4088
    %4162 = vmatprep.subr.bf16.mxu0 %v4085
    %4163 = vmatpush1.bf16.msra.mxu0 %v4084
    %4164 = vmatprep.subr.bf16.mxu0 0
    %4165 = vmatpush2.bf16.msra.mxu0 0
    %4166 = vmatprep.subr.bf16.mxu0 0
    %4167 = vmatpush2.bf16.msra.mxu0 0
    %4168 = vmatprep.subr.bf16.mxu0 0
    %4169 = vmatpush2.bf16.msra.mxu0 0
    %4170 = vmatprep.subr.bf16.mxu0 0
    %4171 = vmatpush2.bf16.msra.mxu0 0
    %4172 = vmatprep.subr.bf16.mxu0 0
    %4173 = vmatpush2.bf16.msra.mxu0 0
    %4174 = vmatprep.subr.bf16.mxu0 0
    %4175 = vmatpush2.bf16.msra.mxu0 0
    %4176 = vmatprep.subr.bf16.mxu0 0
    %4177 = vmatpush2.bf16.msra.mxu0 0
    %4178 = vmatprep.subr.bf16.mxu0 0
    %4179 = vmatpush2.bf16.msra.mxu0 0
    %4180 = vmatprep.mubr.bf16.mxu0 0
    %4181 = vmatmul.mubr.bf16.gmra.mxu0 0
    %v4182 = vpop.f32.mrf.mxu0
    %v4183 = vadd.f32 0.0, %v4182
    %v4184 = vpop.f32.mrf.mxu0
    %v4185 = vadd.f32 0.0, %v4184
    %v4186 = vpop.f32.mrf.mxu0
    %v4187 = vpop.f32.mrf.mxu0
    %4188 = vdwg.mxu0
    %4189 = vmatprep.subr.bf16.mxu0 %v4115
    %4190 = vmatpush1.bf16.msra.mxu0 %v4114
    %4191 = vmatprep.subr.bf16.mxu0 %v4111
    %4192 = vmatpush1.bf16.msra.mxu0 %v4110
    %4193 = vmatprep.subr.bf16.mxu0 %v4107
    %4194 = vmatpush1.bf16.msra.mxu0 %v4106
    %4195 = vmatprep.subr.bf16.mxu0 %v4103
    %4196 = vmatpush1.bf16.msra.mxu0 %v4102
    %4197 = vmatprep.subr.bf16.mxu0 %v4099
    %4198 = vmatpush1.bf16.msra.mxu0 %v4098
    %4199 = vmatprep.subr.bf16.mxu0 %v4095
    %4200 = vmatpush1.bf16.msra.mxu0 %v4094
    %4201 = vmatprep.subr.bf16.mxu0 %v4091
    %4202 = vmatpush1.bf16.msra.mxu0 %v4090
    %4203 = vmatprep.subr.bf16.mxu0 %v4087
    %4204 = vmatpush1.bf16.msra.mxu0 %v4086
    %4205 = vmatprep.subr.bf16.mxu0 0
    %4206 = vmatpush2.bf16.msra.mxu0 0
    %4207 = vmatprep.subr.bf16.mxu0 0
    %4208 = vmatpush2.bf16.msra.mxu0 0
    %4209 = vmatprep.subr.bf16.mxu0 0
    %4210 = vmatpush2.bf16.msra.mxu0 0
    %4211 = vmatprep.subr.bf16.mxu0 0
    %4212 = vmatpush2.bf16.msra.mxu0 0
    %4213 = vmatprep.subr.bf16.mxu0 0
    %4214 = vmatpush2.bf16.msra.mxu0 0
    %4215 = vmatprep.subr.bf16.mxu0 0
    %4216 = vmatpush2.bf16.msra.mxu0 0
    %4217 = vmatprep.subr.bf16.mxu0 0
    %4218 = vmatpush2.bf16.msra.mxu0 0
    %4219 = vmatprep.subr.bf16.mxu0 0
    %4220 = vmatpush2.bf16.msra.mxu0 0
    %4221 = vmatprep.mubr.bf16.mxu0 0
    %4222 = vmatmul.mubr.bf16.gmra.mxu0 0
    %v4223 = vpop.f32.mrf.mxu0
    %v4224 = vadd.f32 0.0, %v4223
    %v4225 = vpop.f32.mrf.mxu0
    %v4226 = vadd.f32 0.0, %v4225
    %v4227 = vpop.f32.mrf.mxu0
    %v4228 = vpop.f32.mrf.mxu0
    %4229 = vdwg.mxu0
    %v4230 = vadd.f32 %v3984, %v4183
    %v4231 = vadd.f32 %v3985, %v4185
    %v4232 = vadd.f32 %v3986, %v4224
    %v4233 = vadd.f32 %v3987, %v4226
    %v4234 = vxor.u32 %v4230, 2147483648
    %v4235 = vmul.f32 %v4234, 1.442695
    %v4236 = vpow.pop %v4235
    %v4237 = vadd.f32 %v4236, 1.0
    %v4238 = vrcp.pop %v4237
    %v4239 = vmul.f32 1.0, %v4238
    %v4240 = vxor.u32 %v4231, 2147483648
    %v4241 = vmul.f32 %v4240, 1.442695
    %v4242 = vpow.pop %v4241
    %v4243 = vadd.f32 %v4242, 1.0
    %v4244 = vrcp.pop %v4243
    %v4245 = vmul.f32 1.0, %v4244
    %v4246 = vtanh.pop %v4232
    %v4247 = vxor.u32 %v4233, 2147483648
    %v4248 = vmul.f32 %v4247, 1.442695
    %v4249 = vpow.pop %v4248
    %v4250 = vadd.f32 %v4249, 1.0
    %v4251 = vrcp.pop %v4250
    %v4252 = vmul.f32 1.0, %v4251
    %v4253 = vmul.f32 %v4245, 0.0
    %v4254 = vmul.f32 %v4239, %v4246
    %v4255 = vadd.f32 %v4253, %v4254
    %v4256 = vtanh.pop %v4255
    %v4257 = vmul.f32 %v4252, %v4256
    %v4258 = vpack.c.bf16 %v4257, %v4257
    %4259 = vmatprep.subr.bf16.mxu0 %v4113
    %4260 = vmatpush1.bf16.msra.mxu0 %v4112
    %4261 = vmatprep.subr.bf16.mxu0 %v4109
    %4262 = vmatpush1.bf16.msra.mxu0 %v4108
    %4263 = vmatprep.subr.bf16.mxu0 %v4105
    %4264 = vmatpush1.bf16.msra.mxu0 %v4104
    %4265 = vmatprep.subr.bf16.mxu0 %v4101
    %4266 = vmatpush1.bf16.msra.mxu0 %v4100
    %4267 = vmatprep.subr.bf16.mxu0 %v4097
    %4268 = vmatpush1.bf16.msra.mxu0 %v4096
    %4269 = vmatprep.subr.bf16.mxu0 %v4093
    %4270 = vmatpush1.bf16.msra.mxu0 %v4092
    %4271 = vmatprep.subr.bf16.mxu0 %v4089
    %4272 = vmatpush1.bf16.msra.mxu0 %v4088
    %4273 = vmatprep.subr.bf16.mxu0 %v4085
    %4274 = vmatpush1.bf16.msra.mxu0 %v4084
    %4275 = vmatprep.subr.bf16.mxu0 0
    %4276 = vmatpush2.bf16.msra.mxu0 0
    %4277 = vmatprep.subr.bf16.mxu0 0
    %4278 = vmatpush2.bf16.msra.mxu0 0
    %4279 = vmatprep.subr.bf16.mxu0 0
    %4280 = vmatpush2.bf16.msra.mxu0 0
    %4281 = vmatprep.subr.bf16.mxu0 0
    %4282 = vmatpush2.bf16.msra.mxu0 0
    %4283 = vmatprep.subr.bf16.mxu0 0
    %4284 = vmatpush2.bf16.msra.mxu0 0
    %4285 = vmatprep.subr.bf16.mxu0 0
    %4286 = vmatpush2.bf16.msra.mxu0 0
    %4287 = vmatprep.subr.bf16.mxu0 0
    %4288 = vmatpush2.bf16.msra.mxu0 0
    %4289 = vmatprep.subr.bf16.mxu0 0
    %4290 = vmatpush2.bf16.msra.mxu0 0
    %4291 = vmatprep.mubr.bf16.mxu0 0
    %4292 = vmatmul.mubr.bf16.gmra.mxu0 %v4258
    %v4293 = vpop.f32.mrf.mxu0
    %v4294 = vadd.f32 0.0, %v4293
    %v4295 = vpop.f32.mrf.mxu0
    %v4296 = vadd.f32 0.0, %v4295
    %v4297 = vpop.f32.mrf.mxu0
    %v4298 = vpop.f32.mrf.mxu0
    %4299 = vdwg.mxu0
    %4300 = vmatprep.subr.bf16.mxu0 %v4115
    %4301 = vmatpush1.bf16.msra.mxu0 %v4114
    %4302 = vmatprep.subr.bf16.mxu0 %v4111
    %4303 = vmatpush1.bf16.msra.mxu0 %v4110
    %4304 = vmatprep.subr.bf16.mxu0 %v4107
    %4305 = vmatpush1.bf16.msra.mxu0 %v4106
    %4306 = vmatprep.subr.bf16.mxu0 %v4103
    %4307 = vmatpush1.bf16.msra.mxu0 %v4102
    %4308 = vmatprep.subr.bf16.mxu0 %v4099
    %4309 = vmatpush1.bf16.msra.mxu0 %v4098
    %4310 = vmatprep.subr.bf16.mxu0 %v4095
    %4311 = vmatpush1.bf16.msra.mxu0 %v4094
    %4312 = vmatprep.subr.bf16.mxu0 %v4091
    %4313 = vmatpush1.bf16.msra.mxu0 %v4090
    %4314 = vmatprep.subr.bf16.mxu0 %v4087
    %4315 = vmatpush1.bf16.msra.mxu0 %v4086
    %4316 = vmatprep.subr.bf16.mxu0 0
    %4317 = vmatpush2.bf16.msra.mxu0 0
    %4318 = vmatprep.subr.bf16.mxu0 0
    %4319 = vmatpush2.bf16.msra.mxu0 0
    %4320 = vmatprep.subr.bf16.mxu0 0
    %4321 = vmatpush2.bf16.msra.mxu0 0
    %4322 = vmatprep.subr.bf16.mxu0 0
    %4323 = vmatpush2.bf16.msra.mxu0 0
    %4324 = vmatprep.subr.bf16.mxu0 0
    %4325 = vmatpush2.bf16.msra.mxu0 0
    %4326 = vmatprep.subr.bf16.mxu0 0
    %4327 = vmatpush2.bf16.msra.mxu0 0
    %4328 = vmatprep.subr.bf16.mxu0 0
    %4329 = vmatpush2.bf16.msra.mxu0 0
    %4330 = vmatprep.subr.bf16.mxu0 0
    %4331 = vmatpush2.bf16.msra.mxu0 0
    %4332 = vmatprep.mubr.bf16.mxu0 0
    %4333 = vmatmul.mubr.bf16.gmra.mxu0 %v4258
    %v4334 = vpop.f32.mrf.mxu0
    %v4335 = vadd.f32 0.0, %v4334
    %v4336 = vpop.f32.mrf.mxu0
    %v4337 = vadd.f32 0.0, %v4336
    %v4338 = vpop.f32.mrf.mxu0
    %v4339 = vpop.f32.mrf.mxu0
    %4340 = vdwg.mxu0
    %v4341 = vadd.f32 %v3980, %v4294
    %v4342 = vadd.f32 %v3981, %v4296
    %v4343 = vadd.f32 %v3982, %v4335
    %v4344 = vadd.f32 %v3983, %v4337
    %v4345 = vxor.u32 %v4341, 2147483648
    %v4346 = vmul.f32 %v4345, 1.442695
    %v4347 = vpow.pop %v4346
    %v4348 = vadd.f32 %v4347, 1.0
    %v4349 = vrcp.pop %v4348
    %v4350 = vmul.f32 1.0, %v4349
    %v4351 = vxor.u32 %v4342, 2147483648
    %v4352 = vmul.f32 %v4351, 1.442695
    %v4353 = vpow.pop %v4352
    %v4354 = vadd.f32 %v4353, 1.0
    %v4355 = vrcp.pop %v4354
    %v4356 = vmul.f32 1.0, %v4355
    %v4357 = vtanh.pop %v4343
    %v4358 = vxor.u32 %v4344, 2147483648
    %v4359 = vmul.f32 %v4358, 1.442695
    %v4360 = vpow.pop %v4359
    %v4361 = vadd.f32 %v4360, 1.0
    %v4362 = vrcp.pop %v4361
    %v4363 = vmul.f32 1.0, %v4362
    %v4364 = vmul.f32 %v4356, %v4255
    %v4365 = vmul.f32 %v4350, %v4357
    %v4366 = vadd.f32 %v4364, %v4365
    %v4367 = vtanh.pop %v4366
    %v4368 = vmul.f32 %v4363, %v4367
    %v4369 = vpack.c.bf16 %v4368, %v4368
    %4370 = vmatprep.subr.bf16.mxu0 %v4113
    %4371 = vmatpush1.bf16.msra.mxu0 %v4112
    %4372 = vmatprep.subr.bf16.mxu0 %v4109
    %4373 = vmatpush1.bf16.msra.mxu0 %v4108
    %4374 = vmatprep.subr.bf16.mxu0 %v4105
    %4375 = vmatpush1.bf16.msra.mxu0 %v4104
    %4376 = vmatprep.subr.bf16.mxu0 %v4101
    %4377 = vmatpush1.bf16.msra.mxu0 %v4100
    %4378 = vmatprep.subr.bf16.mxu0 %v4097
    %4379 = vmatpush1.bf16.msra.mxu0 %v4096
    %4380 = vmatprep.subr.bf16.mxu0 %v4093
    %4381 = vmatpush1.bf16.msra.mxu0 %v4092
    %4382 = vmatprep.subr.bf16.mxu0 %v4089
    %4383 = vmatpush1.bf16.msra.mxu0 %v4088
    %4384 = vmatprep.subr.bf16.mxu0 %v4085
    %4385 = vmatpush1.bf16.msra.mxu0 %v4084
    %4386 = vmatprep.subr.bf16.mxu0 0
    %4387 = vmatpush2.bf16.msra.mxu0 0
    %4388 = vmatprep.subr.bf16.mxu0 0
    %4389 = vmatpush2.bf16.msra.mxu0 0
    %4390 = vmatprep.subr.bf16.mxu0 0
    %4391 = vmatpush2.bf16.msra.mxu0 0
    %4392 = vmatprep.subr.bf16.mxu0 0
    %4393 = vmatpush2.bf16.msra.mxu0 0
    %4394 = vmatprep.subr.bf16.mxu0 0
    %4395 = vmatpush2.bf16.msra.mxu0 0
    %4396 = vmatprep.subr.bf16.mxu0 0
    %4397 = vmatpush2.bf16.msra.mxu0 0
    %4398 = vmatprep.subr.bf16.mxu0 0
    %4399 = vmatpush2.bf16.msra.mxu0 0
    %4400 = vmatprep.subr.bf16.mxu0 0
    %4401 = vmatpush2.bf16.msra.mxu0 0
    %4402 = vmatprep.mubr.bf16.mxu0 0
    %4403 = vmatmul.mubr.bf16.gmra.mxu0 %v4369
    %v4404 = vpop.f32.mrf.mxu0
    %v4405 = vadd.f32 0.0, %v4404
    %v4406 = vpop.f32.mrf.mxu0
    %v4407 = vadd.f32 0.0, %v4406
    %v4408 = vpop.f32.mrf.mxu0
    %v4409 = vpop.f32.mrf.mxu0
    %4410 = vdwg.mxu0
    %4411 = vmatprep.subr.bf16.mxu0 %v4115
    %4412 = vmatpush1.bf16.msra.mxu0 %v4114
    %4413 = vmatprep.subr.bf16.mxu0 %v4111
    %4414 = vmatpush1.bf16.msra.mxu0 %v4110
    %4415 = vmatprep.subr.bf16.mxu0 %v4107
    %4416 = vmatpush1.bf16.msra.mxu0 %v4106
    %4417 = vmatprep.subr.bf16.mxu0 %v4103
    %4418 = vmatpush1.bf16.msra.mxu0 %v4102
    %4419 = vmatprep.subr.bf16.mxu0 %v4099
    %4420 = vmatpush1.bf16.msra.mxu0 %v4098
    %4421 = vmatprep.subr.bf16.mxu0 %v4095
    %4422 = vmatpush1.bf16.msra.mxu0 %v4094
    %4423 = vmatprep.subr.bf16.mxu0 %v4091
    %4424 = vmatpush1.bf16.msra.mxu0 %v4090
    %4425 = vmatprep.subr.bf16.mxu0 %v4087
    %4426 = vmatpush1.bf16.msra.mxu0 %v4086
    %4427 = vmatprep.subr.bf16.mxu0 0
    %4428 = vmatpush2.bf16.msra.mxu0 0
    %4429 = vmatprep.subr.bf16.mxu0 0
    %4430 = vmatpush2.bf16.msra.mxu0 0
    %4431 = vmatprep.subr.bf16.mxu0 0
    %4432 = vmatpush2.bf16.msra.mxu0 0
    %4433 = vmatprep.subr.bf16.mxu0 0
    %4434 = vmatpush2.bf16.msra.mxu0 0
    %4435 = vmatprep.subr.bf16.mxu0 0
    %4436 = vmatpush2.bf16.msra.mxu0 0
    %4437 = vmatprep.subr.bf16.mxu0 0
    %4438 = vmatpush2.bf16.msra.mxu0 0
    %4439 = vmatprep.subr.bf16.mxu0 0
    %4440 = vmatpush2.bf16.msra.mxu0 0
    %4441 = vmatprep.subr.bf16.mxu0 0
    %4442 = vmatpush2.bf16.msra.mxu0 0
    %4443 = vmatprep.mubr.bf16.mxu0 0
    %4444 = vmatmul.mubr.bf16.gmra.mxu0 %v4369
    %v4445 = vpop.f32.mrf.mxu0
    %v4446 = vadd.f32 0.0, %v4445
    %v4447 = vpop.f32.mrf.mxu0
    %v4448 = vadd.f32 0.0, %v4447
    %v4449 = vpop.f32.mrf.mxu0
    %v4450 = vpop.f32.mrf.mxu0
    %4451 = vdwg.mxu0
    %v4452 = vadd.f32 %v3976, %v4405
    %v4453 = vadd.f32 %v3977, %v4407
    %v4454 = vadd.f32 %v3978, %v4446
    %v4455 = vadd.f32 %v3979, %v4448
    %v4456 = vxor.u32 %v4452, 2147483648
    %v4457 = vmul.f32 %v4456, 1.442695
    %v4458 = vpow.pop %v4457
    %v4459 = vadd.f32 %v4458, 1.0
    %v4460 = vrcp.pop %v4459
    %v4461 = vmul.f32 1.0, %v4460
    %v4462 = vxor.u32 %v4453, 2147483648
    %v4463 = vmul.f32 %v4462, 1.442695
    %v4464 = vpow.pop %v4463
    %v4465 = vadd.f32 %v4464, 1.0
    %v4466 = vrcp.pop %v4465
    %v4467 = vmul.f32 1.0, %v4466
    %v4468 = vtanh.pop %v4454
    %v4469 = vxor.u32 %v4455, 2147483648
    %v4470 = vmul.f32 %v4469, 1.442695
    %v4471 = vpow.pop %v4470
    %v4472 = vadd.f32 %v4471, 1.0
    %v4473 = vrcp.pop %v4472
    %v4474 = vmul.f32 1.0, %v4473
    %v4475 = vmul.f32 %v4467, %v4366
    %v4476 = vmul.f32 %v4461, %v4468
    %v4477 = vadd.f32 %v4475, %v4476
    %v4478 = vtanh.pop %v4477
    %v4479 = vmul.f32 %v4474, %v4478
    %v4480 = vpack.c.bf16 %v4479, %v4479
    %4481 = vmatprep.subr.bf16.mxu0 %v4113
    %4482 = vmatpush1.bf16.msra.mxu0 %v4112
    %4483 = vmatprep.subr.bf16.mxu0 %v4109
    %4484 = vmatpush1.bf16.msra.mxu0 %v4108
    %4485 = vmatprep.subr.bf16.mxu0 %v4105
    %4486 = vmatpush1.bf16.msra.mxu0 %v4104
    %4487 = vmatprep.subr.bf16.mxu0 %v4101
    %4488 = vmatpush1.bf16.msra.mxu0 %v4100
    %4489 = vmatprep.subr.bf16.mxu0 %v4097
    %4490 = vmatpush1.bf16.msra.mxu0 %v4096
    %4491 = vmatprep.subr.bf16.mxu0 %v4093
    %4492 = vmatpush1.bf16.msra.mxu0 %v4092
    %4493 = vmatprep.subr.bf16.mxu0 %v4089
    %4494 = vmatpush1.bf16.msra.mxu0 %v4088
    %4495 = vmatprep.subr.bf16.mxu0 %v4085
    %4496 = vmatpush1.bf16.msra.mxu0 %v4084
    %4497 = vmatprep.subr.bf16.mxu0 0
    %4498 = vmatpush2.bf16.msra.mxu0 0
    %4499 = vmatprep.subr.bf16.mxu0 0
    %4500 = vmatpush2.bf16.msra.mxu0 0
    %4501 = vmatprep.subr.bf16.mxu0 0
    %4502 = vmatpush2.bf16.msra.mxu0 0
    %4503 = vmatprep.subr.bf16.mxu0 0
    %4504 = vmatpush2.bf16.msra.mxu0 0
    %4505 = vmatprep.subr.bf16.mxu0 0
    %4506 = vmatpush2.bf16.msra.mxu0 0
    %4507 = vmatprep.subr.bf16.mxu0 0
    %4508 = vmatpush2.bf16.msra.mxu0 0
    %4509 = vmatprep.subr.bf16.mxu0 0
    %4510 = vmatpush2.bf16.msra.mxu0 0
    %4511 = vmatprep.subr.bf16.mxu0 0
    %4512 = vmatpush2.bf16.msra.mxu0 0
    %4513 = vmatprep.mubr.bf16.mxu0 0
    %4514 = vmatmul.mubr.bf16.gmra.mxu0 %v4480
    %v4515 = vpop.f32.mrf.mxu0
    %v4516 = vadd.f32 0.0, %v4515
    %v4517 = vpop.f32.mrf.mxu0
    %v4518 = vadd.f32 0.0, %v4517
    %v4519 = vpop.f32.mrf.mxu0
    %v4520 = vpop.f32.mrf.mxu0
    %4521 = vdwg.mxu0
    %4522 = vmatprep.subr.bf16.mxu0 %v4115
    %4523 = vmatpush1.bf16.msra.mxu0 %v4114
    %4524 = vmatprep.subr.bf16.mxu0 %v4111
    %4525 = vmatpush1.bf16.msra.mxu0 %v4110
    %4526 = vmatprep.subr.bf16.mxu0 %v4107
    %4527 = vmatpush1.bf16.msra.mxu0 %v4106
    %4528 = vmatprep.subr.bf16.mxu0 %v4103
    %4529 = vmatpush1.bf16.msra.mxu0 %v4102
    %4530 = vmatprep.subr.bf16.mxu0 %v4099
    %4531 = vmatpush1.bf16.msra.mxu0 %v4098
    %4532 = vmatprep.subr.bf16.mxu0 %v4095
    %4533 = vmatpush1.bf16.msra.mxu0 %v4094
    %4534 = vmatprep.subr.bf16.mxu0 %v4091
    %4535 = vmatpush1.bf16.msra.mxu0 %v4090
    %4536 = vmatprep.subr.bf16.mxu0 %v4087
    %4537 = vmatpush1.bf16.msra.mxu0 %v4086
    %4538 = vmatprep.subr.bf16.mxu0 0
    %4539 = vmatpush2.bf16.msra.mxu0 0
    %4540 = vmatprep.subr.bf16.mxu0 0
    %4541 = vmatpush2.bf16.msra.mxu0 0
    %4542 = vmatprep.subr.bf16.mxu0 0
    %4543 = vmatpush2.bf16.msra.mxu0 0
    %4544 = vmatprep.subr.bf16.mxu0 0
    %4545 = vmatpush2.bf16.msra.mxu0 0
    %4546 = vmatprep.subr.bf16.mxu0 0
    %4547 = vmatpush2.bf16.msra.mxu0 0
    %4548 = vmatprep.subr.bf16.mxu0 0
    %4549 = vmatpush2.bf16.msra.mxu0 0
    %4550 = vmatprep.subr.bf16.mxu0 0
    %4551 = vmatpush2.bf16.msra.mxu0 0
    %4552 = vmatprep.subr.bf16.mxu0 0
    %4553 = vmatpush2.bf16.msra.mxu0 0
    %4554 = vmatprep.mubr.bf16.mxu0 0
    %4555 = vmatmul.mubr.bf16.gmra.mxu0 %v4480
    %v4556 = vpop.f32.mrf.mxu0
    %v4557 = vadd.f32 0.0, %v4556
    %v4558 = vpop.f32.mrf.mxu0
    %v4559 = vadd.f32 0.0, %v4558
    %v4560 = vpop.f32.mrf.mxu0
    %v4561 = vpop.f32.mrf.mxu0
    %4562 = vdwg.mxu0
    %v4563 = vadd.f32 %v3972, %v4516
    %v4564 = vadd.f32 %v3973, %v4518
    %v4565 = vadd.f32 %v3974, %v4557
    %v4566 = vadd.f32 %v3975, %v4559
    %v4567 = vxor.u32 %v4563, 2147483648
    %v4568 = vmul.f32 %v4567, 1.442695
    %v4569 = vpow.pop %v4568
    %v4570 = vadd.f32 %v4569, 1.0
    %v4571 = vrcp.pop %v4570
    %v4572 = vmul.f32 1.0, %v4571
    %v4573 = vxor.u32 %v4564, 2147483648
    %v4574 = vmul.f32 %v4573, 1.442695
    %v4575 = vpow.pop %v4574
    %v4576 = vadd.f32 %v4575, 1.0
    %v4577 = vrcp.pop %v4576
    %v4578 = vmul.f32 1.0, %v4577
    %v4579 = vtanh.pop %v4565
    %v4580 = vxor.u32 %v4566, 2147483648
    %v4581 = vmul.f32 %v4580, 1.442695
    %v4582 = vpow.pop %v4581
    %v4583 = vadd.f32 %v4582, 1.0
    %v4584 = vrcp.pop %v4583
    %v4585 = vmul.f32 1.0, %v4584
    %v4586 = vmul.f32 %v4578, %v4477
    %v4587 = vmul.f32 %v4572, %v4579
    %v4588 = vadd.f32 %v4586, %v4587
    %v4589 = vtanh.pop %v4588
    %v4590 = vmul.f32 %v4585, %v4589
    %v4591 = vpack.c.bf16 %v4590, %v4590
    %4592 = vmatprep.subr.bf16.mxu0 %v4113
    %4593 = vmatpush1.bf16.msra.mxu0 %v4112
    %4594 = vmatprep.subr.bf16.mxu0 %v4109
    %4595 = vmatpush1.bf16.msra.mxu0 %v4108
    %4596 = vmatprep.subr.bf16.mxu0 %v4105
    %4597 = vmatpush1.bf16.msra.mxu0 %v4104
    %4598 = vmatprep.subr.bf16.mxu0 %v4101
    %4599 = vmatpush1.bf16.msra.mxu0 %v4100
    %4600 = vmatprep.subr.bf16.mxu0 %v4097
    %4601 = vmatpush1.bf16.msra.mxu0 %v4096
    %4602 = vmatprep.subr.bf16.mxu0 %v4093
    %4603 = vmatpush1.bf16.msra.mxu0 %v4092
    %4604 = vmatprep.subr.bf16.mxu0 %v4089
    %4605 = vmatpush1.bf16.msra.mxu0 %v4088
    %4606 = vmatprep.subr.bf16.mxu0 %v4085
    %4607 = vmatpush1.bf16.msra.mxu0 %v4084
    %4608 = vmatprep.subr.bf16.mxu0 0
    %4609 = vmatpush2.bf16.msra.mxu0 0
    %4610 = vmatprep.subr.bf16.mxu0 0
    %4611 = vmatpush2.bf16.msra.mxu0 0
    %4612 = vmatprep.subr.bf16.mxu0 0
    %4613 = vmatpush2.bf16.msra.mxu0 0
    %4614 = vmatprep.subr.bf16.mxu0 0
    %4615 = vmatpush2.bf16.msra.mxu0 0
    %4616 = vmatprep.subr.bf16.mxu0 0
    %4617 = vmatpush2.bf16.msra.mxu0 0
    %4618 = vmatprep.subr.bf16.mxu0 0
    %4619 = vmatpush2.bf16.msra.mxu0 0
    %4620 = vmatprep.subr.bf16.mxu0 0
    %4621 = vmatpush2.bf16.msra.mxu0 0
    %4622 = vmatprep.subr.bf16.mxu0 0
    %4623 = vmatpush2.bf16.msra.mxu0 0
    %4624 = vmatprep.mubr.bf16.mxu0 0
    %4625 = vmatmul.mubr.bf16.gmra.mxu0 %v4591
    %v4626 = vpop.f32.mrf.mxu0
    %v4627 = vadd.f32 0.0, %v4626
    %v4628 = vpop.f32.mrf.mxu0
    %v4629 = vadd.f32 0.0, %v4628
    %v4630 = vpop.f32.mrf.mxu0
    %v4631 = vpop.f32.mrf.mxu0
    %4632 = vdwg.mxu0
    %4633 = vmatprep.subr.bf16.mxu0 %v4115
    %4634 = vmatpush1.bf16.msra.mxu0 %v4114
    %4635 = vmatprep.subr.bf16.mxu0 %v4111
    %4636 = vmatpush1.bf16.msra.mxu0 %v4110
    %4637 = vmatprep.subr.bf16.mxu0 %v4107
    %4638 = vmatpush1.bf16.msra.mxu0 %v4106
    %4639 = vmatprep.subr.bf16.mxu0 %v4103
    %4640 = vmatpush1.bf16.msra.mxu0 %v4102
    %4641 = vmatprep.subr.bf16.mxu0 %v4099
    %4642 = vmatpush1.bf16.msra.mxu0 %v4098
    %4643 = vmatprep.subr.bf16.mxu0 %v4095
    %4644 = vmatpush1.bf16.msra.mxu0 %v4094
    %4645 = vmatprep.subr.bf16.mxu0 %v4091
    %4646 = vmatpush1.bf16.msra.mxu0 %v4090
    %4647 = vmatprep.subr.bf16.mxu0 %v4087
    %4648 = vmatpush1.bf16.msra.mxu0 %v4086
    %4649 = vmatprep.subr.bf16.mxu0 0
    %4650 = vmatpush2.bf16.msra.mxu0 0
    %4651 = vmatprep.subr.bf16.mxu0 0
    %4652 = vmatpush2.bf16.msra.mxu0 0
    %4653 = vmatprep.subr.bf16.mxu0 0
    %4654 = vmatpush2.bf16.msra.mxu0 0
    %4655 = vmatprep.subr.bf16.mxu0 0
    %4656 = vmatpush2.bf16.msra.mxu0 0
    %4657 = vmatprep.subr.bf16.mxu0 0
    %4658 = vmatpush2.bf16.msra.mxu0 0
    %4659 = vmatprep.subr.bf16.mxu0 0
    %4660 = vmatpush2.bf16.msra.mxu0 0
    %4661 = vmatprep.subr.bf16.mxu0 0
    %4662 = vmatpush2.bf16.msra.mxu0 0
    %4663 = vmatprep.subr.bf16.mxu0 0
    %4664 = vmatpush2.bf16.msra.mxu0 0
    %4665 = vmatprep.mubr.bf16.mxu0 0
    %4666 = vmatmul.mubr.bf16.gmra.mxu0 %v4591
    %v4667 = vpop.f32.mrf.mxu0
    %v4668 = vadd.f32 0.0, %v4667
    %v4669 = vpop.f32.mrf.mxu0
    %v4670 = vadd.f32 0.0, %v4669
    %v4671 = vpop.f32.mrf.mxu0
    %v4672 = vpop.f32.mrf.mxu0
    %4673 = vdwg.mxu0
    %v4674 = vadd.f32 %v3968, %v4627
    %v4675 = vadd.f32 %v3969, %v4629
    %v4676 = vadd.f32 %v3970, %v4668
    %v4677 = vadd.f32 %v3971, %v4670
    %v4678 = vxor.u32 %v4674, 2147483648
    %v4679 = vmul.f32 %v4678, 1.442695
    %v4680 = vpow.pop %v4679
    %v4681 = vadd.f32 %v4680, 1.0
    %v4682 = vrcp.pop %v4681
    %v4683 = vmul.f32 1.0, %v4682
    %v4684 = vxor.u32 %v4675, 2147483648
    %v4685 = vmul.f32 %v4684, 1.442695
    %v4686 = vpow.pop %v4685
    %v4687 = vadd.f32 %v4686, 1.0
    %v4688 = vrcp.pop %v4687
    %v4689 = vmul.f32 1.0, %v4688
    %v4690 = vtanh.pop %v4676
    %v4691 = vxor.u32 %v4677, 2147483648
    %v4692 = vmul.f32 %v4691, 1.442695
    %v4693 = vpow.pop %v4692
    %v4694 = vadd.f32 %v4693, 1.0
    %v4695 = vrcp.pop %v4694
    %v4696 = vmul.f32 1.0, %v4695
    %v4697 = vmul.f32 %v4689, %v4588
    %v4698 = vmul.f32 %v4683, %v4690
    %v4699 = vadd.f32 %v4697, %v4698
    %v4700 = vtanh.pop %v4699
    %v4701 = vmul.f32 %v4696, %v4700
    %v4702 = vpack.c.bf16 %v4701, %v4701
    %4703 = vmatprep.subr.bf16.mxu0 %v4113
    %4704 = vmatpush1.bf16.msra.mxu0 %v4112
    %4705 = vmatprep.subr.bf16.mxu0 %v4109
    %4706 = vmatpush1.bf16.msra.mxu0 %v4108
    %4707 = vmatprep.subr.bf16.mxu0 %v4105
    %4708 = vmatpush1.bf16.msra.mxu0 %v4104
    %4709 = vmatprep.subr.bf16.mxu0 %v4101
    %4710 = vmatpush1.bf16.msra.mxu0 %v4100
    %4711 = vmatprep.subr.bf16.mxu0 %v4097
    %4712 = vmatpush1.bf16.msra.mxu0 %v4096
    %4713 = vmatprep.subr.bf16.mxu0 %v4093
    %4714 = vmatpush1.bf16.msra.mxu0 %v4092
    %4715 = vmatprep.subr.bf16.mxu0 %v4089
    %4716 = vmatpush1.bf16.msra.mxu0 %v4088
    %4717 = vmatprep.subr.bf16.mxu0 %v4085
    %4718 = vmatpush1.bf16.msra.mxu0 %v4084
    %4719 = vmatprep.subr.bf16.mxu0 0
    %4720 = vmatpush2.bf16.msra.mxu0 0
    %4721 = vmatprep.subr.bf16.mxu0 0
    %4722 = vmatpush2.bf16.msra.mxu0 0
    %4723 = vmatprep.subr.bf16.mxu0 0
    %4724 = vmatpush2.bf16.msra.mxu0 0
    %4725 = vmatprep.subr.bf16.mxu0 0
    %4726 = vmatpush2.bf16.msra.mxu0 0
    %4727 = vmatprep.subr.bf16.mxu0 0
    %4728 = vmatpush2.bf16.msra.mxu0 0
    %4729 = vmatprep.subr.bf16.mxu0 0
    %4730 = vmatpush2.bf16.msra.mxu0 0
    %4731 = vmatprep.subr.bf16.mxu0 0
    %4732 = vmatpush2.bf16.msra.mxu0 0
    %4733 = vmatprep.subr.bf16.mxu0 0
    %4734 = vmatpush2.bf16.msra.mxu0 0
    %4735 = vmatprep.mubr.bf16.mxu0 0
    %4736 = vmatmul.mubr.bf16.gmra.mxu0 %v4702
    %v4737 = vpop.f32.mrf.mxu0
    %v4738 = vadd.f32 0.0, %v4737
    %v4739 = vpop.f32.mrf.mxu0
    %v4740 = vadd.f32 0.0, %v4739
    %v4741 = vpop.f32.mrf.mxu0
    %v4742 = vpop.f32.mrf.mxu0
    %4743 = vdwg.mxu0
    %4744 = vmatprep.subr.bf16.mxu0 %v4115
    %4745 = vmatpush1.bf16.msra.mxu0 %v4114
    %4746 = vmatprep.subr.bf16.mxu0 %v4111
    %4747 = vmatpush1.bf16.msra.mxu0 %v4110
    %4748 = vmatprep.subr.bf16.mxu0 %v4107
    %4749 = vmatpush1.bf16.msra.mxu0 %v4106
    %4750 = vmatprep.subr.bf16.mxu0 %v4103
    %4751 = vmatpush1.bf16.msra.mxu0 %v4102
    %4752 = vmatprep.subr.bf16.mxu0 %v4099
    %4753 = vmatpush1.bf16.msra.mxu0 %v4098
    %4754 = vmatprep.subr.bf16.mxu0 %v4095
    %4755 = vmatpush1.bf16.msra.mxu0 %v4094
    %4756 = vmatprep.subr.bf16.mxu0 %v4091
    %4757 = vmatpush1.bf16.msra.mxu0 %v4090
    %4758 = vmatprep.subr.bf16.mxu0 %v4087
    %4759 = vmatpush1.bf16.msra.mxu0 %v4086
    %4760 = vmatprep.subr.bf16.mxu0 0
    %4761 = vmatpush2.bf16.msra.mxu0 0
    %4762 = vmatprep.subr.bf16.mxu0 0
    %4763 = vmatpush2.bf16.msra.mxu0 0
    %4764 = vmatprep.subr.bf16.mxu0 0
    %4765 = vmatpush2.bf16.msra.mxu0 0
    %4766 = vmatprep.subr.bf16.mxu0 0
    %4767 = vmatpush2.bf16.msra.mxu0 0
    %4768 = vmatprep.subr.bf16.mxu0 0
    %4769 = vmatpush2.bf16.msra.mxu0 0
    %4770 = vmatprep.subr.bf16.mxu0 0
    %4771 = vmatpush2.bf16.msra.mxu0 0
    %4772 = vmatprep.subr.bf16.mxu0 0
    %4773 = vmatpush2.bf16.msra.mxu0 0
    %4774 = vmatprep.subr.bf16.mxu0 0
    %4775 = vmatpush2.bf16.msra.mxu0 0
    %4776 = vmatprep.mubr.bf16.mxu0 0
    %4777 = vmatmul.mubr.bf16.gmra.mxu0 %v4702
    %v4778 = vpop.f32.mrf.mxu0
    %v4779 = vadd.f32 0.0, %v4778
    %v4780 = vpop.f32.mrf.mxu0
    %v4781 = vadd.f32 0.0, %v4780
    %v4782 = vpop.f32.mrf.mxu0
    %v4783 = vpop.f32.mrf.mxu0
    %4784 = vdwg.mxu0
    %v4785 = vadd.f32 %v3964, %v4738
    %v4786 = vadd.f32 %v3965, %v4740
    %v4787 = vadd.f32 %v3966, %v4779
    %v4788 = vadd.f32 %v3967, %v4781
    %v4789 = vxor.u32 %v4785, 2147483648
    %v4790 = vmul.f32 %v4789, 1.442695
    %v4791 = vpow.pop %v4790
    %v4792 = vadd.f32 %v4791, 1.0
    %v4793 = vrcp.pop %v4792
    %v4794 = vmul.f32 1.0, %v4793
    %v4795 = vxor.u32 %v4786, 2147483648
    %v4796 = vmul.f32 %v4795, 1.442695
    %v4797 = vpow.pop %v4796
    %v4798 = vadd.f32 %v4797, 1.0
    %v4799 = vrcp.pop %v4798
    %v4800 = vmul.f32 1.0, %v4799
    %v4801 = vtanh.pop %v4787
    %v4802 = vxor.u32 %v4788, 2147483648
    %v4803 = vmul.f32 %v4802, 1.442695
    %v4804 = vpow.pop %v4803
    %v4805 = vadd.f32 %v4804, 1.0
    %v4806 = vrcp.pop %v4805
    %v4807 = vmul.f32 1.0, %v4806
    %v4808 = vmul.f32 %v4800, %v4699
    %v4809 = vmul.f32 %v4794, %v4801
    %v4810 = vadd.f32 %v4808, %v4809
    %v4811 = vtanh.pop %v4810
    %v4812 = vmul.f32 %v4807, %v4811
    %v4813 = vpack.c.bf16 %v4812, %v4812
    %v4814 = vld [vmem:[%s15] sm:$0xf]
    %v4815 = vld [vmem:[%s15 + $0x4] sm:$0xf]
    %v4816 = vld [vmem:[%s15 + $0x8] sm:$0xf]
    %v4817 = vld [vmem:[%s15 + $0xc] sm:$0xf]
    %v4818 = vld [vmem:[%s15 + $0x10] sm:$0xf]
    %v4819 = vld [vmem:[%s15 + $0x14] sm:$0xf]
    %v4820 = vld [vmem:[%s15 + $0x18] sm:$0xf]
    %v4821 = vld [vmem:[%s15 + $0x1c] sm:$0xf]
    %v4822 = vld [vmem:[%s15 + $0x20] sm:$0xf]
    %v4823 = vld [vmem:[%s15 + $0x24] sm:$0xf]
    %v4824 = vld [vmem:[%s15 + $0x28] sm:$0xf]
    %v4825 = vld [vmem:[%s15 + $0x2c] sm:$0xf]
    %v4826 = vld [vmem:[%s15 + $0x30] sm:$0xf]
    %v4827 = vld [vmem:[%s15 + $0x34] sm:$0xf]
    %v4828 = vld [vmem:[%s15 + $0x38] sm:$0xf]
    %v4829 = vld [vmem:[%s15 + $0x3c] sm:$0xf]
    %v4830 = vld [vmem:[%s16] sm:$0x1]
    %v4832 = vlaneseq
    %v4833 = vshrl.u32 %v4832, 7
    %v4834 = vsub.s32 0, %v4833
    %v4835 = vrot.slane %v4830, %v4834
    %v4853 = vunpack.c.l.b16 %v4814
    %v4854 = vunpack.c.l.b16 %v4815
    %v4855 = vunpack.c.l.b16 %v4816
    %v4856 = vunpack.c.l.b16 %v4817
    %v4857 = vunpack.c.l.b16 %v4818
    %v4858 = vunpack.c.l.b16 %v4819
    %v4859 = vunpack.c.l.b16 %v4820
    %v4860 = vunpack.c.l.b16 %v4821
    %v4861 = vunpack.c.l.b16 %v4822
    %v4862 = vunpack.c.l.b16 %v4823
    %v4863 = vunpack.c.l.b16 %v4824
    %v4864 = vunpack.c.l.b16 %v4825
    %v4865 = vunpack.c.l.b16 %v4826
    %v4866 = vunpack.c.l.b16 %v4827
    %v4867 = vunpack.c.l.b16 %v4828
    %v4868 = vunpack.c.l.b16 %v4829
    %v4869 = vpack.c.b16 %v4854, %v4853
    %v4870 = vpack.c.b16 %v4856, %v4855
    %v4871 = vpack.c.b16 %v4858, %v4857
    %v4872 = vpack.c.b16 %v4860, %v4859
    %v4873 = vpack.c.b16 %v4862, %v4861
    %v4874 = vpack.c.b16 %v4864, %v4863
    %v4875 = vpack.c.b16 %v4866, %v4865
    %v4876 = vpack.c.b16 %v4868, %v4867
    %4885 = vmatprep.subr.bf16.mxu0 0
    %4886 = vmatpush1.bf16.msra.mxu0 %v4876
    %4887 = vmatprep.subr.bf16.mxu0 0
    %4888 = vmatpush1.bf16.msra.mxu0 %v4875
    %4889 = vmatprep.subr.bf16.mxu0 0
    %4890 = vmatpush1.bf16.msra.mxu0 %v4874
    %4891 = vmatprep.subr.bf16.mxu0 0
    %4892 = vmatpush1.bf16.msra.mxu0 %v4873
    %4893 = vmatprep.subr.bf16.mxu0 0
    %4894 = vmatpush1.bf16.msra.mxu0 %v4872
    %4895 = vmatprep.subr.bf16.mxu0 0
    %4896 = vmatpush1.bf16.msra.mxu0 %v4871
    %4897 = vmatprep.subr.bf16.mxu0 0
    %4898 = vmatpush1.bf16.msra.mxu0 %v4870
    %4899 = vmatprep.subr.bf16.mxu0 0
    %4900 = vmatpush1.bf16.msra.mxu0 %v4869
    %4901 = vmatprep.subr.bf16.mxu0 0
    %4902 = vmatpush2.bf16.msra.mxu0 0
    %4903 = vmatprep.subr.bf16.mxu0 0
    %4904 = vmatpush2.bf16.msra.mxu0 0
    %4905 = vmatprep.subr.bf16.mxu0 0
    %4906 = vmatpush2.bf16.msra.mxu0 0
    %4907 = vmatprep.subr.bf16.mxu0 0
    %4908 = vmatpush2.bf16.msra.mxu0 0
    %4909 = vmatprep.subr.bf16.mxu0 0
    %4910 = vmatpush2.bf16.msra.mxu0 0
    %4911 = vmatprep.subr.bf16.mxu0 0
    %4912 = vmatpush2.bf16.msra.mxu0 0
    %4913 = vmatprep.subr.bf16.mxu0 0
    %4914 = vmatpush2.bf16.msra.mxu0 0
    %4915 = vmatprep.subr.bf16.mxu0 0
    %4916 = vmatpush2.bf16.msra.mxu0 0
    %4917 = vmatprep.mubr.bf16.mxu0 0
    %4918 = vmatmul.mubr.bf16.gmra.mxu0 %v4813
    %v4919 = vpop.f32.mrf.mxu0
    %v4920 = vadd.f32 %v4835, %v4919
    %v4921 = vpop.f32.mrf.mxu0
    %v4922 = vpop.f32.mrf.mxu0
    %v4923 = vpop.f32.mrf.mxu0
    %4924 = vdwg.mxu0
    %v4925 = vmax.f32 %v4920, 0.0
    %v4926 = vpack.c.bf16 %v4925, %v4925
    %v4927 = vld [vmem:[%s17] sm:$0xf]
    %v4928 = vld [vmem:[%s17 + $0x4] sm:$0xf]
    %v4929 = vld [vmem:[%s17 + $0x8] sm:$0xf]
    %v4930 = vld [vmem:[%s17 + $0xc] sm:$0xf]
    %v4931 = vld [vmem:[%s17 + $0x10] sm:$0xf]
    %v4932 = vld [vmem:[%s17 + $0x14] sm:$0xf]
    %v4933 = vld [vmem:[%s17 + $0x18] sm:$0xf]
    %v4934 = vld [vmem:[%s17 + $0x1c] sm:$0xf]
    %v4935 = vld [vmem:[%s17 + $0x20] sm:$0xf]
    %v4936 = vld [vmem:[%s17 + $0x24] sm:$0xf]
    %v4937 = vld [vmem:[%s17 + $0x28] sm:$0xf]
    %v4938 = vld [vmem:[%s17 + $0x2c] sm:$0xf]
    %v4939 = vld [vmem:[%s17 + $0x30] sm:$0x3]
    %v4940 = vld [vmem:[%s18] sm:$0x1]
    %v4942 = vlaneseq
    %v4943 = vshrl.u32 %v4942, 7
    %v4944 = vsub.s32 0, %v4943
    %v4945 = vrot.slane %v4940, %v4944
    %v4960 = vunpack.c.l.b16 %v4927
    %v4961 = vunpack.c.l.b16 %v4928
    %v4962 = vunpack.c.l.b16 %v4929
    %v4963 = vunpack.c.l.b16 %v4930
    %v4964 = vunpack.c.l.b16 %v4931
    %v4965 = vunpack.c.l.b16 %v4932
    %v4966 = vunpack.c.l.b16 %v4933
    %v4967 = vunpack.c.l.b16 %v4934
    %v4968 = vunpack.c.l.b16 %v4935
    %v4969 = vunpack.c.l.b16 %v4936
    %v4970 = vunpack.c.l.b16 %v4937
    %v4971 = vunpack.c.l.b16 %v4938
    %v4972 = vunpack.c.l.b16 %v4939
    %v4973 = vpack.c.b16 %v4961, %v4960
    %v4974 = vpack.c.b16 %v4963, %v4962
    %v4975 = vpack.c.b16 %v4965, %v4964
    %v4976 = vpack.c.b16 %v4967, %v4966
    %v4977 = vpack.c.b16 %v4969, %v4968
    %v4978 = vpack.c.b16 %v4971, %v4970
    %v4979 = vpack.c.b16 %v4972, %v4972
    %vm4986 = vcmask 818176
    %v4988 = vsel %vm4986, %v4926, 0
    %vm4990 = vcmask 1041408
    %v4992 = vsel %vm4990, %v4979, 0
    %4994 = vmatprep.subr.bf16.mxu0 0
    %4995 = vmatpush1.bf16.msra.mxu0 0
    %4996 = vmatprep.subr.bf16.mxu0 0
    %4997 = vmatpush1.bf16.msra.mxu0 %v4992
    %4998 = vmatprep.subr.bf16.mxu0 0
    %4999 = vmatpush1.bf16.msra.mxu0 %v4978
    %5000 = vmatprep.subr.bf16.mxu0 0
    %5001 = vmatpush1.bf16.msra.mxu0 %v4977
    %5002 = vmatprep.subr.bf16.mxu0 0
    %5003 = vmatpush1.bf16.msra.mxu0 %v4976
    %5004 = vmatprep.subr.bf16.mxu0 0
    %5005 = vmatpush1.bf16.msra.mxu0 %v4975
    %5006 = vmatprep.subr.bf16.mxu0 0
    %5007 = vmatpush1.bf16.msra.mxu0 %v4974
    %5008 = vmatprep.subr.bf16.mxu0 0
    %5009 = vmatpush1.bf16.msra.mxu0 %v4973
    %5010 = vmatprep.subr.bf16.mxu0 0
    %5011 = vmatpush2.bf16.msra.mxu0 0
    %5012 = vmatprep.subr.bf16.mxu0 0
    %5013 = vmatpush2.bf16.msra.mxu0 0
    %5014 = vmatprep.subr.bf16.mxu0 0
    %5015 = vmatpush2.bf16.msra.mxu0 0
    %5016 = vmatprep.subr.bf16.mxu0 0
    %5017 = vmatpush2.bf16.msra.mxu0 0
    %5018 = vmatprep.subr.bf16.mxu0 0
    %5019 = vmatpush2.bf16.msra.mxu0 0
    %5020 = vmatprep.subr.bf16.mxu0 0
    %5021 = vmatpush2.bf16.msra.mxu0 0
    %5022 = vmatprep.subr.bf16.mxu0 0
    %5023 = vmatpush2.bf16.msra.mxu0 0
    %5024 = vmatprep.subr.bf16.mxu0 0
    %5025 = vmatpush2.bf16.msra.mxu0 0
    %5026 = vmatprep.mubr.bf16.mxu0 0
    %5027 = vmatmul.mubr.bf16.gmra.mxu0 %v4988
    %v5028 = vpop.f32.mrf.mxu0
    %v5029 = vadd.f32 %v4945, %v5028
    %v5030 = vpop.f32.mrf.mxu0
    %v5031 = vpop.f32.mrf.mxu0
    %v5032 = vpop.f32.mrf.mxu0
    %5033 = vdwg.mxu0
    %vm5034 = vcmask 105472
    %5035 = vst.msk [vmem:[%s19] sm:$0xff] %vm5034, %v5029
    // Predicated region
    $region102: #{cnnlstm_forward.1} parent=1 // pred_check
      _
    $region103: #{cnnlstm_forward.1} parent=1 // pred_check_branch
      %5037 = sbr.rel (0) target = $region105
    $region104: #{cnnlstm_forward.1} parent=1 // pred_region
      _
    $region105: #{cnnlstm_forward.1} parent=1 // pred_fallthru
      _
    // Predicated region
    $region106: #{cnnlstm_forward.1} parent=1 // pred_check
      _
    $region107: #{cnnlstm_forward.1} parent=1 // pred_check_branch
      %5039 = sbr.rel (0) target = $region109
    $region108: #{cnnlstm_forward.1} parent=1 // pred_region
      _
    $region109: #{cnnlstm_forward.1} parent=1 // pred_fallthru
      _
    %5040 = vsyncpa [#allocation6], 1
    %5041 = vsyncpa [#allocation8], 1
    %5042 = vsyncpa [#allocation11], 1
    %5043 = vsyncpa [#allocation14], 1

</llo_original>
